<compile_context>
chip_gen: v5e
topology: v5e:2x2
jax: 0.10.0
libtpu: 0.0.40
codegen_flags: <defaults>
</compile_context>

<pallas_src>
import functools

import jax
import jax.numpy as jnp
from jax import lax
from jax.experimental import pallas as pl
from jax.experimental.pallas import tpu as pltpu


def _softplus(x):
    # matches torch.nn.functional.softplus (beta=1, threshold=20)
    return jnp.where(x > 20.0, x, jnp.log1p(jnp.exp(jnp.minimum(x, 20.0))))


def mamba_encoder_layer_kernel(
    # inputs
    x_ref,            # (1, T, d_model) f32
    w_in_x_ref,       # (d_model, d_inner)   in_proj.weight.T[:, :d_inner]   (matmul dtype)
    w_in_z_ref,       # (d_model, d_inner)   in_proj.weight.T[:, d_inner:]   (matmul dtype)
    conv_w_ref,       # (d_conv, d_inner)    conv1d.weight[:, 0, :].T        f32
    conv_b_ref,       # (1, d_inner)         f32
    w_xp_ref,         # (d_inner, xp_pad)    fused x_proj.weight.T [dt|B|C], 0-padded (matmul dtype)
    w_dt_ref,         # (dt_rank, d_inner)   dt_proj.weight.T                f32
    b_dt_ref,         # (1, d_inner)         f32
    a_neg_t_ref,      # (d_state, d_inner)   -(exp(A_log)).T (precomputed)   f32
    d_param_ref,      # (1, d_inner)         f32
    w_out_ref,        # (d_inner, d_model)   out_proj.weight.T               (matmul dtype)
    ln_w_ref,         # (1, d_model)         f32
    ln_b_ref,         # (1, d_model)         f32
    # output
    o_ref,            # (1, T, d_model) f32
    # scratch (persists across grid steps -> state carried across time chunks)
    h_state_ref,      # (d_state, d_inner)        SSM state between chunks
    conv_buf_ref,     # (CPAD + T, d_inner)       rows [CPAD-(d_conv-1):CPAD] = prev tail
    dA_ref,           # (T, d_state, d_inner)     exp(dt*A) for the chunk
    dBx_ref,          # (T, d_state, d_inner)     dt*x*B for the chunk
    cm_col_ref,       # (T, d_state, 1)           C in broadcast-ready column layout
    y_ref,            # (T, d_inner)              per-step readout y_t
    *, T, d_inner, d_state, dt_rank, d_conv, conv_pad,
):
    t_idx = pl.program_id(1)
    c = d_conv - 1
    cpad = conv_pad
    mm_dtype = w_out_ref.dtype

    # Reset carried state at the start of each sequence (new batch element).
    @pl.when(t_idx == 0)
    def _():
        h_state_ref[...] = jnp.zeros_like(h_state_ref)
        conv_buf_ref[0:cpad, :] = jnp.zeros((cpad, d_inner), jnp.float32)

    x = x_ref[0]                                            # (T, d_model) f32
    x_mm = x.astype(mm_dtype)

    # ---- in_proj (bias=False), split halves, bf16 MXU + f32 accumulation ----
    xi_raw = jnp.dot(x_mm, w_in_x_ref[...], preferred_element_type=jnp.float32)
    z = jnp.dot(x_mm, w_in_z_ref[...], preferred_element_type=jnp.float32)

    # ---- causal depthwise conv over time + SiLU ------------------------------
    # Chunk rows live at a sublane-aligned offset (cpad); the last tap uses
    # xi_raw directly from registers, only the c shifted taps read the buffer.
    conv_buf_ref[cpad:, :] = xi_raw
    cw = conv_w_ref[...]
    acc = xi_raw * cw[c:c + 1, :]
    for k in range(c):                                      # d_conv is tiny & static
        acc = acc + conv_buf_ref[cpad - c + k:cpad - c + k + T, :] * cw[k:k + 1, :]
    # save tail for the next chunk (reads above used the previous tail)
    conv_buf_ref[cpad - c:cpad, :] = xi_raw[T - c:T, :]
    acc = acc + conv_b_ref[...]
    xi = acc * jax.nn.sigmoid(acc)                          # SiLU

    # ---- x_proj: ONE fused (zero-padded) dot, slice results in-register ------
    xdbl = jnp.dot(xi.astype(mm_dtype), w_xp_ref[...],
                   preferred_element_type=jnp.float32)      # (T, xp_pad)
    dt_low = xdbl[:, :dt_rank]                              # (T, dt_rank)
    Bm = xdbl[:, dt_rank:dt_rank + d_state]                 # (T, d_state)
    Cm = xdbl[:, dt_rank + d_state:dt_rank + 2 * d_state]   # (T, d_state)

    # ---- dt_proj: MXU for realistic dt_rank, VPU FMAs only when tiny ---------
    if dt_rank >= 8:
        dt = jnp.dot(dt_low.astype(mm_dtype), w_dt_ref[...].astype(mm_dtype),
                     preferred_element_type=jnp.float32)    # (T, d_inner)
    else:
        w_dt = w_dt_ref[...]
        dt = jnp.zeros((T, d_inner), jnp.float32)
        for r in range(dt_rank):
            dt = dt + dt_low[:, r:r + 1] * w_dt[r:r + 1, :]
    dt = _softplus(dt + b_dt_ref[...])                      # (T, d_inner)

    # ---- batched precompute of scan coefficients (off the serial path) -------
    # (B/C lane-broadcasts go through the XLU; VALU/MXU bind here, so they are
    #  effectively free — revisit only if a bundle dump shows XLU saturating.)
    a_neg = a_neg_t_ref[...]                                # (d_state, d_inner)
    dA_ref[...] = jnp.exp(dt[:, None, :] * a_neg[None, :, :])
    dBx_ref[...] = (dt * xi)[:, None, :] * Bm[:, :, None]
    cm_col_ref[...] = Cm[:, :, None]                        # broadcast-ready columns

    # ---- serial recurrence with fused C readout -------------------------------
    # Per step: h = dA*h + dBx (2 VPU FMAs), y_t = sum_s C[t,s]*h[s,:] (mul +
    # sublane reduce, off the h->h critical chain), one d_inner-row store.
    def scan_body(t, h):
        h = dA_ref[t] * h + dBx_ref[t]                      # (d_state, d_inner)
        y_ref[t] = jnp.sum(h * cm_col_ref[t], axis=0)       # (d_inner,)
        return h

    h_final = lax.fori_loop(0, T, scan_body, h_state_ref[...],
                            unroll=True if T <= 32 else 8)
    h_state_ref[...] = h_final                              # carry to next chunk

    # ---- D skip + gate --------------------------------------------------------
    y = y_ref[...]
    y = y + xi * d_param_ref[...]
    y = y * (z * jax.nn.sigmoid(z))                         # gate: y * SiLU(z)

    # ---- out_proj (bias=False) ------------------------------------------------
    out_m = jnp.dot(y.astype(mm_dtype), w_out_ref[...],
                    preferred_element_type=jnp.float32)

    # ---- LayerNorm(eps=1e-6) + residual ---------------------------------------
    mu = jnp.mean(out_m, axis=-1, keepdims=True)
    var = jnp.mean((out_m - mu) ** 2, axis=-1, keepdims=True)
    normed = (out_m - mu) * lax.rsqrt(var + 1e-6)
    normed = normed * ln_w_ref[...] + ln_b_ref[...]

    o_ref[0] = x + normed


def _round_up(v, m):
    return (v + m - 1) // m * m


def _prepare_weights(params, *, d_inner, d_state, dt_rank, matmul_dtype):
    """Layout plumbing done once in the wrapper (outside the kernel)."""
    w_in = params["W_in_T"]                      # (d_model, 2*d_inner)
    w_xp = params["W_xp_T"]                      # (d_inner, dt_rank + 2*d_state) [dt|B|C]
    xp_w = dt_rank + 2 * d_state
    xp_pad = _round_up(xp_w, 128)
    w_xp_padded = jnp.zeros((w_xp.shape[0], xp_pad), w_xp.dtype).at[:, :xp_w].set(w_xp)
    return [
        w_in[:, :d_inner].astype(matmul_dtype),  # W_in_x_T
        w_in[:, d_inner:].astype(matmul_dtype),  # W_in_z_T
        params["conv_w_T"],
        params["conv_b"],
        w_xp_padded.astype(matmul_dtype),        # fused, lane-padded x_proj
        params["W_dt_T"],
        params["b_dt"],
        -jnp.exp(params["A_log"]).T,             # A_neg_T (constant, hoisted)
        params["D"],
        params["W_out_T"].astype(matmul_dtype),
        params["ln_w"],
        params["ln_b"],
    ]


def _vmem_limit_bytes(plist, *, T, d_model, d_state, d_inner, conv_pad):
    weight_bytes = sum(int(p.size) * p.dtype.itemsize for p in plist)
    io_bytes = 2 * 2 * T * d_model * 4           # x & o blocks, double-buffered
    scratch_bytes = 4 * (d_state * d_inner
                         + (conv_pad + T) * d_inner
                         + 2 * T * d_state * d_inner
                         + T * d_state * 128     # (T, d_state, 1) is lane-padded
                         + T * d_inner)
    est = int(1.25 * (2 * weight_bytes + io_bytes + scratch_bytes))
    return int(min(max(est, 32 * 1024 * 1024), 100 * 1024 * 1024))


def mamba_encoder_layer(x, params, *, d_inner, d_state, dt_rank, d_conv,
                        time_chunk=None, matmul_dtype=jnp.bfloat16):
    B, L, d_model = x.shape
    # T is the M dim of every matmul; 128 is a safe default for v7x's 64 MiB
    # VMEM, raise to 256 on v6e/v5e (128 MiB) when the budget below allows it.
    T = min(L, 128) if time_chunk is None else time_chunk
    assert L % T == 0, "L must be a multiple of the time chunk"
    assert T >= d_conv, "time chunk must cover the conv receptive field"
    nt = L // T
    CPAD = 8                                     # sublane-aligned chunk start in conv buffer

    plist = _prepare_weights(params, d_inner=d_inner, d_state=d_state,
                             dt_rank=dt_rank, matmul_dtype=matmul_dtype)

    kernel = functools.partial(
        mamba_encoder_layer_kernel,
        T=T, d_inner=d_inner, d_state=d_state,
        dt_rank=dt_rank, d_conv=d_conv, conv_pad=CPAD,
    )

    vmem_limit = _vmem_limit_bytes(plist, T=T, d_model=d_model, d_state=d_state,
                                   d_inner=d_inner, conv_pad=CPAD)

    def build(weight_buffer_count):
        def const_spec(a):
            nd = a.ndim
            idx = lambda b, t, _nd=nd: (0,) * _nd
            if weight_buffer_count is None:
                return pl.BlockSpec(a.shape, idx)
            # constant index_map -> single-buffer the weights (halves weight VMEM)
            return pl.BlockSpec(a.shape, idx,
                                pipeline_mode=pl.Buffered(weight_buffer_count))

        in_specs = [pl.BlockSpec((1, T, d_model), lambda b, t: (b, t, 0))]
        in_specs += [const_spec(p) for p in plist]

        return pl.pallas_call(
            kernel,
            out_shape=jax.ShapeDtypeStruct((B, L, d_model), jnp.float32),
            grid=(B, nt),
            in_specs=in_specs,
            out_specs=pl.BlockSpec((1, T, d_model), lambda b, t: (b, t, 0)),
            scratch_shapes=[
                pltpu.VMEM((d_state, d_inner), jnp.float32),        # h carried over chunks
                pltpu.VMEM((CPAD + T, d_inner), jnp.float32),       # conv tail + chunk
                pltpu.VMEM((T, d_state, d_inner), jnp.float32),     # dA
                pltpu.VMEM((T, d_state, d_inner), jnp.float32),     # dBx
                pltpu.VMEM((T, d_state, 1), jnp.float32),           # C columns
                pltpu.VMEM((T, d_inner), jnp.float32),              # y readout
            ],
            compiler_params=pltpu.CompilerParams(
                # batch axis 'parallel' (megacore), time axis MUST stay
                # 'arbitrary' / innermost: the h / conv-tail carry depends on it.
                dimension_semantics=("parallel", "arbitrary"),
                vmem_limit_bytes=vmem_limit,
            ),
        )

    try:
        return build(1)(x, *plist)
    except Exception:
        # Fallback for JAX versions where pipeline_mode=pl.Buffered(1) is not
        # accepted on top-level pallas_call BlockSpecs.
        return build(None)(x, *plist)


def reference_forward(x, params, *, d_inner, d_state, dt_rank, d_conv):
    """Pure-JAX f32 reference of the same forward pass (for verification)."""
    B, L, d_model = x.shape
    xz = jnp.einsum("bld,de->ble", x, params["W_in_T"])
    xi, z = xz[..., :d_inner], xz[..., d_inner:]

    xp = jnp.pad(xi, ((0, 0), (d_conv - 1, 0), (0, 0)))
    acc = jnp.zeros_like(xi)
    for k in range(d_conv):
        acc = acc + xp[:, k:k + L, :] * params["conv_w_T"][k][None, None, :]
    xi = acc + params["conv_b"][0][None, None, :]
    xi = xi * jax.nn.sigmoid(xi)

    x_dbl = jnp.einsum("ble,er->blr", xi, params["W_xp_T"])
    dt_low = x_dbl[..., :dt_rank]
    Bm = x_dbl[..., dt_rank:dt_rank + d_state]
    Cm = x_dbl[..., dt_rank + d_state:]
    dt = _softplus(jnp.einsum("blr,re->ble", dt_low, params["W_dt_T"])
                   + params["b_dt"][0][None, None, :])

    A = -jnp.exp(params["A_log"])                            # (d_inner, d_state)
    h = jnp.zeros((B, d_inner, d_state), jnp.float32)
    ys = []
    for t in range(L):
        dA = jnp.exp(dt[:, t, :, None] * A[None])
        dBx = dt[:, t, :, None] * Bm[:, t, None, :] * xi[:, t, :, None]
        h = dA * h + dBx
        ys.append(jnp.einsum("bes,bs->be", h, Cm[:, t]))
    y = jnp.stack(ys, axis=1)
    y = y + xi * params["D"][0][None, None, :]
    y = y * (z * jax.nn.sigmoid(z))

    out_m = jnp.einsum("ble,ed->bld", y, params["W_out_T"])
    mu = jnp.mean(out_m, axis=-1, keepdims=True)
    var = jnp.mean((out_m - mu) ** 2, axis=-1, keepdims=True)
    normed = (out_m - mu) * lax.rsqrt(var + 1e-6)
    normed = normed * params["ln_w"][0][None, None, :] + params["ln_b"][0][None, None, :]
    return x + normed


if __name__ == "__main__":
    # Small, module-consistent shapes; L = 2 chunks so the cross-chunk state
    # carry (h + conv tail) is actually exercised.
    B, L, d_model = 2, 16, 32
    expand, d_state, d_conv = 2, 16, 4
    d_inner = expand * d_model                               # 64
    dt_rank = (d_model + 15) // 16                           # ceil(d_model/16) = 2
    T = 8                                                    # time chunk

    key = jax.random.PRNGKey(0)
    ks = jax.random.split(key, 8)

    params = {
        # stored pre-transposed (weight.T) so the kernel does x @ W_T directly
        "W_in_T":   (jax.random.normal(ks[0], (2 * d_inner, d_model)) * 0.05).T,
        "conv_w_T": (jax.random.normal(ks[1], (d_inner, d_conv)) * 0.10).T,
        "conv_b":   (jax.random.normal(ks[2], (d_inner,)) * 0.10).reshape(1, d_inner),
        "W_xp_T":   (jax.random.normal(ks[3], (dt_rank + 2 * d_state, d_inner)) * 0.05).T,
        "W_dt_T":   (jax.random.normal(ks[4], (d_inner, dt_rank)) * 0.10).T,
        "b_dt":     (jax.random.normal(ks[5], (d_inner,)) * 0.10).reshape(1, d_inner),
        "A_log":    jnp.tile(jnp.log(jnp.arange(1, d_state + 1, dtype=jnp.float32)),
                             (d_inner, 1)),
        "D":        jnp.ones((1, d_inner), jnp.float32),
        "W_out_T":  (jax.random.normal(ks[6], (d_model, d_inner)) * 0.05).T,
        "ln_w":     jnp.ones((1, d_model), jnp.float32),
        "ln_b":     jnp.zeros((1, d_model), jnp.float32),
    }
    params = jax.tree_util.tree_map(lambda a: a.astype(jnp.float32), params)

    x = jax.random.normal(ks[7], (B, L, d_model), dtype=jnp.float32)

    ref = reference_forward(x, params, d_inner=d_inner, d_state=d_state,
                            dt_rank=dt_rank, d_conv=d_conv)
    ref = jax.block_until_ready(ref)

    # 1) f32 matmul path: tight check (validates the kernel logic exactly).
    out_f32 = mamba_encoder_layer(x, params, d_inner=d_inner, d_state=d_state,
                                  dt_rank=dt_rank, d_conv=d_conv, time_chunk=T,
                                  matmul_dtype=jnp.float32)
    out_f32 = jax.block_until_ready(out_f32)
    assert out_f32.shape == (B, L, d_model) and out_f32.dtype == jnp.float32
    assert jnp.allclose(out_f32, ref, atol=1e-4, rtol=1e-4), \
        f"f32 max abs err {jnp.max(jnp.abs(out_f32 - ref))}"

    # 2) bf16 matmul path (the performance default): relaxed check.
    out_bf = mamba_encoder_layer(x, params, d_inner=d_inner, d_state=d_state,
                                 dt_rank=dt_rank, d_conv=d_conv, time_chunk=T,
                                 matmul_dtype=jnp.bfloat16)
    out_bf = jax.block_until_ready(out_bf)
    assert out_bf.shape == (B, L, d_model) and out_bf.dtype == jnp.float32
    bf_err = float(jnp.max(jnp.abs(out_bf - ref)))
    assert bf_err < 1e-1, f"bf16 max abs err {bf_err}"

    print("KERNEL_OK")
</pallas_src>

<mosaic_0001>
module attributes {stable_mosaic.version = 11 : i64} {
  func.func @mamba_encoder_layer_kernel(%arg0: i32, %arg1: i32, %arg2: memref<1x8x32xf32, #tpu.memory_space<vmem>>, %arg3: memref<32x64xf32, #tpu.memory_space<vmem>>, %arg4: memref<32x64xf32, #tpu.memory_space<vmem>>, %arg5: memref<4x64xf32, #tpu.memory_space<vmem>>, %arg6: memref<1x64xf32, #tpu.memory_space<vmem>>, %arg7: memref<64x128xf32, #tpu.memory_space<vmem>>, %arg8: memref<2x64xf32, #tpu.memory_space<vmem>>, %arg9: memref<1x64xf32, #tpu.memory_space<vmem>>, %arg10: memref<16x64xf32, #tpu.memory_space<vmem>>, %arg11: memref<1x64xf32, #tpu.memory_space<vmem>>, %arg12: memref<64x32xf32, #tpu.memory_space<vmem>>, %arg13: memref<1x32xf32, #tpu.memory_space<vmem>>, %arg14: memref<1x32xf32, #tpu.memory_space<vmem>>, %arg15: memref<1x8x32xf32, #tpu.memory_space<vmem>>, %arg16: memref<16x64xf32, #tpu.memory_space<vmem>>, %arg17: memref<16x64xf32, #tpu.memory_space<vmem>>, %arg18: memref<8x16x64xf32, #tpu.memory_space<vmem>>, %arg19: memref<8x16x64xf32, #tpu.memory_space<vmem>>, %arg20: memref<8x16x1xf32, #tpu.memory_space<vmem>>, %arg21: memref<8x64xf32, #tpu.memory_space<vmem>>) attributes {dimension_semantics = [#tpu.dimension_semantics<parallel>, #tpu.dimension_semantics<arbitrary>], iteration_bounds = array<i64: 2, 2>, scalar_prefetch = 0 : i64, scratch_operands = 6 : i64, tpu.core_type = #tpu.core_type<tc>, window_params = [{transform_indices = @transform_0, window_bounds = array<i64: 1, 8, 32>}, {pipeline_mode = #tpu.pipeline_mode<synchronous>, transform_indices = @transform_1, window_bounds = array<i64: 32, 64>}, {pipeline_mode = #tpu.pipeline_mode<synchronous>, transform_indices = @transform_2, window_bounds = array<i64: 32, 64>}, {pipeline_mode = #tpu.pipeline_mode<synchronous>, transform_indices = @transform_3, window_bounds = array<i64: 4, 64>}, {pipeline_mode = #tpu.pipeline_mode<synchronous>, transform_indices = @transform_4, window_bounds = array<i64: 1, 64>}, {pipeline_mode = #tpu.pipeline_mode<synchronous>, transform_indices = @transform_5, window_bounds = array<i64: 64, 128>}, {pipeline_mode = #tpu.pipeline_mode<synchronous>, transform_indices = @transform_6, window_bounds = array<i64: 2, 64>}, {pipeline_mode = #tpu.pipeline_mode<synchronous>, transform_indices = @transform_7, window_bounds = array<i64: 1, 64>}, {pipeline_mode = #tpu.pipeline_mode<synchronous>, transform_indices = @transform_8, window_bounds = array<i64: 16, 64>}, {pipeline_mode = #tpu.pipeline_mode<synchronous>, transform_indices = @transform_9, window_bounds = array<i64: 1, 64>}, {pipeline_mode = #tpu.pipeline_mode<synchronous>, transform_indices = @transform_10, window_bounds = array<i64: 64, 32>}, {pipeline_mode = #tpu.pipeline_mode<synchronous>, transform_indices = @transform_11, window_bounds = array<i64: 1, 32>}, {pipeline_mode = #tpu.pipeline_mode<synchronous>, transform_indices = @transform_12, window_bounds = array<i64: 1, 32>}, {transform_indices = @transform_13, window_bounds = array<i64: 1, 8, 32>}]} {
    %c0_i32 = arith.constant 0 : i32
    %0 = arith.cmpi eq, %arg1, %c0_i32 : i32
    %1 = arith.extui %0 : i1 to i32
    %c0_i32_0 = arith.constant 0 : i32
    %2 = arith.cmpi ne, %1, %c0_i32_0 : i32
    scf.if %2 {
      %cst_129 = arith.constant 0.000000e+00 : f32
      %274 = vector.broadcast %cst_129 : f32 to vector<16x64xf32>
      %c0_130 = arith.constant 0 : index
      %c0_131 = arith.constant 0 : index
      %275 = vector.load %arg16[%c0_130, %c0_131] : memref<16x64xf32, #tpu.memory_space<vmem>>, vector<16x64xf32>
      tpu.vector_store %arg16[%c0_130, %c0_131], %274 {strides = array<i32>} : memref<16x64xf32, #tpu.memory_space<vmem>>, vector<16x64xf32>,
      %cst_132 = arith.constant 0.000000e+00 : f32
      %276 = vector.broadcast %cst_132 : f32 to vector<8x64xf32>
      %c0_133 = arith.constant 0 : index
      %c0_134 = arith.constant 0 : index
      %277 = vector.load %arg17[%c0_133, %c0_134] : memref<16x64xf32, #tpu.memory_space<vmem>>, vector<8x64xf32>
      tpu.vector_store %arg17[%c0_133, %c0_134], %276 {strides = array<i32>} : memref<16x64xf32, #tpu.memory_space<vmem>>, vector<8x64xf32>,
    } else {
    }
    %c0 = arith.constant 0 : index
    %c0_1 = arith.constant 0 : index
    %c0_2 = arith.constant 0 : index
    %3 = vector.load %arg2[%c0, %c0_1, %c0_2] : memref<1x8x32xf32, #tpu.memory_space<vmem>>, vector<1x8x32xf32>
    %4 = vector.shape_cast %3 : vector<1x8x32xf32> to vector<8x32xf32>
    %c0_3 = arith.constant 0 : index
    %c0_4 = arith.constant 0 : index
    %5 = vector.load %arg3[%c0_3, %c0_4] : memref<32x64xf32, #tpu.memory_space<vmem>>, vector<32x64xf32>
    %cst = arith.constant dense<0.000000e+00> : vector<8x64xf32>
    %6 = tpu.matmul %4, %5, %cst {dimension_numbers = #tpu.dot_dimension_numbers<[1], [0], [0], [1], [0, 0, 1, 1], [], []>} : vector<8x32xf32>, vector<32x64xf32>, vector<8x64xf32> -> vector<8x64xf32>
    %c0_5 = arith.constant 0 : index
    %c0_6 = arith.constant 0 : index
    %7 = vector.load %arg4[%c0_5, %c0_6] : memref<32x64xf32, #tpu.memory_space<vmem>>, vector<32x64xf32>
    %cst_7 = arith.constant dense<0.000000e+00> : vector<8x64xf32>
    %8 = tpu.matmul %4, %7, %cst_7 {dimension_numbers = #tpu.dot_dimension_numbers<[1], [0], [0], [1], [0, 0, 1, 1], [], []>} : vector<8x32xf32>, vector<32x64xf32>, vector<8x64xf32> -> vector<8x64xf32>
    %c8 = arith.constant 8 : index
    %c0_8 = arith.constant 0 : index
    %9 = vector.load %arg17[%c8, %c0_8] : memref<16x64xf32, #tpu.memory_space<vmem>>, vector<8x64xf32>
    tpu.vector_store %arg17[%c8, %c0_8], %6 {strides = array<i32>} : memref<16x64xf32, #tpu.memory_space<vmem>>, vector<8x64xf32>,
    %c0_9 = arith.constant 0 : index
    %c0_10 = arith.constant 0 : index
    %10 = vector.load %arg5[%c0_9, %c0_10] : memref<4x64xf32, #tpu.memory_space<vmem>>, vector<4x64xf32>
    %11 = vector.extract_strided_slice %10 {offsets = [3, 0], sizes = [1, 64], strides = [1, 1]} : vector<4x64xf32> to vector<1x64xf32>
    %12 = vector.broadcast %11 : vector<1x64xf32> to vector<8x64xf32>
    %13 = arith.mulf %6, %12 : vector<8x64xf32>
    %c5 = arith.constant 5 : index
    %c0_11 = arith.constant 0 : index
    %14 = vector.load %arg17[%c5, %c0_11] : memref<16x64xf32, #tpu.memory_space<vmem>>, vector<8x64xf32>
    %15 = vector.extract_strided_slice %10 {offsets = [0, 0], sizes = [1, 64], strides = [1, 1]} : vector<4x64xf32> to vector<1x64xf32>
    %16 = vector.broadcast %15 : vector<1x64xf32> to vector<8x64xf32>
    %17 = arith.mulf %14, %16 : vector<8x64xf32>
    %18 = arith.addf %13, %17 : vector<8x64xf32>
    %c6 = arith.constant 6 : index
    %c0_12 = arith.constant 0 : index
    %19 = vector.load %arg17[%c6, %c0_12] : memref<16x64xf32, #tpu.memory_space<vmem>>, vector<8x64xf32>
    %20 = vector.extract_strided_slice %10 {offsets = [1, 0], sizes = [1, 64], strides = [1, 1]} : vector<4x64xf32> to vector<1x64xf32>
    %21 = vector.broadcast %20 : vector<1x64xf32> to vector<8x64xf32>
    %22 = arith.mulf %19, %21 : vector<8x64xf32>
    %23 = arith.addf %18, %22 : vector<8x64xf32>
    %c7 = arith.constant 7 : index
    %c0_13 = arith.constant 0 : index
    %24 = vector.load %arg17[%c7, %c0_13] : memref<16x64xf32, #tpu.memory_space<vmem>>, vector<8x64xf32>
    %25 = vector.extract_strided_slice %10 {offsets = [2, 0], sizes = [1, 64], strides = [1, 1]} : vector<4x64xf32> to vector<1x64xf32>
    %26 = vector.broadcast %25 : vector<1x64xf32> to vector<8x64xf32>
    %27 = arith.mulf %24, %26 : vector<8x64xf32>
    %28 = arith.addf %23, %27 : vector<8x64xf32>
    %29 = vector.extract_strided_slice %6 {offsets = [5, 0], sizes = [3, 64], strides = [1, 1]} : vector<8x64xf32> to vector<3x64xf32>
    %c5_14 = arith.constant 5 : index
    %c0_15 = arith.constant 0 : index
    %30 = vector.load %arg17[%c5_14, %c0_15] : memref<16x64xf32, #tpu.memory_space<vmem>>, vector<3x64xf32>
    tpu.vector_store %arg17[%c5_14, %c0_15], %29 {strides = array<i32>} : memref<16x64xf32, #tpu.memory_space<vmem>>, vector<3x64xf32>,
    %c0_16 = arith.constant 0 : index
    %c0_17 = arith.constant 0 : index
    %31 = vector.load %arg6[%c0_16, %c0_17] : memref<1x64xf32, #tpu.memory_space<vmem>>, vector<1x64xf32>
    %32 = vector.broadcast %31 : vector<1x64xf32> to vector<8x64xf32>
    %33 = arith.addf %28, %32 : vector<8x64xf32>
    %34 = arith.negf %33 : vector<8x64xf32>
    %35 = math.exp %34 : vector<8x64xf32>
    %cst_18 = arith.constant 1.000000e+00 : f32
    %36 = vector.broadcast %cst_18 : f32 to vector<8x64xf32>
    %37 = arith.addf %36, %35 : vector<8x64xf32>
    %38 = arith.divf %36, %37 : vector<8x64xf32>
    %39 = arith.mulf %33, %38 : vector<8x64xf32>
    %c0_19 = arith.constant 0 : index
    %c0_20 = arith.constant 0 : index
    %40 = vector.load %arg7[%c0_19, %c0_20] : memref<64x128xf32, #tpu.memory_space<vmem>>, vector<64x128xf32>
    %cst_21 = arith.constant dense<0.000000e+00> : vector<8x128xf32>
    %41 = tpu.matmul %39, %40, %cst_21 {dimension_numbers = #tpu.dot_dimension_numbers<[1], [0], [0], [1], [0, 0, 1, 1], [], []>} : vector<8x64xf32>, vector<64x128xf32>, vector<8x128xf32> -> vector<8x128xf32>
    %42 = vector.extract_strided_slice %41 {offsets = [0, 0], sizes = [8, 2], strides = [1, 1]} : vector<8x128xf32> to vector<8x2xf32>
    %43 = vector.extract_strided_slice %41 {offsets = [0, 2], sizes = [8, 16], strides = [1, 1]} : vector<8x128xf32> to vector<8x16xf32>
    %44 = vector.extract_strided_slice %41 {offsets = [0, 18], sizes = [8, 16], strides = [1, 1]} : vector<8x128xf32> to vector<8x16xf32>
    %c0_22 = arith.constant 0 : index
    %c0_23 = arith.constant 0 : index
    %45 = vector.load %arg8[%c0_22, %c0_23] : memref<2x64xf32, #tpu.memory_space<vmem>>, vector<2x64xf32>
    %cst_24 = arith.constant 0.000000e+00 : f32
    %46 = vector.broadcast %cst_24 : f32 to vector<8x64xf32>
    %47 = vector.extract_strided_slice %42 {offsets = [0, 0], sizes = [8, 1], strides = [1, 1]} : vector<8x2xf32> to vector<8x1xf32>
    %48 = vector.extract_strided_slice %45 {offsets = [0, 0], sizes = [1, 64], strides = [1, 1]} : vector<2x64xf32> to vector<1x64xf32>
    %49 = vector.broadcast %47 : vector<8x1xf32> to vector<8x64xf32>
    %50 = vector.broadcast %48 : vector<1x64xf32> to vector<8x64xf32>
    %51 = arith.mulf %49, %50 : vector<8x64xf32>
    %52 = arith.addf %46, %51 : vector<8x64xf32>
    %53 = vector.extract_strided_slice %42 {offsets = [0, 1], sizes = [8, 1], strides = [1, 1]} : vector<8x2xf32> to vector<8x1xf32>
    %54 = vector.extract_strided_slice %45 {offsets = [1, 0], sizes = [1, 64], strides = [1, 1]} : vector<2x64xf32> to vector<1x64xf32>
    %55 = vector.broadcast %53 : vector<8x1xf32> to vector<8x64xf32>
    %56 = vector.broadcast %54 : vector<1x64xf32> to vector<8x64xf32>
    %57 = arith.mulf %55, %56 : vector<8x64xf32>
    %58 = arith.addf %52, %57 : vector<8x64xf32>
    %c0_25 = arith.constant 0 : index
    %c0_26 = arith.constant 0 : index
    %59 = vector.load %arg9[%c0_25, %c0_26] : memref<1x64xf32, #tpu.memory_space<vmem>>, vector<1x64xf32>
    %60 = vector.broadcast %59 : vector<1x64xf32> to vector<8x64xf32>
    %61 = arith.addf %58, %60 : vector<8x64xf32>
    %cst_27 = arith.constant 2.000000e+01 : f32
    %62 = vector.broadcast %cst_27 : f32 to vector<8x64xf32>
    %63 = arith.cmpf ogt, %61, %62 : vector<8x64xf32>
    %cst_28 = arith.constant 2.000000e+01 : f32
    %64 = vector.broadcast %cst_28 : f32 to vector<8x64xf32>
    %65 = arith.minimumf %61, %64 : vector<8x64xf32>
    %66 = math.exp %65 : vector<8x64xf32>
    %67 = math.log1p %66 : vector<8x64xf32>
    %68 = arith.select %63, %61, %67 : vector<8x64xi1>, vector<8x64xf32>
    %c0_29 = arith.constant 0 : index
    %c0_30 = arith.constant 0 : index
    %69 = vector.load %arg10[%c0_29, %c0_30] : memref<16x64xf32, #tpu.memory_space<vmem>>, vector<16x64xf32>
    %70 = vector.shape_cast %68 : vector<8x64xf32> to vector<8x1x64xf32>
    %71 = vector.shape_cast %69 : vector<16x64xf32> to vector<1x16x64xf32>
    %72 = vector.broadcast %70 : vector<8x1x64xf32> to vector<8x16x64xf32>
    %73 = vector.broadcast %71 : vector<1x16x64xf32> to vector<8x16x64xf32>
    %74 = arith.mulf %72, %73 : vector<8x16x64xf32>
    %75 = math.exp %74 : vector<8x16x64xf32>
    %c0_31 = arith.constant 0 : index
    %c0_32 = arith.constant 0 : index
    %c0_33 = arith.constant 0 : index
    %76 = vector.load %arg18[%c0_31, %c0_32, %c0_33] : memref<8x16x64xf32, #tpu.memory_space<vmem>>, vector<8x16x64xf32>
    tpu.vector_store %arg18[%c0_31, %c0_32, %c0_33], %75 {strides = array<i32>} : memref<8x16x64xf32, #tpu.memory_space<vmem>>, vector<8x16x64xf32>,
    %77 = arith.mulf %68, %39 : vector<8x64xf32>
    %78 = vector.shape_cast %77 : vector<8x64xf32> to vector<8x1x64xf32>
    %79 = vector.shape_cast %43 : vector<8x16xf32> to vector<8x16x1xf32>
    %80 = vector.broadcast %78 : vector<8x1x64xf32> to vector<8x16x64xf32>
    %81 = vector.broadcast %79 : vector<8x16x1xf32> to vector<8x16x64xf32>
    %82 = arith.mulf %80, %81 : vector<8x16x64xf32>
    %c0_34 = arith.constant 0 : index
    %c0_35 = arith.constant 0 : index
    %c0_36 = arith.constant 0 : index
    %83 = vector.load %arg19[%c0_34, %c0_35, %c0_36] : memref<8x16x64xf32, #tpu.memory_space<vmem>>, vector<8x16x64xf32>
    tpu.vector_store %arg19[%c0_34, %c0_35, %c0_36], %82 {strides = array<i32>} : memref<8x16x64xf32, #tpu.memory_space<vmem>>, vector<8x16x64xf32>,
    %84 = vector.shape_cast %44 : vector<8x16xf32> to vector<8x16x1xf32>
    %c0_37 = arith.constant 0 : index
    %c0_38 = arith.constant 0 : index
    %c0_39 = arith.constant 0 : index
    %85 = vector.load %arg20[%c0_37, %c0_38, %c0_39] : memref<8x16x1xf32, #tpu.memory_space<vmem>>, vector<8x16x1xf32>
    tpu.vector_store %arg20[%c0_37, %c0_38, %c0_39], %84 {strides = array<i32>} : memref<8x16x1xf32, #tpu.memory_space<vmem>>, vector<8x16x1xf32>,
    %c0_40 = arith.constant 0 : index
    %c0_41 = arith.constant 0 : index
    %86 = vector.load %arg16[%c0_40, %c0_41] : memref<16x64xf32, #tpu.memory_space<vmem>>, vector<16x64xf32>
    %c0_i32_42 = arith.constant 0 : i32
    %87 = arith.index_cast %c0_i32_42 : i32 to index
    %c0_43 = arith.constant 0 : index
    %c0_44 = arith.constant 0 : index
    %88 = vector.load %arg18[%87, %c0_43, %c0_44] : memref<8x16x64xf32, #tpu.memory_space<vmem>>, vector<1x16x64xf32>
    %89 = vector.shape_cast %88 : vector<1x16x64xf32> to vector<16x64xf32>
    %90 = arith.mulf %89, %86 : vector<16x64xf32>
    %91 = arith.index_cast %c0_i32_42 : i32 to index
    %c0_45 = arith.constant 0 : index
    %c0_46 = arith.constant 0 : index
    %92 = vector.load %arg19[%91, %c0_45, %c0_46] : memref<8x16x64xf32, #tpu.memory_space<vmem>>, vector<1x16x64xf32>
    %93 = vector.shape_cast %92 : vector<1x16x64xf32> to vector<16x64xf32>
    %94 = arith.addf %90, %93 : vector<16x64xf32>
    %95 = arith.index_cast %c0_i32_42 : i32 to index
    %c0_47 = arith.constant 0 : index
    %c0_48 = arith.constant 0 : index
    %96 = vector.load %arg20[%95, %c0_47, %c0_48] : memref<8x16x1xf32, #tpu.memory_space<vmem>>, vector<1x16x1xf32>
    %97 = vector.shape_cast %96 : vector<1x16x1xf32> to vector<16x1xf32>
    %98 = vector.broadcast %97 : vector<16x1xf32> to vector<16x64xf32>
    %99 = arith.mulf %94, %98 : vector<16x64xf32>
    %cst_49 = arith.constant dense<0.000000e+00> : vector<64xf32>
    %100 = vector.multi_reduction <add>, %99, %cst_49 [0] : vector<16x64xf32> to vector<64xf32>
    %101 = arith.index_cast %c0_i32_42 : i32 to index
    %c0_50 = arith.constant 0 : index
    %102 = vector.load %arg21[%101, %c0_50] : memref<8x64xf32, #tpu.memory_space<vmem>>, vector<1x64xf32>
    %103 = vector.shape_cast %102 : vector<1x64xf32> to vector<64xf32>
    %104 = vector.shape_cast %100 : vector<64xf32> to vector<1x64xf32>
    tpu.vector_store %arg21[%101, %c0_50], %104 {strides = array<i32>} : memref<8x64xf32, #tpu.memory_space<vmem>>, vector<1x64xf32>,
    %c1_i32 = arith.constant 1 : i32
    %105 = arith.index_cast %c1_i32 : i32 to index
    %c0_51 = arith.constant 0 : index
    %c0_52 = arith.constant 0 : index
    %106 = vector.load %arg18[%105, %c0_51, %c0_52] : memref<8x16x64xf32, #tpu.memory_space<vmem>>, vector<1x16x64xf32>
    %107 = vector.shape_cast %106 : vector<1x16x64xf32> to vector<16x64xf32>
    %108 = arith.mulf %107, %94 : vector<16x64xf32>
    %109 = arith.index_cast %c1_i32 : i32 to index
    %c0_53 = arith.constant 0 : index
    %c0_54 = arith.constant 0 : index
    %110 = vector.load %arg19[%109, %c0_53, %c0_54] : memref<8x16x64xf32, #tpu.memory_space<vmem>>, vector<1x16x64xf32>
    %111 = vector.shape_cast %110 : vector<1x16x64xf32> to vector<16x64xf32>
    %112 = arith.addf %108, %111 : vector<16x64xf32>
    %113 = arith.index_cast %c1_i32 : i32 to index
    %c0_55 = arith.constant 0 : index
    %c0_56 = arith.constant 0 : index
    %114 = vector.load %arg20[%113, %c0_55, %c0_56] : memref<8x16x1xf32, #tpu.memory_space<vmem>>, vector<1x16x1xf32>
    %115 = vector.shape_cast %114 : vector<1x16x1xf32> to vector<16x1xf32>
    %116 = vector.broadcast %115 : vector<16x1xf32> to vector<16x64xf32>
    %117 = arith.mulf %112, %116 : vector<16x64xf32>
    %cst_57 = arith.constant dense<0.000000e+00> : vector<64xf32>
    %118 = vector.multi_reduction <add>, %117, %cst_57 [0] : vector<16x64xf32> to vector<64xf32>
    %119 = arith.index_cast %c1_i32 : i32 to index
    %c0_58 = arith.constant 0 : index
    %120 = vector.load %arg21[%119, %c0_58] : memref<8x64xf32, #tpu.memory_space<vmem>>, vector<1x64xf32>
    %121 = vector.shape_cast %120 : vector<1x64xf32> to vector<64xf32>
    %122 = vector.shape_cast %118 : vector<64xf32> to vector<1x64xf32>
    tpu.vector_store %arg21[%119, %c0_58], %122 {strides = array<i32>} : memref<8x64xf32, #tpu.memory_space<vmem>>, vector<1x64xf32>,
    %c2_i32 = arith.constant 2 : i32
    %123 = arith.index_cast %c2_i32 : i32 to index
    %c0_59 = arith.constant 0 : index
    %c0_60 = arith.constant 0 : index
    %124 = vector.load %arg18[%123, %c0_59, %c0_60] : memref<8x16x64xf32, #tpu.memory_space<vmem>>, vector<1x16x64xf32>
    %125 = vector.shape_cast %124 : vector<1x16x64xf32> to vector<16x64xf32>
    %126 = arith.mulf %125, %112 : vector<16x64xf32>
    %127 = arith.index_cast %c2_i32 : i32 to index
    %c0_61 = arith.constant 0 : index
    %c0_62 = arith.constant 0 : index
    %128 = vector.load %arg19[%127, %c0_61, %c0_62] : memref<8x16x64xf32, #tpu.memory_space<vmem>>, vector<1x16x64xf32>
    %129 = vector.shape_cast %128 : vector<1x16x64xf32> to vector<16x64xf32>
    %130 = arith.addf %126, %129 : vector<16x64xf32>
    %131 = arith.index_cast %c2_i32 : i32 to index
    %c0_63 = arith.constant 0 : index
    %c0_64 = arith.constant 0 : index
    %132 = vector.load %arg20[%131, %c0_63, %c0_64] : memref<8x16x1xf32, #tpu.memory_space<vmem>>, vector<1x16x1xf32>
    %133 = vector.shape_cast %132 : vector<1x16x1xf32> to vector<16x1xf32>
    %134 = vector.broadcast %133 : vector<16x1xf32> to vector<16x64xf32>
    %135 = arith.mulf %130, %134 : vector<16x64xf32>
    %cst_65 = arith.constant dense<0.000000e+00> : vector<64xf32>
    %136 = vector.multi_reduction <add>, %135, %cst_65 [0] : vector<16x64xf32> to vector<64xf32>
    %137 = arith.index_cast %c2_i32 : i32 to index
    %c0_66 = arith.constant 0 : index
    %138 = vector.load %arg21[%137, %c0_66] : memref<8x64xf32, #tpu.memory_space<vmem>>, vector<1x64xf32>
    %139 = vector.shape_cast %138 : vector<1x64xf32> to vector<64xf32>
    %140 = vector.shape_cast %136 : vector<64xf32> to vector<1x64xf32>
    tpu.vector_store %arg21[%137, %c0_66], %140 {strides = array<i32>} : memref<8x64xf32, #tpu.memory_space<vmem>>, vector<1x64xf32>,
    %c3_i32 = arith.constant 3 : i32
    %141 = arith.index_cast %c3_i32 : i32 to index
    %c0_67 = arith.constant 0 : index
    %c0_68 = arith.constant 0 : index
    %142 = vector.load %arg18[%141, %c0_67, %c0_68] : memref<8x16x64xf32, #tpu.memory_space<vmem>>, vector<1x16x64xf32>
    %143 = vector.shape_cast %142 : vector<1x16x64xf32> to vector<16x64xf32>
    %144 = arith.mulf %143, %130 : vector<16x64xf32>
    %145 = arith.index_cast %c3_i32 : i32 to index
    %c0_69 = arith.constant 0 : index
    %c0_70 = arith.constant 0 : index
    %146 = vector.load %arg19[%145, %c0_69, %c0_70] : memref<8x16x64xf32, #tpu.memory_space<vmem>>, vector<1x16x64xf32>
    %147 = vector.shape_cast %146 : vector<1x16x64xf32> to vector<16x64xf32>
    %148 = arith.addf %144, %147 : vector<16x64xf32>
    %149 = arith.index_cast %c3_i32 : i32 to index
    %c0_71 = arith.constant 0 : index
    %c0_72 = arith.constant 0 : index
    %150 = vector.load %arg20[%149, %c0_71, %c0_72] : memref<8x16x1xf32, #tpu.memory_space<vmem>>, vector<1x16x1xf32>
    %151 = vector.shape_cast %150 : vector<1x16x1xf32> to vector<16x1xf32>
    %152 = vector.broadcast %151 : vector<16x1xf32> to vector<16x64xf32>
    %153 = arith.mulf %148, %152 : vector<16x64xf32>
    %cst_73 = arith.constant dense<0.000000e+00> : vector<64xf32>
    %154 = vector.multi_reduction <add>, %153, %cst_73 [0] : vector<16x64xf32> to vector<64xf32>
    %155 = arith.index_cast %c3_i32 : i32 to index
    %c0_74 = arith.constant 0 : index
    %156 = vector.load %arg21[%155, %c0_74] : memref<8x64xf32, #tpu.memory_space<vmem>>, vector<1x64xf32>
    %157 = vector.shape_cast %156 : vector<1x64xf32> to vector<64xf32>
    %158 = vector.shape_cast %154 : vector<64xf32> to vector<1x64xf32>
    tpu.vector_store %arg21[%155, %c0_74], %158 {strides = array<i32>} : memref<8x64xf32, #tpu.memory_space<vmem>>, vector<1x64xf32>,
    %c4_i32 = arith.constant 4 : i32
    %159 = arith.index_cast %c4_i32 : i32 to index
    %c0_75 = arith.constant 0 : index
    %c0_76 = arith.constant 0 : index
    %160 = vector.load %arg18[%159, %c0_75, %c0_76] : memref<8x16x64xf32, #tpu.memory_space<vmem>>, vector<1x16x64xf32>
    %161 = vector.shape_cast %160 : vector<1x16x64xf32> to vector<16x64xf32>
    %162 = arith.mulf %161, %148 : vector<16x64xf32>
    %163 = arith.index_cast %c4_i32 : i32 to index
    %c0_77 = arith.constant 0 : index
    %c0_78 = arith.constant 0 : index
    %164 = vector.load %arg19[%163, %c0_77, %c0_78] : memref<8x16x64xf32, #tpu.memory_space<vmem>>, vector<1x16x64xf32>
    %165 = vector.shape_cast %164 : vector<1x16x64xf32> to vector<16x64xf32>
    %166 = arith.addf %162, %165 : vector<16x64xf32>
    %167 = arith.index_cast %c4_i32 : i32 to index
    %c0_79 = arith.constant 0 : index
    %c0_80 = arith.constant 0 : index
    %168 = vector.load %arg20[%167, %c0_79, %c0_80] : memref<8x16x1xf32, #tpu.memory_space<vmem>>, vector<1x16x1xf32>
    %169 = vector.shape_cast %168 : vector<1x16x1xf32> to vector<16x1xf32>
    %170 = vector.broadcast %169 : vector<16x1xf32> to vector<16x64xf32>
    %171 = arith.mulf %166, %170 : vector<16x64xf32>
    %cst_81 = arith.constant dense<0.000000e+00> : vector<64xf32>
    %172 = vector.multi_reduction <add>, %171, %cst_81 [0] : vector<16x64xf32> to vector<64xf32>
    %173 = arith.index_cast %c4_i32 : i32 to index
    %c0_82 = arith.constant 0 : index
    %174 = vector.load %arg21[%173, %c0_82] : memref<8x64xf32, #tpu.memory_space<vmem>>, vector<1x64xf32>
    %175 = vector.shape_cast %174 : vector<1x64xf32> to vector<64xf32>
    %176 = vector.shape_cast %172 : vector<64xf32> to vector<1x64xf32>
    tpu.vector_store %arg21[%173, %c0_82], %176 {strides = array<i32>} : memref<8x64xf32, #tpu.memory_space<vmem>>, vector<1x64xf32>,
    %c5_i32 = arith.constant 5 : i32
    %177 = arith.index_cast %c5_i32 : i32 to index
    %c0_83 = arith.constant 0 : index
    %c0_84 = arith.constant 0 : index
    %178 = vector.load %arg18[%177, %c0_83, %c0_84] : memref<8x16x64xf32, #tpu.memory_space<vmem>>, vector<1x16x64xf32>
    %179 = vector.shape_cast %178 : vector<1x16x64xf32> to vector<16x64xf32>
    %180 = arith.mulf %179, %166 : vector<16x64xf32>
    %181 = arith.index_cast %c5_i32 : i32 to index
    %c0_85 = arith.constant 0 : index
    %c0_86 = arith.constant 0 : index
    %182 = vector.load %arg19[%181, %c0_85, %c0_86] : memref<8x16x64xf32, #tpu.memory_space<vmem>>, vector<1x16x64xf32>
    %183 = vector.shape_cast %182 : vector<1x16x64xf32> to vector<16x64xf32>
    %184 = arith.addf %180, %183 : vector<16x64xf32>
    %185 = arith.index_cast %c5_i32 : i32 to index
    %c0_87 = arith.constant 0 : index
    %c0_88 = arith.constant 0 : index
    %186 = vector.load %arg20[%185, %c0_87, %c0_88] : memref<8x16x1xf32, #tpu.memory_space<vmem>>, vector<1x16x1xf32>
    %187 = vector.shape_cast %186 : vector<1x16x1xf32> to vector<16x1xf32>
    %188 = vector.broadcast %187 : vector<16x1xf32> to vector<16x64xf32>
    %189 = arith.mulf %184, %188 : vector<16x64xf32>
    %cst_89 = arith.constant dense<0.000000e+00> : vector<64xf32>
    %190 = vector.multi_reduction <add>, %189, %cst_89 [0] : vector<16x64xf32> to vector<64xf32>
    %191 = arith.index_cast %c5_i32 : i32 to index
    %c0_90 = arith.constant 0 : index
    %192 = vector.load %arg21[%191, %c0_90] : memref<8x64xf32, #tpu.memory_space<vmem>>, vector<1x64xf32>
    %193 = vector.shape_cast %192 : vector<1x64xf32> to vector<64xf32>
    %194 = vector.shape_cast %190 : vector<64xf32> to vector<1x64xf32>
    tpu.vector_store %arg21[%191, %c0_90], %194 {strides = array<i32>} : memref<8x64xf32, #tpu.memory_space<vmem>>, vector<1x64xf32>,
    %c6_i32 = arith.constant 6 : i32
    %195 = arith.index_cast %c6_i32 : i32 to index
    %c0_91 = arith.constant 0 : index
    %c0_92 = arith.constant 0 : index
    %196 = vector.load %arg18[%195, %c0_91, %c0_92] : memref<8x16x64xf32, #tpu.memory_space<vmem>>, vector<1x16x64xf32>
    %197 = vector.shape_cast %196 : vector<1x16x64xf32> to vector<16x64xf32>
    %198 = arith.mulf %197, %184 : vector<16x64xf32>
    %199 = arith.index_cast %c6_i32 : i32 to index
    %c0_93 = arith.constant 0 : index
    %c0_94 = arith.constant 0 : index
    %200 = vector.load %arg19[%199, %c0_93, %c0_94] : memref<8x16x64xf32, #tpu.memory_space<vmem>>, vector<1x16x64xf32>
    %201 = vector.shape_cast %200 : vector<1x16x64xf32> to vector<16x64xf32>
    %202 = arith.addf %198, %201 : vector<16x64xf32>
    %203 = arith.index_cast %c6_i32 : i32 to index
    %c0_95 = arith.constant 0 : index
    %c0_96 = arith.constant 0 : index
    %204 = vector.load %arg20[%203, %c0_95, %c0_96] : memref<8x16x1xf32, #tpu.memory_space<vmem>>, vector<1x16x1xf32>
    %205 = vector.shape_cast %204 : vector<1x16x1xf32> to vector<16x1xf32>
    %206 = vector.broadcast %205 : vector<16x1xf32> to vector<16x64xf32>
    %207 = arith.mulf %202, %206 : vector<16x64xf32>
    %cst_97 = arith.constant dense<0.000000e+00> : vector<64xf32>
    %208 = vector.multi_reduction <add>, %207, %cst_97 [0] : vector<16x64xf32> to vector<64xf32>
    %209 = arith.index_cast %c6_i32 : i32 to index
    %c0_98 = arith.constant 0 : index
    %210 = vector.load %arg21[%209, %c0_98] : memref<8x64xf32, #tpu.memory_space<vmem>>, vector<1x64xf32>
    %211 = vector.shape_cast %210 : vector<1x64xf32> to vector<64xf32>
    %212 = vector.shape_cast %208 : vector<64xf32> to vector<1x64xf32>
    tpu.vector_store %arg21[%209, %c0_98], %212 {strides = array<i32>} : memref<8x64xf32, #tpu.memory_space<vmem>>, vector<1x64xf32>,
    %c7_i32 = arith.constant 7 : i32
    %213 = arith.index_cast %c7_i32 : i32 to index
    %c0_99 = arith.constant 0 : index
    %c0_100 = arith.constant 0 : index
    %214 = vector.load %arg18[%213, %c0_99, %c0_100] : memref<8x16x64xf32, #tpu.memory_space<vmem>>, vector<1x16x64xf32>
    %215 = vector.shape_cast %214 : vector<1x16x64xf32> to vector<16x64xf32>
    %216 = arith.mulf %215, %202 : vector<16x64xf32>
    %217 = arith.index_cast %c7_i32 : i32 to index
    %c0_101 = arith.constant 0 : index
    %c0_102 = arith.constant 0 : index
    %218 = vector.load %arg19[%217, %c0_101, %c0_102] : memref<8x16x64xf32, #tpu.memory_space<vmem>>, vector<1x16x64xf32>
    %219 = vector.shape_cast %218 : vector<1x16x64xf32> to vector<16x64xf32>
    %220 = arith.addf %216, %219 : vector<16x64xf32>
    %221 = arith.index_cast %c7_i32 : i32 to index
    %c0_103 = arith.constant 0 : index
    %c0_104 = arith.constant 0 : index
    %222 = vector.load %arg20[%221, %c0_103, %c0_104] : memref<8x16x1xf32, #tpu.memory_space<vmem>>, vector<1x16x1xf32>
    %223 = vector.shape_cast %222 : vector<1x16x1xf32> to vector<16x1xf32>
    %224 = vector.broadcast %223 : vector<16x1xf32> to vector<16x64xf32>
    %225 = arith.mulf %220, %224 : vector<16x64xf32>
    %cst_105 = arith.constant dense<0.000000e+00> : vector<64xf32>
    %226 = vector.multi_reduction <add>, %225, %cst_105 [0] : vector<16x64xf32> to vector<64xf32>
    %227 = arith.index_cast %c7_i32 : i32 to index
    %c0_106 = arith.constant 0 : index
    %228 = vector.load %arg21[%227, %c0_106] : memref<8x64xf32, #tpu.memory_space<vmem>>, vector<1x64xf32>
    %229 = vector.shape_cast %228 : vector<1x64xf32> to vector<64xf32>
    %230 = vector.shape_cast %226 : vector<64xf32> to vector<1x64xf32>
    tpu.vector_store %arg21[%227, %c0_106], %230 {strides = array<i32>} : memref<8x64xf32, #tpu.memory_space<vmem>>, vector<1x64xf32>,
    %c8_i32 = arith.constant 8 : i32
    %c0_107 = arith.constant 0 : index
    %c0_108 = arith.constant 0 : index
    %231 = vector.load %arg16[%c0_107, %c0_108] : memref<16x64xf32, #tpu.memory_space<vmem>>, vector<16x64xf32>
    tpu.vector_store %arg16[%c0_107, %c0_108], %220 {strides = array<i32>} : memref<16x64xf32, #tpu.memory_space<vmem>>, vector<16x64xf32>,
    %c0_109 = arith.constant 0 : index
    %c0_110 = arith.constant 0 : index
    %232 = vector.load %arg21[%c0_109, %c0_110] : memref<8x64xf32, #tpu.memory_space<vmem>>, vector<8x64xf32>
    %c0_111 = arith.constant 0 : index
    %c0_112 = arith.constant 0 : index
    %233 = vector.load %arg11[%c0_111, %c0_112] : memref<1x64xf32, #tpu.memory_space<vmem>>, vector<1x64xf32>
    %234 = vector.broadcast %233 : vector<1x64xf32> to vector<8x64xf32>
    %235 = arith.mulf %39, %234 : vector<8x64xf32>
    %236 = arith.addf %232, %235 : vector<8x64xf32>
    %237 = arith.negf %8 : vector<8x64xf32>
    %238 = math.exp %237 : vector<8x64xf32>
    %cst_113 = arith.constant 1.000000e+00 : f32
    %239 = vector.broadcast %cst_113 : f32 to vector<8x64xf32>
    %240 = arith.addf %239, %238 : vector<8x64xf32>
    %241 = arith.divf %239, %240 : vector<8x64xf32>
    %242 = arith.mulf %8, %241 : vector<8x64xf32>
    %243 = arith.mulf %236, %242 : vector<8x64xf32>
    %c0_114 = arith.constant 0 : index
    %c0_115 = arith.constant 0 : index
    %244 = vector.load %arg12[%c0_114, %c0_115] : memref<64x32xf32, #tpu.memory_space<vmem>>, vector<64x32xf32>
    %cst_116 = arith.constant dense<0.000000e+00> : vector<8x32xf32>
    %245 = tpu.matmul %243, %244, %cst_116 {dimension_numbers = #tpu.dot_dimension_numbers<[1], [0], [0], [1], [0, 0, 1, 1], [], []>} : vector<8x64xf32>, vector<64x32xf32>, vector<8x32xf32> -> vector<8x32xf32>
    %cst_117 = arith.constant dense<0.000000e+00> : vector<8xf32>
    %246 = vector.multi_reduction <add>, %245, %cst_117 [1] : vector<8x32xf32> to vector<8xf32>
    %247 = vector.shape_cast %246 : vector<8xf32> to vector<8x1xf32>
    %cst_118 = arith.constant 3.200000e+01 : f32
    %248 = vector.broadcast %cst_118 : f32 to vector<8x1xf32>
    %249 = arith.divf %247, %248 : vector<8x1xf32>
    %250 = vector.broadcast %249 : vector<8x1xf32> to vector<8x32xf32>
    %251 = arith.subf %245, %250 : vector<8x32xf32>
    %252 = arith.mulf %251, %251 : vector<8x32xf32>
    %cst_119 = arith.constant dense<0.000000e+00> : vector<8xf32>
    %253 = vector.multi_reduction <add>, %252, %cst_119 [1] : vector<8x32xf32> to vector<8xf32>
    %254 = vector.shape_cast %253 : vector<8xf32> to vector<8x1xf32>
    %cst_120 = arith.constant 3.200000e+01 : f32
    %255 = vector.broadcast %cst_120 : f32 to vector<8x1xf32>
    %256 = arith.divf %254, %255 : vector<8x1xf32>
    %257 = vector.broadcast %249 : vector<8x1xf32> to vector<8x32xf32>
    %258 = arith.subf %245, %257 : vector<8x32xf32>
    %cst_121 = arith.constant 9.99999997E-7 : f32
    %259 = vector.broadcast %cst_121 : f32 to vector<8x1xf32>
    %260 = arith.addf %256, %259 : vector<8x1xf32>
    %261 = math.rsqrt %260 : vector<8x1xf32>
    %262 = vector.broadcast %261 : vector<8x1xf32> to vector<8x32xf32>
    %263 = arith.mulf %258, %262 : vector<8x32xf32>
    %c0_122 = arith.constant 0 : index
    %c0_123 = arith.constant 0 : index
    %264 = vector.load %arg13[%c0_122, %c0_123] : memref<1x32xf32, #tpu.memory_space<vmem>>, vector<1x32xf32>
    %265 = vector.broadcast %264 : vector<1x32xf32> to vector<8x32xf32>
    %266 = arith.mulf %263, %265 : vector<8x32xf32>
    %c0_124 = arith.constant 0 : index
    %c0_125 = arith.constant 0 : index
    %267 = vector.load %arg14[%c0_124, %c0_125] : memref<1x32xf32, #tpu.memory_space<vmem>>, vector<1x32xf32>
    %268 = vector.broadcast %267 : vector<1x32xf32> to vector<8x32xf32>
    %269 = arith.addf %266, %268 : vector<8x32xf32>
    %270 = arith.addf %4, %269 : vector<8x32xf32>
    %c0_126 = arith.constant 0 : index
    %c0_127 = arith.constant 0 : index
    %c0_128 = arith.constant 0 : index
    %271 = vector.load %arg15[%c0_126, %c0_127, %c0_128] : memref<1x8x32xf32, #tpu.memory_space<vmem>>, vector<1x8x32xf32>
    %272 = vector.shape_cast %271 : vector<1x8x32xf32> to vector<8x32xf32>
    %273 = vector.shape_cast %270 : vector<8x32xf32> to vector<1x8x32xf32>
    tpu.vector_store %arg15[%c0_126, %c0_127, %c0_128], %273 {strides = array<i32>} : memref<1x8x32xf32, #tpu.memory_space<vmem>>, vector<1x8x32xf32>,
    return
  }
  func.func @transform_0(%arg0: i32, %arg1: i32) -> (i32, i32, i32) {
    %c0_i32 = arith.constant 0 : i32
    %c0_i32_0 = arith.constant 0 : i32
    return %arg0, %arg1, %c0_i32 : i32, i32, i32
  }
  func.func @transform_1(%arg0: i32, %arg1: i32) -> (i32, i32) {
    %c0_i32 = arith.constant 0 : i32
    %c0_i32_0 = arith.constant 0 : i32
    %c0_i32_1 = arith.constant 0 : i32
    return %c0_i32, %c0_i32_0 : i32, i32
  }
  func.func @transform_2(%arg0: i32, %arg1: i32) -> (i32, i32) {
    %c0_i32 = arith.constant 0 : i32
    %c0_i32_0 = arith.constant 0 : i32
    %c0_i32_1 = arith.constant 0 : i32
    return %c0_i32, %c0_i32_0 : i32, i32
  }
  func.func @transform_3(%arg0: i32, %arg1: i32) -> (i32, i32) {
    %c0_i32 = arith.constant 0 : i32
    %c0_i32_0 = arith.constant 0 : i32
    %c0_i32_1 = arith.constant 0 : i32
    return %c0_i32, %c0_i32_0 : i32, i32
  }
  func.func @transform_4(%arg0: i32, %arg1: i32) -> (i32, i32) {
    %c0_i32 = arith.constant 0 : i32
    %c0_i32_0 = arith.constant 0 : i32
    %c0_i32_1 = arith.constant 0 : i32
    return %c0_i32, %c0_i32_0 : i32, i32
  }
  func.func @transform_5(%arg0: i32, %arg1: i32) -> (i32, i32) {
    %c0_i32 = arith.constant 0 : i32
    %c0_i32_0 = arith.constant 0 : i32
    %c0_i32_1 = arith.constant 0 : i32
    return %c0_i32, %c0_i32_0 : i32, i32
  }
  func.func @transform_6(%arg0: i32, %arg1: i32) -> (i32, i32) {
    %c0_i32 = arith.constant 0 : i32
    %c0_i32_0 = arith.constant 0 : i32
    %c0_i32_1 = arith.constant 0 : i32
    return %c0_i32, %c0_i32_0 : i32, i32
  }
  func.func @transform_7(%arg0: i32, %arg1: i32) -> (i32, i32) {
    %c0_i32 = arith.constant 0 : i32
    %c0_i32_0 = arith.constant 0 : i32
    %c0_i32_1 = arith.constant 0 : i32
    return %c0_i32, %c0_i32_0 : i32, i32
  }
  func.func @transform_8(%arg0: i32, %arg1: i32) -> (i32, i32) {
    %c0_i32 = arith.constant 0 : i32
    %c0_i32_0 = arith.constant 0 : i32
    %c0_i32_1 = arith.constant 0 : i32
    return %c0_i32, %c0_i32_0 : i32, i32
  }
  func.func @transform_9(%arg0: i32, %arg1: i32) -> (i32, i32) {
    %c0_i32 = arith.constant 0 : i32
    %c0_i32_0 = arith.constant 0 : i32
    %c0_i32_1 = arith.constant 0 : i32
    return %c0_i32, %c0_i32_0 : i32, i32
  }
  func.func @transform_10(%arg0: i32, %arg1: i32) -> (i32, i32) {
    %c0_i32 = arith.constant 0 : i32
    %c0_i32_0 = arith.constant 0 : i32
    %c0_i32_1 = arith.constant 0 : i32
    return %c0_i32, %c0_i32_0 : i32, i32
  }
  func.func @transform_11(%arg0: i32, %arg1: i32) -> (i32, i32) {
    %c0_i32 = arith.constant 0 : i32
    %c0_i32_0 = arith.constant 0 : i32
    %c0_i32_1 = arith.constant 0 : i32
    return %c0_i32, %c0_i32_0 : i32, i32
  }
  func.func @transform_12(%arg0: i32, %arg1: i32) -> (i32, i32) {
    %c0_i32 = arith.constant 0 : i32
    %c0_i32_0 = arith.constant 0 : i32
    %c0_i32_1 = arith.constant 0 : i32
    return %c0_i32, %c0_i32_0 : i32, i32
  }
  func.func @transform_13(%arg0: i32, %arg1: i32) -> (i32, i32, i32) {
    %c0_i32 = arith.constant 0 : i32
    %c0_i32_0 = arith.constant 0 : i32
    return %arg0, %arg1, %c0_i32 : i32, i32, i32
  }
}

module attributes {stable_mosaic.version = 11 : i64} {
  func.func @mamba_encoder_layer_kernel(%arg0: i32, %arg1: i32, %arg2: memref<1x8x32xf32, #tpu.memory_space<vmem>>, %arg3: memref<32x64xf32, #tpu.memory_space<vmem>>, %arg4: memref<32x64xf32, #tpu.memory_space<vmem>>, %arg5: memref<4x64xf32, #tpu.memory_space<vmem>>, %arg6: memref<1x64xf32, #tpu.memory_space<vmem>>, %arg7: memref<64x128xf32, #tpu.memory_space<vmem>>, %arg8: memref<2x64xf32, #tpu.memory_space<vmem>>, %arg9: memref<1x64xf32, #tpu.memory_space<vmem>>, %arg10: memref<16x64xf32, #tpu.memory_space<vmem>>, %arg11: memref<1x64xf32, #tpu.memory_space<vmem>>, %arg12: memref<64x32xf32, #tpu.memory_space<vmem>>, %arg13: memref<1x32xf32, #tpu.memory_space<vmem>>, %arg14: memref<1x32xf32, #tpu.memory_space<vmem>>, %arg15: memref<1x8x32xf32, #tpu.memory_space<vmem>>, %arg16: memref<16x64xf32, #tpu.memory_space<vmem>>, %arg17: memref<16x64xf32, #tpu.memory_space<vmem>>, %arg18: memref<8x16x64xf32, #tpu.memory_space<vmem>>, %arg19: memref<8x16x64xf32, #tpu.memory_space<vmem>>, %arg20: memref<8x16x1xf32, #tpu.memory_space<vmem>>, %arg21: memref<8x64xf32, #tpu.memory_space<vmem>>) attributes {dimension_semantics = [#tpu.dimension_semantics<parallel>, #tpu.dimension_semantics<arbitrary>], iteration_bounds = array<i64: 2, 2>, scalar_prefetch = 0 : i64, scratch_operands = 6 : i64, tpu.core_type = #tpu.core_type<tc>, window_params = [{transform_indices = @transform_0, window_bounds = array<i64: 1, 8, 32>}, {pipeline_mode = #tpu.pipeline_mode<synchronous>, transform_indices = @transform_1, window_bounds = array<i64: 32, 64>}, {pipeline_mode = #tpu.pipeline_mode<synchronous>, transform_indices = @transform_2, window_bounds = array<i64: 32, 64>}, {pipeline_mode = #tpu.pipeline_mode<synchronous>, transform_indices = @transform_3, window_bounds = array<i64: 4, 64>}, {pipeline_mode = #tpu.pipeline_mode<synchronous>, transform_indices = @transform_4, window_bounds = array<i64: 1, 64>}, {pipeline_mode = #tpu.pipeline_mode<synchronous>, transform_indices = @transform_5, window_bounds = array<i64: 64, 128>}, {pipeline_mode = #tpu.pipeline_mode<synchronous>, transform_indices = @transform_6, window_bounds = array<i64: 2, 64>}, {pipeline_mode = #tpu.pipeline_mode<synchronous>, transform_indices = @transform_7, window_bounds = array<i64: 1, 64>}, {pipeline_mode = #tpu.pipeline_mode<synchronous>, transform_indices = @transform_8, window_bounds = array<i64: 16, 64>}, {pipeline_mode = #tpu.pipeline_mode<synchronous>, transform_indices = @transform_9, window_bounds = array<i64: 1, 64>}, {pipeline_mode = #tpu.pipeline_mode<synchronous>, transform_indices = @transform_10, window_bounds = array<i64: 64, 32>}, {pipeline_mode = #tpu.pipeline_mode<synchronous>, transform_indices = @transform_11, window_bounds = array<i64: 1, 32>}, {pipeline_mode = #tpu.pipeline_mode<synchronous>, transform_indices = @transform_12, window_bounds = array<i64: 1, 32>}, {transform_indices = @transform_13, window_bounds = array<i64: 1, 8, 32>}]} {
    %c0_i32 = arith.constant 0 : i32
    %0 = arith.cmpi eq, %arg1, %c0_i32 : i32
    %1 = arith.extui %0 : i1 to i32
    %c0_i32_0 = arith.constant 0 : i32
    %2 = arith.cmpi ne, %1, %c0_i32_0 : i32
    scf.if %2 {
      %cst_129 = arith.constant 0.000000e+00 : f32
      %274 = vector.broadcast %cst_129 : f32 to vector<16x64xf32>
      %c0_130 = arith.constant 0 : index
      %c0_131 = arith.constant 0 : index
      %275 = vector.load %arg16[%c0_130, %c0_131] : memref<16x64xf32, #tpu.memory_space<vmem>>, vector<16x64xf32>
      tpu.vector_store %arg16[%c0_130, %c0_131], %274 {strides = array<i32>} : memref<16x64xf32, #tpu.memory_space<vmem>>, vector<16x64xf32>,
      %cst_132 = arith.constant 0.000000e+00 : f32
      %276 = vector.broadcast %cst_132 : f32 to vector<8x64xf32>
      %c0_133 = arith.constant 0 : index
      %c0_134 = arith.constant 0 : index
      %277 = vector.load %arg17[%c0_133, %c0_134] : memref<16x64xf32, #tpu.memory_space<vmem>>, vector<8x64xf32>
      tpu.vector_store %arg17[%c0_133, %c0_134], %276 {strides = array<i32>} : memref<16x64xf32, #tpu.memory_space<vmem>>, vector<8x64xf32>,
    } else {
    }
    %c0 = arith.constant 0 : index
    %c0_1 = arith.constant 0 : index
    %c0_2 = arith.constant 0 : index
    %3 = vector.load %arg2[%c0, %c0_1, %c0_2] : memref<1x8x32xf32, #tpu.memory_space<vmem>>, vector<1x8x32xf32>
    %4 = vector.shape_cast %3 : vector<1x8x32xf32> to vector<8x32xf32>
    %c0_3 = arith.constant 0 : index
    %c0_4 = arith.constant 0 : index
    %5 = vector.load %arg3[%c0_3, %c0_4] : memref<32x64xf32, #tpu.memory_space<vmem>>, vector<32x64xf32>
    %cst = arith.constant dense<0.000000e+00> : vector<8x64xf32>
    %6 = tpu.matmul %4, %5, %cst {dimension_numbers = #tpu.dot_dimension_numbers<[1], [0], [0], [1], [0, 0, 1, 1], [], []>} : vector<8x32xf32>, vector<32x64xf32>, vector<8x64xf32> -> vector<8x64xf32>
    %c0_5 = arith.constant 0 : index
    %c0_6 = arith.constant 0 : index
    %7 = vector.load %arg4[%c0_5, %c0_6] : memref<32x64xf32, #tpu.memory_space<vmem>>, vector<32x64xf32>
    %cst_7 = arith.constant dense<0.000000e+00> : vector<8x64xf32>
    %8 = tpu.matmul %4, %7, %cst_7 {dimension_numbers = #tpu.dot_dimension_numbers<[1], [0], [0], [1], [0, 0, 1, 1], [], []>} : vector<8x32xf32>, vector<32x64xf32>, vector<8x64xf32> -> vector<8x64xf32>
    %c8 = arith.constant 8 : index
    %c0_8 = arith.constant 0 : index
    %9 = vector.load %arg17[%c8, %c0_8] : memref<16x64xf32, #tpu.memory_space<vmem>>, vector<8x64xf32>
    tpu.vector_store %arg17[%c8, %c0_8], %6 {strides = array<i32>} : memref<16x64xf32, #tpu.memory_space<vmem>>, vector<8x64xf32>,
    %c0_9 = arith.constant 0 : index
    %c0_10 = arith.constant 0 : index
    %10 = vector.load %arg5[%c0_9, %c0_10] : memref<4x64xf32, #tpu.memory_space<vmem>>, vector<4x64xf32>
    %11 = vector.extract_strided_slice %10 {offsets = [3, 0], sizes = [1, 64], strides = [1, 1]} : vector<4x64xf32> to vector<1x64xf32>
    %12 = vector.broadcast %11 : vector<1x64xf32> to vector<8x64xf32>
    %13 = arith.mulf %6, %12 : vector<8x64xf32>
    %c5 = arith.constant 5 : index
    %c0_11 = arith.constant 0 : index
    %14 = vector.load %arg17[%c5, %c0_11] : memref<16x64xf32, #tpu.memory_space<vmem>>, vector<8x64xf32>
    %15 = vector.extract_strided_slice %10 {offsets = [0, 0], sizes = [1, 64], strides = [1, 1]} : vector<4x64xf32> to vector<1x64xf32>
    %16 = vector.broadcast %15 : vector<1x64xf32> to vector<8x64xf32>
    %17 = arith.mulf %14, %16 : vector<8x64xf32>
    %18 = arith.addf %13, %17 : vector<8x64xf32>
    %c6 = arith.constant 6 : index
    %c0_12 = arith.constant 0 : index
    %19 = vector.load %arg17[%c6, %c0_12] : memref<16x64xf32, #tpu.memory_space<vmem>>, vector<8x64xf32>
    %20 = vector.extract_strided_slice %10 {offsets = [1, 0], sizes = [1, 64], strides = [1, 1]} : vector<4x64xf32> to vector<1x64xf32>
    %21 = vector.broadcast %20 : vector<1x64xf32> to vector<8x64xf32>
    %22 = arith.mulf %19, %21 : vector<8x64xf32>
    %23 = arith.addf %18, %22 : vector<8x64xf32>
    %c7 = arith.constant 7 : index
    %c0_13 = arith.constant 0 : index
    %24 = vector.load %arg17[%c7, %c0_13] : memref<16x64xf32, #tpu.memory_space<vmem>>, vector<8x64xf32>
    %25 = vector.extract_strided_slice %10 {offsets = [2, 0], sizes = [1, 64], strides = [1, 1]} : vector<4x64xf32> to vector<1x64xf32>
    %26 = vector.broadcast %25 : vector<1x64xf32> to vector<8x64xf32>
    %27 = arith.mulf %24, %26 : vector<8x64xf32>
    %28 = arith.addf %23, %27 : vector<8x64xf32>
    %29 = vector.extract_strided_slice %6 {offsets = [5, 0], sizes = [3, 64], strides = [1, 1]} : vector<8x64xf32> to vector<3x64xf32>
    %c5_14 = arith.constant 5 : index
    %c0_15 = arith.constant 0 : index
    %30 = vector.load %arg17[%c5_14, %c0_15] : memref<16x64xf32, #tpu.memory_space<vmem>>, vector<3x64xf32>
    tpu.vector_store %arg17[%c5_14, %c0_15], %29 {strides = array<i32>} : memref<16x64xf32, #tpu.memory_space<vmem>>, vector<3x64xf32>,
    %c0_16 = arith.constant 0 : index
    %c0_17 = arith.constant 0 : index
    %31 = vector.load %arg6[%c0_16, %c0_17] : memref<1x64xf32, #tpu.memory_space<vmem>>, vector<1x64xf32>
    %32 = vector.broadcast %31 : vector<1x64xf32> to vector<8x64xf32>
    %33 = arith.addf %28, %32 : vector<8x64xf32>
    %34 = arith.negf %33 : vector<8x64xf32>
    %35 = math.exp %34 : vector<8x64xf32>
    %cst_18 = arith.constant 1.000000e+00 : f32
    %36 = vector.broadcast %cst_18 : f32 to vector<8x64xf32>
    %37 = arith.addf %36, %35 : vector<8x64xf32>
    %38 = arith.divf %36, %37 : vector<8x64xf32>
    %39 = arith.mulf %33, %38 : vector<8x64xf32>
    %c0_19 = arith.constant 0 : index
    %c0_20 = arith.constant 0 : index
    %40 = vector.load %arg7[%c0_19, %c0_20] : memref<64x128xf32, #tpu.memory_space<vmem>>, vector<64x128xf32>
    %cst_21 = arith.constant dense<0.000000e+00> : vector<8x128xf32>
    %41 = tpu.matmul %39, %40, %cst_21 {dimension_numbers = #tpu.dot_dimension_numbers<[1], [0], [0], [1], [0, 0, 1, 1], [], []>} : vector<8x64xf32>, vector<64x128xf32>, vector<8x128xf32> -> vector<8x128xf32>
    %42 = vector.extract_strided_slice %41 {offsets = [0, 0], sizes = [8, 2], strides = [1, 1]} : vector<8x128xf32> to vector<8x2xf32>
    %43 = vector.extract_strided_slice %41 {offsets = [0, 2], sizes = [8, 16], strides = [1, 1]} : vector<8x128xf32> to vector<8x16xf32>
    %44 = vector.extract_strided_slice %41 {offsets = [0, 18], sizes = [8, 16], strides = [1, 1]} : vector<8x128xf32> to vector<8x16xf32>
    %c0_22 = arith.constant 0 : index
    %c0_23 = arith.constant 0 : index
    %45 = vector.load %arg8[%c0_22, %c0_23] : memref<2x64xf32, #tpu.memory_space<vmem>>, vector<2x64xf32>
    %cst_24 = arith.constant 0.000000e+00 : f32
    %46 = vector.broadcast %cst_24 : f32 to vector<8x64xf32>
    %47 = vector.extract_strided_slice %42 {offsets = [0, 0], sizes = [8, 1], strides = [1, 1]} : vector<8x2xf32> to vector<8x1xf32>
    %48 = vector.extract_strided_slice %45 {offsets = [0, 0], sizes = [1, 64], strides = [1, 1]} : vector<2x64xf32> to vector<1x64xf32>
    %49 = vector.broadcast %47 : vector<8x1xf32> to vector<8x64xf32>
    %50 = vector.broadcast %48 : vector<1x64xf32> to vector<8x64xf32>
    %51 = arith.mulf %49, %50 : vector<8x64xf32>
    %52 = arith.addf %46, %51 : vector<8x64xf32>
    %53 = vector.extract_strided_slice %42 {offsets = [0, 1], sizes = [8, 1], strides = [1, 1]} : vector<8x2xf32> to vector<8x1xf32>
    %54 = vector.extract_strided_slice %45 {offsets = [1, 0], sizes = [1, 64], strides = [1, 1]} : vector<2x64xf32> to vector<1x64xf32>
    %55 = vector.broadcast %53 : vector<8x1xf32> to vector<8x64xf32>
    %56 = vector.broadcast %54 : vector<1x64xf32> to vector<8x64xf32>
    %57 = arith.mulf %55, %56 : vector<8x64xf32>
    %58 = arith.addf %52, %57 : vector<8x64xf32>
    %c0_25 = arith.constant 0 : index
    %c0_26 = arith.constant 0 : index
    %59 = vector.load %arg9[%c0_25, %c0_26] : memref<1x64xf32, #tpu.memory_space<vmem>>, vector<1x64xf32>
    %60 = vector.broadcast %59 : vector<1x64xf32> to vector<8x64xf32>
    %61 = arith.addf %58, %60 : vector<8x64xf32>
    %cst_27 = arith.constant 2.000000e+01 : f32
    %62 = vector.broadcast %cst_27 : f32 to vector<8x64xf32>
    %63 = arith.cmpf ogt, %61, %62 : vector<8x64xf32>
    %cst_28 = arith.constant 2.000000e+01 : f32
    %64 = vector.broadcast %cst_28 : f32 to vector<8x64xf32>
    %65 = arith.minimumf %61, %64 : vector<8x64xf32>
    %66 = math.exp %65 : vector<8x64xf32>
    %67 = math.log1p %66 : vector<8x64xf32>
    %68 = arith.select %63, %61, %67 : vector<8x64xi1>, vector<8x64xf32>
    %c0_29 = arith.constant 0 : index
    %c0_30 = arith.constant 0 : index
    %69 = vector.load %arg10[%c0_29, %c0_30] : memref<16x64xf32, #tpu.memory_space<vmem>>, vector<16x64xf32>
    %70 = vector.shape_cast %68 : vector<8x64xf32> to vector<8x1x64xf32>
    %71 = vector.shape_cast %69 : vector<16x64xf32> to vector<1x16x64xf32>
    %72 = vector.broadcast %70 : vector<8x1x64xf32> to vector<8x16x64xf32>
    %73 = vector.broadcast %71 : vector<1x16x64xf32> to vector<8x16x64xf32>
    %74 = arith.mulf %72, %73 : vector<8x16x64xf32>
    %75 = math.exp %74 : vector<8x16x64xf32>
    %c0_31 = arith.constant 0 : index
    %c0_32 = arith.constant 0 : index
    %c0_33 = arith.constant 0 : index
    %76 = vector.load %arg18[%c0_31, %c0_32, %c0_33] : memref<8x16x64xf32, #tpu.memory_space<vmem>>, vector<8x16x64xf32>
    tpu.vector_store %arg18[%c0_31, %c0_32, %c0_33], %75 {strides = array<i32>} : memref<8x16x64xf32, #tpu.memory_space<vmem>>, vector<8x16x64xf32>,
    %77 = arith.mulf %68, %39 : vector<8x64xf32>
    %78 = vector.shape_cast %77 : vector<8x64xf32> to vector<8x1x64xf32>
    %79 = vector.shape_cast %43 : vector<8x16xf32> to vector<8x16x1xf32>
    %80 = vector.broadcast %78 : vector<8x1x64xf32> to vector<8x16x64xf32>
    %81 = vector.broadcast %79 : vector<8x16x1xf32> to vector<8x16x64xf32>
    %82 = arith.mulf %80, %81 : vector<8x16x64xf32>
    %c0_34 = arith.constant 0 : index
    %c0_35 = arith.constant 0 : index
    %c0_36 = arith.constant 0 : index
    %83 = vector.load %arg19[%c0_34, %c0_35, %c0_36] : memref<8x16x64xf32, #tpu.memory_space<vmem>>, vector<8x16x64xf32>
    tpu.vector_store %arg19[%c0_34, %c0_35, %c0_36], %82 {strides = array<i32>} : memref<8x16x64xf32, #tpu.memory_space<vmem>>, vector<8x16x64xf32>,
    %84 = vector.shape_cast %44 : vector<8x16xf32> to vector<8x16x1xf32>
    %c0_37 = arith.constant 0 : index
    %c0_38 = arith.constant 0 : index
    %c0_39 = arith.constant 0 : index
    %85 = vector.load %arg20[%c0_37, %c0_38, %c0_39] : memref<8x16x1xf32, #tpu.memory_space<vmem>>, vector<8x16x1xf32>
    tpu.vector_store %arg20[%c0_37, %c0_38, %c0_39], %84 {strides = array<i32>} : memref<8x16x1xf32, #tpu.memory_space<vmem>>, vector<8x16x1xf32>,
    %c0_40 = arith.constant 0 : index
    %c0_41 = arith.constant 0 : index
    %86 = vector.load %arg16[%c0_40, %c0_41] : memref<16x64xf32, #tpu.memory_space<vmem>>, vector<16x64xf32>
    %c0_i32_42 = arith.constant 0 : i32
    %87 = arith.index_cast %c0_i32_42 : i32 to index
    %c0_43 = arith.constant 0 : index
    %c0_44 = arith.constant 0 : index
    %88 = vector.load %arg18[%87, %c0_43, %c0_44] : memref<8x16x64xf32, #tpu.memory_space<vmem>>, vector<1x16x64xf32>
    %89 = vector.shape_cast %88 : vector<1x16x64xf32> to vector<16x64xf32>
    %90 = arith.mulf %89, %86 : vector<16x64xf32>
    %91 = arith.index_cast %c0_i32_42 : i32 to index
    %c0_45 = arith.constant 0 : index
    %c0_46 = arith.constant 0 : index
    %92 = vector.load %arg19[%91, %c0_45, %c0_46] : memref<8x16x64xf32, #tpu.memory_space<vmem>>, vector<1x16x64xf32>
    %93 = vector.shape_cast %92 : vector<1x16x64xf32> to vector<16x64xf32>
    %94 = arith.addf %90, %93 : vector<16x64xf32>
    %95 = arith.index_cast %c0_i32_42 : i32 to index
    %c0_47 = arith.constant 0 : index
    %c0_48 = arith.constant 0 : index
    %96 = vector.load %arg20[%95, %c0_47, %c0_48] : memref<8x16x1xf32, #tpu.memory_space<vmem>>, vector<1x16x1xf32>
    %97 = vector.shape_cast %96 : vector<1x16x1xf32> to vector<16x1xf32>
    %98 = vector.broadcast %97 : vector<16x1xf32> to vector<16x64xf32>
    %99 = arith.mulf %94, %98 : vector<16x64xf32>
    %cst_49 = arith.constant dense<0.000000e+00> : vector<64xf32>
    %100 = vector.multi_reduction <add>, %99, %cst_49 [0] : vector<16x64xf32> to vector<64xf32>
    %101 = arith.index_cast %c0_i32_42 : i32 to index
    %c0_50 = arith.constant 0 : index
    %102 = vector.load %arg21[%101, %c0_50] : memref<8x64xf32, #tpu.memory_space<vmem>>, vector<1x64xf32>
    %103 = vector.shape_cast %102 : vector<1x64xf32> to vector<64xf32>
    %104 = vector.shape_cast %100 : vector<64xf32> to vector<1x64xf32>
    tpu.vector_store %arg21[%101, %c0_50], %104 {strides = array<i32>} : memref<8x64xf32, #tpu.memory_space<vmem>>, vector<1x64xf32>,
    %c1_i32 = arith.constant 1 : i32
    %105 = arith.index_cast %c1_i32 : i32 to index
    %c0_51 = arith.constant 0 : index
    %c0_52 = arith.constant 0 : index
    %106 = vector.load %arg18[%105, %c0_51, %c0_52] : memref<8x16x64xf32, #tpu.memory_space<vmem>>, vector<1x16x64xf32>
    %107 = vector.shape_cast %106 : vector<1x16x64xf32> to vector<16x64xf32>
    %108 = arith.mulf %107, %94 : vector<16x64xf32>
    %109 = arith.index_cast %c1_i32 : i32 to index
    %c0_53 = arith.constant 0 : index
    %c0_54 = arith.constant 0 : index
    %110 = vector.load %arg19[%109, %c0_53, %c0_54] : memref<8x16x64xf32, #tpu.memory_space<vmem>>, vector<1x16x64xf32>
    %111 = vector.shape_cast %110 : vector<1x16x64xf32> to vector<16x64xf32>
    %112 = arith.addf %108, %111 : vector<16x64xf32>
    %113 = arith.index_cast %c1_i32 : i32 to index
    %c0_55 = arith.constant 0 : index
    %c0_56 = arith.constant 0 : index
    %114 = vector.load %arg20[%113, %c0_55, %c0_56] : memref<8x16x1xf32, #tpu.memory_space<vmem>>, vector<1x16x1xf32>
    %115 = vector.shape_cast %114 : vector<1x16x1xf32> to vector<16x1xf32>
    %116 = vector.broadcast %115 : vector<16x1xf32> to vector<16x64xf32>
    %117 = arith.mulf %112, %116 : vector<16x64xf32>
    %cst_57 = arith.constant dense<0.000000e+00> : vector<64xf32>
    %118 = vector.multi_reduction <add>, %117, %cst_57 [0] : vector<16x64xf32> to vector<64xf32>
    %119 = arith.index_cast %c1_i32 : i32 to index
    %c0_58 = arith.constant 0 : index
    %120 = vector.load %arg21[%119, %c0_58] : memref<8x64xf32, #tpu.memory_space<vmem>>, vector<1x64xf32>
    %121 = vector.shape_cast %120 : vector<1x64xf32> to vector<64xf32>
    %122 = vector.shape_cast %118 : vector<64xf32> to vector<1x64xf32>
    tpu.vector_store %arg21[%119, %c0_58], %122 {strides = array<i32>} : memref<8x64xf32, #tpu.memory_space<vmem>>, vector<1x64xf32>,
    %c2_i32 = arith.constant 2 : i32
    %123 = arith.index_cast %c2_i32 : i32 to index
    %c0_59 = arith.constant 0 : index
    %c0_60 = arith.constant 0 : index
    %124 = vector.load %arg18[%123, %c0_59, %c0_60] : memref<8x16x64xf32, #tpu.memory_space<vmem>>, vector<1x16x64xf32>
    %125 = vector.shape_cast %124 : vector<1x16x64xf32> to vector<16x64xf32>
    %126 = arith.mulf %125, %112 : vector<16x64xf32>
    %127 = arith.index_cast %c2_i32 : i32 to index
    %c0_61 = arith.constant 0 : index
    %c0_62 = arith.constant 0 : index
    %128 = vector.load %arg19[%127, %c0_61, %c0_62] : memref<8x16x64xf32, #tpu.memory_space<vmem>>, vector<1x16x64xf32>
    %129 = vector.shape_cast %128 : vector<1x16x64xf32> to vector<16x64xf32>
    %130 = arith.addf %126, %129 : vector<16x64xf32>
    %131 = arith.index_cast %c2_i32 : i32 to index
    %c0_63 = arith.constant 0 : index
    %c0_64 = arith.constant 0 : index
    %132 = vector.load %arg20[%131, %c0_63, %c0_64] : memref<8x16x1xf32, #tpu.memory_space<vmem>>, vector<1x16x1xf32>
    %133 = vector.shape_cast %132 : vector<1x16x1xf32> to vector<16x1xf32>
    %134 = vector.broadcast %133 : vector<16x1xf32> to vector<16x64xf32>
    %135 = arith.mulf %130, %134 : vector<16x64xf32>
    %cst_65 = arith.constant dense<0.000000e+00> : vector<64xf32>
    %136 = vector.multi_reduction <add>, %135, %cst_65 [0] : vector<16x64xf32> to vector<64xf32>
    %137 = arith.index_cast %c2_i32 : i32 to index
    %c0_66 = arith.constant 0 : index
    %138 = vector.load %arg21[%137, %c0_66] : memref<8x64xf32, #tpu.memory_space<vmem>>, vector<1x64xf32>
    %139 = vector.shape_cast %138 : vector<1x64xf32> to vector<64xf32>
    %140 = vector.shape_cast %136 : vector<64xf32> to vector<1x64xf32>
    tpu.vector_store %arg21[%137, %c0_66], %140 {strides = array<i32>} : memref<8x64xf32, #tpu.memory_space<vmem>>, vector<1x64xf32>,
    %c3_i32 = arith.constant 3 : i32
    %141 = arith.index_cast %c3_i32 : i32 to index
    %c0_67 = arith.constant 0 : index
    %c0_68 = arith.constant 0 : index
    %142 = vector.load %arg18[%141, %c0_67, %c0_68] : memref<8x16x64xf32, #tpu.memory_space<vmem>>, vector<1x16x64xf32>
    %143 = vector.shape_cast %142 : vector<1x16x64xf32> to vector<16x64xf32>
    %144 = arith.mulf %143, %130 : vector<16x64xf32>
    %145 = arith.index_cast %c3_i32 : i32 to index
    %c0_69 = arith.constant 0 : index
    %c0_70 = arith.constant 0 : index
    %146 = vector.load %arg19[%145, %c0_69, %c0_70] : memref<8x16x64xf32, #tpu.memory_space<vmem>>, vector<1x16x64xf32>
    %147 = vector.shape_cast %146 : vector<1x16x64xf32> to vector<16x64xf32>
    %148 = arith.addf %144, %147 : vector<16x64xf32>
    %149 = arith.index_cast %c3_i32 : i32 to index
    %c0_71 = arith.constant 0 : index
    %c0_72 = arith.constant 0 : index
    %150 = vector.load %arg20[%149, %c0_71, %c0_72] : memref<8x16x1xf32, #tpu.memory_space<vmem>>, vector<1x16x1xf32>
    %151 = vector.shape_cast %150 : vector<1x16x1xf32> to vector<16x1xf32>
    %152 = vector.broadcast %151 : vector<16x1xf32> to vector<16x64xf32>
    %153 = arith.mulf %148, %152 : vector<16x64xf32>
    %cst_73 = arith.constant dense<0.000000e+00> : vector<64xf32>
    %154 = vector.multi_reduction <add>, %153, %cst_73 [0] : vector<16x64xf32> to vector<64xf32>
    %155 = arith.index_cast %c3_i32 : i32 to index
    %c0_74 = arith.constant 0 : index
    %156 = vector.load %arg21[%155, %c0_74] : memref<8x64xf32, #tpu.memory_space<vmem>>, vector<1x64xf32>
    %157 = vector.shape_cast %156 : vector<1x64xf32> to vector<64xf32>
    %158 = vector.shape_cast %154 : vector<64xf32> to vector<1x64xf32>
    tpu.vector_store %arg21[%155, %c0_74], %158 {strides = array<i32>} : memref<8x64xf32, #tpu.memory_space<vmem>>, vector<1x64xf32>,
    %c4_i32 = arith.constant 4 : i32
    %159 = arith.index_cast %c4_i32 : i32 to index
    %c0_75 = arith.constant 0 : index
    %c0_76 = arith.constant 0 : index
    %160 = vector.load %arg18[%159, %c0_75, %c0_76] : memref<8x16x64xf32, #tpu.memory_space<vmem>>, vector<1x16x64xf32>
    %161 = vector.shape_cast %160 : vector<1x16x64xf32> to vector<16x64xf32>
    %162 = arith.mulf %161, %148 : vector<16x64xf32>
    %163 = arith.index_cast %c4_i32 : i32 to index
    %c0_77 = arith.constant 0 : index
    %c0_78 = arith.constant 0 : index
    %164 = vector.load %arg19[%163, %c0_77, %c0_78] : memref<8x16x64xf32, #tpu.memory_space<vmem>>, vector<1x16x64xf32>
    %165 = vector.shape_cast %164 : vector<1x16x64xf32> to vector<16x64xf32>
    %166 = arith.addf %162, %165 : vector<16x64xf32>
    %167 = arith.index_cast %c4_i32 : i32 to index
    %c0_79 = arith.constant 0 : index
    %c0_80 = arith.constant 0 : index
    %168 = vector.load %arg20[%167, %c0_79, %c0_80] : memref<8x16x1xf32, #tpu.memory_space<vmem>>, vector<1x16x1xf32>
    %169 = vector.shape_cast %168 : vector<1x16x1xf32> to vector<16x1xf32>
    %170 = vector.broadcast %169 : vector<16x1xf32> to vector<16x64xf32>
    %171 = arith.mulf %166, %170 : vector<16x64xf32>
    %cst_81 = arith.constant dense<0.000000e+00> : vector<64xf32>
    %172 = vector.multi_reduction <add>, %171, %cst_81 [0] : vector<16x64xf32> to vector<64xf32>
    %173 = arith.index_cast %c4_i32 : i32 to index
    %c0_82 = arith.constant 0 : index
    %174 = vector.load %arg21[%173, %c0_82] : memref<8x64xf32, #tpu.memory_space<vmem>>, vector<1x64xf32>
    %175 = vector.shape_cast %174 : vector<1x64xf32> to vector<64xf32>
    %176 = vector.shape_cast %172 : vector<64xf32> to vector<1x64xf32>
    tpu.vector_store %arg21[%173, %c0_82], %176 {strides = array<i32>} : memref<8x64xf32, #tpu.memory_space<vmem>>, vector<1x64xf32>,
    %c5_i32 = arith.constant 5 : i32
    %177 = arith.index_cast %c5_i32 : i32 to index
    %c0_83 = arith.constant 0 : index
    %c0_84 = arith.constant 0 : index
    %178 = vector.load %arg18[%177, %c0_83, %c0_84] : memref<8x16x64xf32, #tpu.memory_space<vmem>>, vector<1x16x64xf32>
    %179 = vector.shape_cast %178 : vector<1x16x64xf32> to vector<16x64xf32>
    %180 = arith.mulf %179, %166 : vector<16x64xf32>
    %181 = arith.index_cast %c5_i32 : i32 to index
    %c0_85 = arith.constant 0 : index
    %c0_86 = arith.constant 0 : index
    %182 = vector.load %arg19[%181, %c0_85, %c0_86] : memref<8x16x64xf32, #tpu.memory_space<vmem>>, vector<1x16x64xf32>
    %183 = vector.shape_cast %182 : vector<1x16x64xf32> to vector<16x64xf32>
    %184 = arith.addf %180, %183 : vector<16x64xf32>
    %185 = arith.index_cast %c5_i32 : i32 to index
    %c0_87 = arith.constant 0 : index
    %c0_88 = arith.constant 0 : index
    %186 = vector.load %arg20[%185, %c0_87, %c0_88] : memref<8x16x1xf32, #tpu.memory_space<vmem>>, vector<1x16x1xf32>
    %187 = vector.shape_cast %186 : vector<1x16x1xf32> to vector<16x1xf32>
    %188 = vector.broadcast %187 : vector<16x1xf32> to vector<16x64xf32>
    %189 = arith.mulf %184, %188 : vector<16x64xf32>
    %cst_89 = arith.constant dense<0.000000e+00> : vector<64xf32>
    %190 = vector.multi_reduction <add>, %189, %cst_89 [0] : vector<16x64xf32> to vector<64xf32>
    %191 = arith.index_cast %c5_i32 : i32 to index
    %c0_90 = arith.constant 0 : index
    %192 = vector.load %arg21[%191, %c0_90] : memref<8x64xf32, #tpu.memory_space<vmem>>, vector<1x64xf32>
    %193 = vector.shape_cast %192 : vector<1x64xf32> to vector<64xf32>
    %194 = vector.shape_cast %190 : vector<64xf32> to vector<1x64xf32>
    tpu.vector_store %arg21[%191, %c0_90], %194 {strides = array<i32>} : memref<8x64xf32, #tpu.memory_space<vmem>>, vector<1x64xf32>,
    %c6_i32 = arith.constant 6 : i32
    %195 = arith.index_cast %c6_i32 : i32 to index
    %c0_91 = arith.constant 0 : index
    %c0_92 = arith.constant 0 : index
    %196 = vector.load %arg18[%195, %c0_91, %c0_92] : memref<8x16x64xf32, #tpu.memory_space<vmem>>, vector<1x16x64xf32>
    %197 = vector.shape_cast %196 : vector<1x16x64xf32> to vector<16x64xf32>
    %198 = arith.mulf %197, %184 : vector<16x64xf32>
    %199 = arith.index_cast %c6_i32 : i32 to index
    %c0_93 = arith.constant 0 : index
    %c0_94 = arith.constant 0 : index
    %200 = vector.load %arg19[%199, %c0_93, %c0_94] : memref<8x16x64xf32, #tpu.memory_space<vmem>>, vector<1x16x64xf32>
    %201 = vector.shape_cast %200 : vector<1x16x64xf32> to vector<16x64xf32>
    %202 = arith.addf %198, %201 : vector<16x64xf32>
    %203 = arith.index_cast %c6_i32 : i32 to index
    %c0_95 = arith.constant 0 : index
    %c0_96 = arith.constant 0 : index
    %204 = vector.load %arg20[%203, %c0_95, %c0_96] : memref<8x16x1xf32, #tpu.memory_space<vmem>>, vector<1x16x1xf32>
    %205 = vector.shape_cast %204 : vector<1x16x1xf32> to vector<16x1xf32>
    %206 = vector.broadcast %205 : vector<16x1xf32> to vector<16x64xf32>
    %207 = arith.mulf %202, %206 : vector<16x64xf32>
    %cst_97 = arith.constant dense<0.000000e+00> : vector<64xf32>
    %208 = vector.multi_reduction <add>, %207, %cst_97 [0] : vector<16x64xf32> to vector<64xf32>
    %209 = arith.index_cast %c6_i32 : i32 to index
    %c0_98 = arith.constant 0 : index
    %210 = vector.load %arg21[%209, %c0_98] : memref<8x64xf32, #tpu.memory_space<vmem>>, vector<1x64xf32>
    %211 = vector.shape_cast %210 : vector<1x64xf32> to vector<64xf32>
    %212 = vector.shape_cast %208 : vector<64xf32> to vector<1x64xf32>
    tpu.vector_store %arg21[%209, %c0_98], %212 {strides = array<i32>} : memref<8x64xf32, #tpu.memory_space<vmem>>, vector<1x64xf32>,
    %c7_i32 = arith.constant 7 : i32
    %213 = arith.index_cast %c7_i32 : i32 to index
    %c0_99 = arith.constant 0 : index
    %c0_100 = arith.constant 0 : index
    %214 = vector.load %arg18[%213, %c0_99, %c0_100] : memref<8x16x64xf32, #tpu.memory_space<vmem>>, vector<1x16x64xf32>
    %215 = vector.shape_cast %214 : vector<1x16x64xf32> to vector<16x64xf32>
    %216 = arith.mulf %215, %202 : vector<16x64xf32>
    %217 = arith.index_cast %c7_i32 : i32 to index
    %c0_101 = arith.constant 0 : index
    %c0_102 = arith.constant 0 : index
    %218 = vector.load %arg19[%217, %c0_101, %c0_102] : memref<8x16x64xf32, #tpu.memory_space<vmem>>, vector<1x16x64xf32>
    %219 = vector.shape_cast %218 : vector<1x16x64xf32> to vector<16x64xf32>
    %220 = arith.addf %216, %219 : vector<16x64xf32>
    %221 = arith.index_cast %c7_i32 : i32 to index
    %c0_103 = arith.constant 0 : index
    %c0_104 = arith.constant 0 : index
    %222 = vector.load %arg20[%221, %c0_103, %c0_104] : memref<8x16x1xf32, #tpu.memory_space<vmem>>, vector<1x16x1xf32>
    %223 = vector.shape_cast %222 : vector<1x16x1xf32> to vector<16x1xf32>
    %224 = vector.broadcast %223 : vector<16x1xf32> to vector<16x64xf32>
    %225 = arith.mulf %220, %224 : vector<16x64xf32>
    %cst_105 = arith.constant dense<0.000000e+00> : vector<64xf32>
    %226 = vector.multi_reduction <add>, %225, %cst_105 [0] : vector<16x64xf32> to vector<64xf32>
    %227 = arith.index_cast %c7_i32 : i32 to index
    %c0_106 = arith.constant 0 : index
    %228 = vector.load %arg21[%227, %c0_106] : memref<8x64xf32, #tpu.memory_space<vmem>>, vector<1x64xf32>
    %229 = vector.shape_cast %228 : vector<1x64xf32> to vector<64xf32>
    %230 = vector.shape_cast %226 : vector<64xf32> to vector<1x64xf32>
    tpu.vector_store %arg21[%227, %c0_106], %230 {strides = array<i32>} : memref<8x64xf32, #tpu.memory_space<vmem>>, vector<1x64xf32>,
    %c8_i32 = arith.constant 8 : i32
    %c0_107 = arith.constant 0 : index
    %c0_108 = arith.constant 0 : index
    %231 = vector.load %arg16[%c0_107, %c0_108] : memref<16x64xf32, #tpu.memory_space<vmem>>, vector<16x64xf32>
    tpu.vector_store %arg16[%c0_107, %c0_108], %220 {strides = array<i32>} : memref<16x64xf32, #tpu.memory_space<vmem>>, vector<16x64xf32>,
    %c0_109 = arith.constant 0 : index
    %c0_110 = arith.constant 0 : index
    %232 = vector.load %arg21[%c0_109, %c0_110] : memref<8x64xf32, #tpu.memory_space<vmem>>, vector<8x64xf32>
    %c0_111 = arith.constant 0 : index
    %c0_112 = arith.constant 0 : index
    %233 = vector.load %arg11[%c0_111, %c0_112] : memref<1x64xf32, #tpu.memory_space<vmem>>, vector<1x64xf32>
    %234 = vector.broadcast %233 : vector<1x64xf32> to vector<8x64xf32>
    %235 = arith.mulf %39, %234 : vector<8x64xf32>
    %236 = arith.addf %232, %235 : vector<8x64xf32>
    %237 = arith.negf %8 : vector<8x64xf32>
    %238 = math.exp %237 : vector<8x64xf32>
    %cst_113 = arith.constant 1.000000e+00 : f32
    %239 = vector.broadcast %cst_113 : f32 to vector<8x64xf32>
    %240 = arith.addf %239, %238 : vector<8x64xf32>
    %241 = arith.divf %239, %240 : vector<8x64xf32>
    %242 = arith.mulf %8, %241 : vector<8x64xf32>
    %243 = arith.mulf %236, %242 : vector<8x64xf32>
    %c0_114 = arith.constant 0 : index
    %c0_115 = arith.constant 0 : index
    %244 = vector.load %arg12[%c0_114, %c0_115] : memref<64x32xf32, #tpu.memory_space<vmem>>, vector<64x32xf32>
    %cst_116 = arith.constant dense<0.000000e+00> : vector<8x32xf32>
    %245 = tpu.matmul %243, %244, %cst_116 {dimension_numbers = #tpu.dot_dimension_numbers<[1], [0], [0], [1], [0, 0, 1, 1], [], []>} : vector<8x64xf32>, vector<64x32xf32>, vector<8x32xf32> -> vector<8x32xf32>
    %cst_117 = arith.constant dense<0.000000e+00> : vector<8xf32>
    %246 = vector.multi_reduction <add>, %245, %cst_117 [1] : vector<8x32xf32> to vector<8xf32>
    %247 = vector.shape_cast %246 : vector<8xf32> to vector<8x1xf32>
    %cst_118 = arith.constant 3.200000e+01 : f32
    %248 = vector.broadcast %cst_118 : f32 to vector<8x1xf32>
    %249 = arith.divf %247, %248 : vector<8x1xf32>
    %250 = vector.broadcast %249 : vector<8x1xf32> to vector<8x32xf32>
    %251 = arith.subf %245, %250 : vector<8x32xf32>
    %252 = arith.mulf %251, %251 : vector<8x32xf32>
    %cst_119 = arith.constant dense<0.000000e+00> : vector<8xf32>
    %253 = vector.multi_reduction <add>, %252, %cst_119 [1] : vector<8x32xf32> to vector<8xf32>
    %254 = vector.shape_cast %253 : vector<8xf32> to vector<8x1xf32>
    %cst_120 = arith.constant 3.200000e+01 : f32
    %255 = vector.broadcast %cst_120 : f32 to vector<8x1xf32>
    %256 = arith.divf %254, %255 : vector<8x1xf32>
    %257 = vector.broadcast %249 : vector<8x1xf32> to vector<8x32xf32>
    %258 = arith.subf %245, %257 : vector<8x32xf32>
    %cst_121 = arith.constant 9.99999997E-7 : f32
    %259 = vector.broadcast %cst_121 : f32 to vector<8x1xf32>
    %260 = arith.addf %256, %259 : vector<8x1xf32>
    %261 = math.rsqrt %260 : vector<8x1xf32>
    %262 = vector.broadcast %261 : vector<8x1xf32> to vector<8x32xf32>
    %263 = arith.mulf %258, %262 : vector<8x32xf32>
    %c0_122 = arith.constant 0 : index
    %c0_123 = arith.constant 0 : index
    %264 = vector.load %arg13[%c0_122, %c0_123] : memref<1x32xf32, #tpu.memory_space<vmem>>, vector<1x32xf32>
    %265 = vector.broadcast %264 : vector<1x32xf32> to vector<8x32xf32>
    %266 = arith.mulf %263, %265 : vector<8x32xf32>
    %c0_124 = arith.constant 0 : index
    %c0_125 = arith.constant 0 : index
    %267 = vector.load %arg14[%c0_124, %c0_125] : memref<1x32xf32, #tpu.memory_space<vmem>>, vector<1x32xf32>
    %268 = vector.broadcast %267 : vector<1x32xf32> to vector<8x32xf32>
    %269 = arith.addf %266, %268 : vector<8x32xf32>
    %270 = arith.addf %4, %269 : vector<8x32xf32>
    %c0_126 = arith.constant 0 : index
    %c0_127 = arith.constant 0 : index
    %c0_128 = arith.constant 0 : index
    %271 = vector.load %arg15[%c0_126, %c0_127, %c0_128] : memref<1x8x32xf32, #tpu.memory_space<vmem>>, vector<1x8x32xf32>
    %272 = vector.shape_cast %271 : vector<1x8x32xf32> to vector<8x32xf32>
    %273 = vector.shape_cast %270 : vector<8x32xf32> to vector<1x8x32xf32>
    tpu.vector_store %arg15[%c0_126, %c0_127, %c0_128], %273 {strides = array<i32>} : memref<1x8x32xf32, #tpu.memory_space<vmem>>, vector<1x8x32xf32>,
    return
  }
  func.func @transform_0(%arg0: i32, %arg1: i32) -> (i32, i32, i32) {
    %c0_i32 = arith.constant 0 : i32
    %c0_i32_0 = arith.constant 0 : i32
    return %arg0, %arg1, %c0_i32 : i32, i32, i32
  }
  func.func @transform_1(%arg0: i32, %arg1: i32) -> (i32, i32) {
    %c0_i32 = arith.constant 0 : i32
    %c0_i32_0 = arith.constant 0 : i32
    %c0_i32_1 = arith.constant 0 : i32
    return %c0_i32, %c0_i32_0 : i32, i32
  }
  func.func @transform_2(%arg0: i32, %arg1: i32) -> (i32, i32) {
    %c0_i32 = arith.constant 0 : i32
    %c0_i32_0 = arith.constant 0 : i32
    %c0_i32_1 = arith.constant 0 : i32
    return %c0_i32, %c0_i32_0 : i32, i32
  }
  func.func @transform_3(%arg0: i32, %arg1: i32) -> (i32, i32) {
    %c0_i32 = arith.constant 0 : i32
    %c0_i32_0 = arith.constant 0 : i32
    %c0_i32_1 = arith.constant 0 : i32
    return %c0_i32, %c0_i32_0 : i32, i32
  }
  func.func @transform_4(%arg0: i32, %arg1: i32) -> (i32, i32) {
    %c0_i32 = arith.constant 0 : i32
    %c0_i32_0 = arith.constant 0 : i32
    %c0_i32_1 = arith.constant 0 : i32
    return %c0_i32, %c0_i32_0 : i32, i32
  }
  func.func @transform_5(%arg0: i32, %arg1: i32) -> (i32, i32) {
    %c0_i32 = arith.constant 0 : i32
    %c0_i32_0 = arith.constant 0 : i32
    %c0_i32_1 = arith.constant 0 : i32
    return %c0_i32, %c0_i32_0 : i32, i32
  }
  func.func @transform_6(%arg0: i32, %arg1: i32) -> (i32, i32) {
    %c0_i32 = arith.constant 0 : i32
    %c0_i32_0 = arith.constant 0 : i32
    %c0_i32_1 = arith.constant 0 : i32
    return %c0_i32, %c0_i32_0 : i32, i32
  }
  func.func @transform_7(%arg0: i32, %arg1: i32) -> (i32, i32) {
    %c0_i32 = arith.constant 0 : i32
    %c0_i32_0 = arith.constant 0 : i32
    %c0_i32_1 = arith.constant 0 : i32
    return %c0_i32, %c0_i32_0 : i32, i32
  }
  func.func @transform_8(%arg0: i32, %arg1: i32) -> (i32, i32) {
    %c0_i32 = arith.constant 0 : i32
    %c0_i32_0 = arith.constant 0 : i32
    %c0_i32_1 = arith.constant 0 : i32
    return %c0_i32, %c0_i32_0 : i32, i32
  }
  func.func @transform_9(%arg0: i32, %arg1: i32) -> (i32, i32) {
    %c0_i32 = arith.constant 0 : i32
    %c0_i32_0 = arith.constant 0 : i32
    %c0_i32_1 = arith.constant 0 : i32
    return %c0_i32, %c0_i32_0 : i32, i32
  }
  func.func @transform_10(%arg0: i32, %arg1: i32) -> (i32, i32) {
    %c0_i32 = arith.constant 0 : i32
    %c0_i32_0 = arith.constant 0 : i32
    %c0_i32_1 = arith.constant 0 : i32
    return %c0_i32, %c0_i32_0 : i32, i32
  }
  func.func @transform_11(%arg0: i32, %arg1: i32) -> (i32, i32) {
    %c0_i32 = arith.constant 0 : i32
    %c0_i32_0 = arith.constant 0 : i32
    %c0_i32_1 = arith.constant 0 : i32
    return %c0_i32, %c0_i32_0 : i32, i32
  }
  func.func @transform_12(%arg0: i32, %arg1: i32) -> (i32, i32) {
    %c0_i32 = arith.constant 0 : i32
    %c0_i32_0 = arith.constant 0 : i32
    %c0_i32_1 = arith.constant 0 : i32
    return %c0_i32, %c0_i32_0 : i32, i32
  }
  func.func @transform_13(%arg0: i32, %arg1: i32) -> (i32, i32, i32) {
    %c0_i32 = arith.constant 0 : i32
    %c0_i32_0 = arith.constant 0 : i32
    return %arg0, %arg1, %c0_i32 : i32, i32, i32
  }
}

</mosaic_0001>

<llo_original>
// kernel: tpu_custom_call.1
$region0: #{tpu_custom_call.1}
  #allocation0 [shape = 'u32[]', space=smem, size = 0x4, offset = 0x4, fixed_abs, tag = 'smem constant byte address 0x4 - core index']
  #allocation1 [shape = 'u32[72,128]{1,0:T(1,128)}', space=vmem, size = 0x9000, scoped, tag = 'internal scratch']
  #allocation2 [shape = 'f32[16,64]{1,0:T(8,128)}', space=vmem, size = 0x2000, scoped, tag = 'scratch operand']
  #allocation3 [shape = 'f32[16,64]{1,0:T(8,128)}', space=vmem, size = 0x2000, scoped, tag = 'scratch operand']
  #allocation4 [shape = 'f32[8,16,64]{2,1,0:T(8,128)}', space=vmem, size = 0x10000, scoped, tag = 'scratch operand']
  #allocation5 [shape = 'f32[8,16,64]{2,1,0:T(8,128)}', space=vmem, size = 0x10000, scoped, tag = 'scratch operand']
  #allocation6 [shape = 'f32[8,16,1]{2,1,0:T(8,128)}', space=vmem, size = 0x10000, scoped, tag = 'scratch operand']
  #allocation7 [shape = 'f32[8,64]{1,0:T(8,128)}', space=vmem, size = 0x1000, scoped, tag = 'scratch operand']
  %s0 = inlined_call_operand.vmem [shape: f32[2,16,32], index: 0, kind: input, shape index: {}]
  %s1 = inlined_call_operand.hbm [shape: f32[32,64], index: 1, kind: input, shape index: {}]
  %s2 = inlined_call_operand.hbm [shape: f32[32,64], index: 2, kind: input, shape index: {}]
  %s3 = inlined_call_operand.vmem [shape: f32[4,64], index: 3, kind: input, shape index: {}]
  %s4 = inlined_call_operand.hbm [shape: f32[1,64], index: 4, kind: input, shape index: {}]
  %s5 = inlined_call_operand.vmem [shape: f32[64,128], index: 5, kind: input, shape index: {}]
  %s6 = inlined_call_operand.hbm [shape: f32[2,64], index: 6, kind: input, shape index: {}]
  %s7 = inlined_call_operand.vmem [shape: f32[1,64], index: 7, kind: input, shape index: {}]
  %s8 = inlined_call_operand.hbm [shape: f32[16,64], index: 8, kind: input, shape index: {}]
  %s9 = inlined_call_operand.vmem [shape: f32[1,64], index: 9, kind: input, shape index: {}]
  %s10 = inlined_call_operand.vmem [shape: f32[64,32], index: 10, kind: input, shape index: {}]
  %s11 = inlined_call_operand.vmem [shape: f32[1,32], index: 11, kind: input, shape index: {}]
  %s12 = inlined_call_operand.vmem [shape: f32[1,32], index: 12, kind: input, shape index: {}]
  %s13 = inlined_call_operand.hbm [shape: f32[2,16,32], index: 13, kind: output, shape index: {}]
  %s14 = sld [smem:[#allocation0]]
  $region109: #{tpu_custom_call.1} parent=0
    _
  %s16 = ssub.s32 1, %s14
  %s17 = scalar_select 0, %s16, %s14
  $region1: #{tpu_custom_call.1} parent=0
    #allocation8 [shape = 'u8[16384]{0}', space=vmem, size = 0x4000, scoped, tag = 'input window, operand 1, single buffered']
    #allocation9 [shape = 's32[2]{0}', space=sflag, size = 0x8, scoped, tag = 'scoped memory for tpu_custom_call.1']
    #allocation10 [shape = 's32[2]{0}', space=sflag, size = 0x8, scoped, tag = 'scoped memory for tpu_custom_call.1']
    #allocation11 [shape = 'u8[16384]{0}', space=vmem, size = 0x4000, scoped, tag = 'input window, operand 2, single buffered']
    #allocation12 [shape = 's32[1]{0}', space=sflag, size = 0x4, scoped, tag = 'scoped memory for tpu_custom_call.1']
    #allocation13 [shape = 'u8[512]{0}', space=vmem, size = 0x400, scoped, tag = 'input window, operand 4, single buffered']
    #allocation14 [shape = 'u8[1024]{0}', space=vmem, size = 0x400, scoped, tag = 'input window, operand 6, single buffered']
    #allocation15 [shape = 's32[1]{0}', space=sflag, size = 0x4, scoped, tag = 'scoped memory for tpu_custom_call.1']
    #allocation16 [shape = 'u8[8192]{0}', space=vmem, size = 0x2000, scoped, tag = 'input window, operand 8, single buffered']
    #allocation17 [shape = 'u8[8192]{0}', space=vmem, size = 0x2000, scoped, tag = 'output window, operand 0']
    %18 = vsyncpa [#allocation9], 0
    %19 = vsyncpa [#allocation12], 0
    %20 = vsyncpa [#allocation15], 0
    %21 = vsyncpa [#allocation10], 0
    %s22 = scalar_lea.sflag [#allocation10], 1
    %23 = vsyncpa %s22, 0
    loop: start=0, step=1, limit=6
    $region2: #{tpu_custom_call.1} parent=1 // loop_pre_header
      _
    $region3: #{tpu_custom_call.1} parent=1 // loop_header
      %s25 = sphi 0, %s29
      %p26 = scmp.ge.s32.totalorder %s25, 6
      %s32 = sphi 0, %s44
      %s33 = sphi 0, %s40
      %s34 = sphi 0, %s32
      %s35 = sphi 0, %s33
      %s36 = sphi 0, %s34
      %s37 = sphi 0, %s35
      %s49 = sphi 0, %s51
      %s52 = sphi 0, %s49
      %s53 = sphi 0, %s52
      %s69 = sphi 0, %s53
      %s73 = sphi 0, %s73
      %s75 = sphi 0, %s73
      %s76 = sphi 0, %s75
      %s90 = sphi 0, %s76
      %s94 = sphi 0, %s94
      %s96 = sphi 0, %s94
      %s97 = sphi 0, %s96
      %s111 = sphi 0, %s97
      %s115 = sphi 0, %s115
      %s117 = sphi 0, %s115
      %s118 = sphi 0, %s117
      %s132 = sphi 0, %s118
      %s136 = sphi 0, %s136
      %s138 = sphi 0, %s136
      %s139 = sphi 0, %s138
      %s153 = sphi 0, %s139
      %s157 = sphi 0, %s157
      %s159 = sphi 0, %s157
      %s160 = sphi 0, %s159
      %s174 = sphi 0, %s160
      %s178 = sphi 0, %s178
      %s180 = sphi 0, %s178
      %s181 = sphi 0, %s180
      %s195 = sphi 0, %s181
      %s199 = sphi 0, %s199
      %s201 = sphi 0, %s199
      %s202 = sphi 0, %s201
      %s216 = sphi 0, %s202
      %s220 = sphi 0, %s220
      %s222 = sphi 0, %s220
      %s223 = sphi 0, %s222
      %s237 = sphi 0, %s223
      %s241 = sphi 0, %s241
      %s243 = sphi 0, %s241
      %s244 = sphi 0, %s243
      %s258 = sphi 0, %s244
      %s262 = sphi 0, %s262
      %s264 = sphi 0, %s262
      %s265 = sphi 0, %s264
      %s279 = sphi 0, %s265
      %s283 = sphi 0, %s283
      %s285 = sphi 0, %s283
      %s286 = sphi 0, %s285
      %s300 = sphi 0, %s286
      %s304 = sphi 0, %s304
      %s306 = sphi 0, %s304
      %s307 = sphi 0, %s306
      %s321 = sphi 0, %s307
      %s329 = sphi 0, %s331
      %s332 = sphi 0, %s329
      %s333 = sphi 0, %s332
      %s349 = sphi 0, %s333
    $region4: #{tpu_custom_call.1} parent=1 // loop_header_branch
      %28 = sbr.rel (%p26) target = $region8
    $region5: #{tpu_custom_call.1} parent=1 // loop_body
      %s30 = ssub.s32 %s25, 1
      %s31 = ssub.s32 %s25, 2
      %s38 = sadd.s32 1, %s33
      %p39 = scmp.ge.s32.totalorder %s38, 2
      %s40 = scalar_select %p39, 0, %s38
      %s41 = sadd.s32 1, %s32
      %s42 = scalar_select %p39, %s41, %s32
      %p43 = scmp.ge.s32.totalorder %s42, 2
      %s44 = scalar_select %p43, 0, %s42
      %s45 = ssub.s32 %s32, %s44
      %s46 = ssub.s32 %s33, %s40
      %s47 = sor.u32 %s45, %s46
      %p48 = scmp.eq.s32.totalorder %s47, 0
      %s50 = sadd.s32 %s49, 1
      %s51 = scalar_select %p48, %s49, %s50
      %p54 = pneg %p48
      %p55 = scmp.eq.s32.totalorder %s25, 3
      %p56 = por %p54, %p55
      %p57 = scmp.ne.s32.totalorder %s49, %s52
      %p58 = scmp.eq.s32.totalorder %s25, 0
      %p59 = por %p57, %p58
      %p60 = scmp.ne.s32.totalorder %s49, %s52
      %p61 = scmp.eq.s32.totalorder %s30, 3
      %p62 = por %p60, %p61
      %p63 = scmp.ne.s32.totalorder %s52, %s53
      %p64 = scmp.eq.s32.totalorder %s30, 0
      %p65 = por %p63, %p64
      %p66 = scmp.ne.s32.totalorder %s52, %s53
      %p67 = scmp.eq.s32.totalorder %s31, 3
      %p68 = por %p66, %p67
      %p70 = scmp.ne.s32.totalorder %s53, %s69
      %p71 = scmp.eq.s32.totalorder %s31, 0
      %p72 = por %p70, %p71
      %s74 = sadd.s32 %s73, 1
      %p77 = scmp.eq.s32.totalorder %s25, 3
      %p78 = scmp.ne.s32.totalorder %s73, %s75
      %p79 = scmp.eq.s32.totalorder %s25, 0
      %p80 = por %p78, %p79
      %p81 = scmp.ne.s32.totalorder %s73, %s75
      %p82 = scmp.eq.s32.totalorder %s30, 3
      %p83 = por %p81, %p82
      %p84 = scmp.ne.s32.totalorder %s75, %s76
      %p85 = scmp.eq.s32.totalorder %s30, 0
      %p86 = por %p84, %p85
      %p87 = scmp.ne.s32.totalorder %s75, %s76
      %p88 = scmp.eq.s32.totalorder %s31, 3
      %p89 = por %p87, %p88
      %p91 = scmp.ne.s32.totalorder %s76, %s90
      %p92 = scmp.eq.s32.totalorder %s31, 0
      %p93 = por %p91, %p92
      %s95 = sadd.s32 %s94, 1
      %p98 = scmp.eq.s32.totalorder %s25, 3
      %p99 = scmp.ne.s32.totalorder %s94, %s96
      %p100 = scmp.eq.s32.totalorder %s25, 0
      %p101 = por %p99, %p100
      %p102 = scmp.ne.s32.totalorder %s94, %s96
      %p103 = scmp.eq.s32.totalorder %s30, 3
      %p104 = por %p102, %p103
      %p105 = scmp.ne.s32.totalorder %s96, %s97
      %p106 = scmp.eq.s32.totalorder %s30, 0
      %p107 = por %p105, %p106
      %p108 = scmp.ne.s32.totalorder %s96, %s97
      %p109 = scmp.eq.s32.totalorder %s31, 3
      %p110 = por %p108, %p109
      %p112 = scmp.ne.s32.totalorder %s97, %s111
      %p113 = scmp.eq.s32.totalorder %s31, 0
      %p114 = por %p112, %p113
      %s116 = sadd.s32 %s115, 1
      %p119 = scmp.eq.s32.totalorder %s25, 3
      %p120 = scmp.ne.s32.totalorder %s115, %s117
      %p121 = scmp.eq.s32.totalorder %s25, 0
      %p122 = por %p120, %p121
      %p123 = scmp.ne.s32.totalorder %s115, %s117
      %p124 = scmp.eq.s32.totalorder %s30, 3
      %p125 = por %p123, %p124
      %p126 = scmp.ne.s32.totalorder %s117, %s118
      %p127 = scmp.eq.s32.totalorder %s30, 0
      %p128 = por %p126, %p127
      %p129 = scmp.ne.s32.totalorder %s117, %s118
      %p130 = scmp.eq.s32.totalorder %s31, 3
      %p131 = por %p129, %p130
      %p133 = scmp.ne.s32.totalorder %s118, %s132
      %p134 = scmp.eq.s32.totalorder %s31, 0
      %p135 = por %p133, %p134
      %s137 = sadd.s32 %s136, 1
      %p140 = scmp.eq.s32.totalorder %s25, 3
      %p141 = scmp.ne.s32.totalorder %s136, %s138
      %p142 = scmp.eq.s32.totalorder %s25, 0
      %p143 = por %p141, %p142
      %p144 = scmp.ne.s32.totalorder %s136, %s138
      %p145 = scmp.eq.s32.totalorder %s30, 3
      %p146 = por %p144, %p145
      %p147 = scmp.ne.s32.totalorder %s138, %s139
      %p148 = scmp.eq.s32.totalorder %s30, 0
      %p149 = por %p147, %p148
      %p150 = scmp.ne.s32.totalorder %s138, %s139
      %p151 = scmp.eq.s32.totalorder %s31, 3
      %p152 = por %p150, %p151
      %p154 = scmp.ne.s32.totalorder %s139, %s153
      %p155 = scmp.eq.s32.totalorder %s31, 0
      %p156 = por %p154, %p155
      %s158 = sadd.s32 %s157, 1
      %p161 = scmp.eq.s32.totalorder %s25, 3
      %p162 = scmp.ne.s32.totalorder %s157, %s159
      %p163 = scmp.eq.s32.totalorder %s25, 0
      %p164 = por %p162, %p163
      %p165 = scmp.ne.s32.totalorder %s157, %s159
      %p166 = scmp.eq.s32.totalorder %s30, 3
      %p167 = por %p165, %p166
      %p168 = scmp.ne.s32.totalorder %s159, %s160
      %p169 = scmp.eq.s32.totalorder %s30, 0
      %p170 = por %p168, %p169
      %p171 = scmp.ne.s32.totalorder %s159, %s160
      %p172 = scmp.eq.s32.totalorder %s31, 3
      %p173 = por %p171, %p172
      %p175 = scmp.ne.s32.totalorder %s160, %s174
      %p176 = scmp.eq.s32.totalorder %s31, 0
      %p177 = por %p175, %p176
      %s179 = sadd.s32 %s178, 1
      %p182 = scmp.eq.s32.totalorder %s25, 3
      %p183 = scmp.ne.s32.totalorder %s178, %s180
      %p184 = scmp.eq.s32.totalorder %s25, 0
      %p185 = por %p183, %p184
      %p186 = scmp.ne.s32.totalorder %s178, %s180
      %p187 = scmp.eq.s32.totalorder %s30, 3
      %p188 = por %p186, %p187
      %p189 = scmp.ne.s32.totalorder %s180, %s181
      %p190 = scmp.eq.s32.totalorder %s30, 0
      %p191 = por %p189, %p190
      %p192 = scmp.ne.s32.totalorder %s180, %s181
      %p193 = scmp.eq.s32.totalorder %s31, 3
      %p194 = por %p192, %p193
      %p196 = scmp.ne.s32.totalorder %s181, %s195
      %p197 = scmp.eq.s32.totalorder %s31, 0
      %p198 = por %p196, %p197
      %s200 = sadd.s32 %s199, 1
      %p203 = scmp.eq.s32.totalorder %s25, 3
      %p204 = scmp.ne.s32.totalorder %s199, %s201
      %p205 = scmp.eq.s32.totalorder %s25, 0
      %p206 = por %p204, %p205
      %p207 = scmp.ne.s32.totalorder %s199, %s201
      %p208 = scmp.eq.s32.totalorder %s30, 3
      %p209 = por %p207, %p208
      %p210 = scmp.ne.s32.totalorder %s201, %s202
      %p211 = scmp.eq.s32.totalorder %s30, 0
      %p212 = por %p210, %p211
      %p213 = scmp.ne.s32.totalorder %s201, %s202
      %p214 = scmp.eq.s32.totalorder %s31, 3
      %p215 = por %p213, %p214
      %p217 = scmp.ne.s32.totalorder %s202, %s216
      %p218 = scmp.eq.s32.totalorder %s31, 0
      %p219 = por %p217, %p218
      %s221 = sadd.s32 %s220, 1
      %p224 = scmp.eq.s32.totalorder %s25, 3
      %p225 = scmp.ne.s32.totalorder %s220, %s222
      %p226 = scmp.eq.s32.totalorder %s25, 0
      %p227 = por %p225, %p226
      %p228 = scmp.ne.s32.totalorder %s220, %s222
      %p229 = scmp.eq.s32.totalorder %s30, 3
      %p230 = por %p228, %p229
      %p231 = scmp.ne.s32.totalorder %s222, %s223
      %p232 = scmp.eq.s32.totalorder %s30, 0
      %p233 = por %p231, %p232
      %p234 = scmp.ne.s32.totalorder %s222, %s223
      %p235 = scmp.eq.s32.totalorder %s31, 3
      %p236 = por %p234, %p235
      %p238 = scmp.ne.s32.totalorder %s223, %s237
      %p239 = scmp.eq.s32.totalorder %s31, 0
      %p240 = por %p238, %p239
      %s242 = sadd.s32 %s241, 1
      %p245 = scmp.eq.s32.totalorder %s25, 3
      %p246 = scmp.ne.s32.totalorder %s241, %s243
      %p247 = scmp.eq.s32.totalorder %s25, 0
      %p248 = por %p246, %p247
      %p249 = scmp.ne.s32.totalorder %s241, %s243
      %p250 = scmp.eq.s32.totalorder %s30, 3
      %p251 = por %p249, %p250
      %p252 = scmp.ne.s32.totalorder %s243, %s244
      %p253 = scmp.eq.s32.totalorder %s30, 0
      %p254 = por %p252, %p253
      %p255 = scmp.ne.s32.totalorder %s243, %s244
      %p256 = scmp.eq.s32.totalorder %s31, 3
      %p257 = por %p255, %p256
      %p259 = scmp.ne.s32.totalorder %s244, %s258
      %p260 = scmp.eq.s32.totalorder %s31, 0
      %p261 = por %p259, %p260
      %s263 = sadd.s32 %s262, 1
      %p266 = scmp.eq.s32.totalorder %s25, 3
      %p267 = scmp.ne.s32.totalorder %s262, %s264
      %p268 = scmp.eq.s32.totalorder %s25, 0
      %p269 = por %p267, %p268
      %p270 = scmp.ne.s32.totalorder %s262, %s264
      %p271 = scmp.eq.s32.totalorder %s30, 3
      %p272 = por %p270, %p271
      %p273 = scmp.ne.s32.totalorder %s264, %s265
      %p274 = scmp.eq.s32.totalorder %s30, 0
      %p275 = por %p273, %p274
      %p276 = scmp.ne.s32.totalorder %s264, %s265
      %p277 = scmp.eq.s32.totalorder %s31, 3
      %p278 = por %p276, %p277
      %p280 = scmp.ne.s32.totalorder %s265, %s279
      %p281 = scmp.eq.s32.totalorder %s31, 0
      %p282 = por %p280, %p281
      %s284 = sadd.s32 %s283, 1
      %p287 = scmp.eq.s32.totalorder %s25, 3
      %p288 = scmp.ne.s32.totalorder %s283, %s285
      %p289 = scmp.eq.s32.totalorder %s25, 0
      %p290 = por %p288, %p289
      %p291 = scmp.ne.s32.totalorder %s283, %s285
      %p292 = scmp.eq.s32.totalorder %s30, 3
      %p293 = por %p291, %p292
      %p294 = scmp.ne.s32.totalorder %s285, %s286
      %p295 = scmp.eq.s32.totalorder %s30, 0
      %p296 = por %p294, %p295
      %p297 = scmp.ne.s32.totalorder %s285, %s286
      %p298 = scmp.eq.s32.totalorder %s31, 3
      %p299 = por %p297, %p298
      %p301 = scmp.ne.s32.totalorder %s286, %s300
      %p302 = scmp.eq.s32.totalorder %s31, 0
      %p303 = por %p301, %p302
      %s305 = sadd.s32 %s304, 1
      %p308 = scmp.eq.s32.totalorder %s25, 3
      %p309 = scmp.ne.s32.totalorder %s304, %s306
      %p310 = scmp.eq.s32.totalorder %s25, 0
      %p311 = por %p309, %p310
      %p312 = scmp.ne.s32.totalorder %s304, %s306
      %p313 = scmp.eq.s32.totalorder %s30, 3
      %p314 = por %p312, %p313
      %p315 = scmp.ne.s32.totalorder %s306, %s307
      %p316 = scmp.eq.s32.totalorder %s30, 0
      %p317 = por %p315, %p316
      %p318 = scmp.ne.s32.totalorder %s306, %s307
      %p319 = scmp.eq.s32.totalorder %s31, 3
      %p320 = por %p318, %p319
      %p322 = scmp.ne.s32.totalorder %s307, %s321
      %p323 = scmp.eq.s32.totalorder %s31, 0
      %p324 = por %p322, %p323
      %s325 = ssub.s32 %s32, %s44
      %s326 = ssub.s32 %s33, %s40
      %s327 = sor.u32 %s325, %s326
      %p328 = scmp.eq.s32.totalorder %s327, 0
      %s330 = sadd.s32 %s329, 1
      %s331 = scalar_select %p328, %s329, %s330
      %p334 = pneg %p328
      %p335 = scmp.eq.s32.totalorder %s25, 3
      %p336 = por %p334, %p335
      %p337 = scmp.ne.s32.totalorder %s329, %s332
      %p338 = scmp.eq.s32.totalorder %s25, 0
      %p339 = por %p337, %p338
      %p340 = scmp.ne.s32.totalorder %s329, %s332
      %p341 = scmp.eq.s32.totalorder %s30, 3
      %p342 = por %p340, %p341
      %p343 = scmp.ne.s32.totalorder %s332, %s333
      %p344 = scmp.eq.s32.totalorder %s30, 0
      %p345 = por %p343, %p344
      %p346 = scmp.ne.s32.totalorder %s332, %s333
      %p347 = scmp.eq.s32.totalorder %s31, 3
      %p348 = por %p346, %p347
      %p350 = scmp.ne.s32.totalorder %s333, %s349
      %p351 = scmp.eq.s32.totalorder %s31, 0
      %p352 = por %p350, %p351
      %p353 = scmp.le.s32.totalorder 1, %s25
      %p354 = scmp.lt.s32.totalorder %s25, 5
      %p355 = pnand %p353, %p354
      %p356 = pneg %p355
      // Predicated region
      $region9: #{tpu_custom_call.1} parent=5 // pred_check
        _
      $region10: #{tpu_custom_call.1} parent=5 // pred_check_branch
        %358 = sbr.rel (%p355) target = $region12
      $region11: #{tpu_custom_call.1} parent=5 // pred_region
        %s359 = ssub.s32 %s25, 1
        // Predicated region
        $region13: #{tpu_custom_call.1} parent=11 // pred_check
          %p360 = pneg %p86
        $region14: #{tpu_custom_call.1} parent=11 // pred_check_branch
          %362 = sbr.rel (%p360) target = $region16
        $region15: #{tpu_custom_call.1} parent=11 // pred_region
          %364 = vsyncadd [#allocation9], 0
          %s365 = sshll.u32 %s1, 4
          %s366 = int_to_ptr.hbm [resolvable:$true] %s365
          %s367 = sshll.u32 [#allocation8], 4
          %s368 = int_to_ptr.vmem [resolvable:$true] %s367
          %373 = dma.hbm_to_vmem [thread:$0]  %s366, 512, %s368, [#allocation9], 128, 128, 8
        $region16: #{tpu_custom_call.1} parent=11 // pred_fallthru
          _
        // Predicated region
        $region17: #{tpu_custom_call.1} parent=11 // pred_check
          %p374 = pneg %p107
        $region18: #{tpu_custom_call.1} parent=11 // pred_check_branch
          %376 = sbr.rel (%p374) target = $region20
        $region19: #{tpu_custom_call.1} parent=11 // pred_region
          %378 = vsyncadd [#allocation12], 0
          %s379 = sshll.u32 %s2, 4
          %s380 = int_to_ptr.hbm [resolvable:$true] %s379
          %s381 = sshll.u32 [#allocation11], 4
          %s382 = int_to_ptr.vmem [resolvable:$true] %s381
          %387 = dma.hbm_to_vmem [thread:$0]  %s380, 512, %s382, [#allocation12], 128, 128, 8
        $region20: #{tpu_custom_call.1} parent=11 // pred_fallthru
          _
        // Predicated region
        $region21: #{tpu_custom_call.1} parent=11 // pred_check
          %p388 = pneg %p128
        $region22: #{tpu_custom_call.1} parent=11 // pred_check_branch
          %390 = sbr.rel (%p388) target = $region24
        $region23: #{tpu_custom_call.1} parent=11 // pred_region
          _
        $region24: #{tpu_custom_call.1} parent=11 // pred_fallthru
          _
        // Predicated region
        $region25: #{tpu_custom_call.1} parent=11 // pred_check
          %p391 = pneg %p149
        $region26: #{tpu_custom_call.1} parent=11 // pred_check_branch
          %393 = sbr.rel (%p391) target = $region28
        $region27: #{tpu_custom_call.1} parent=11 // pred_region
          %395 = vsyncadd [#allocation12], 0
          %s397 = sshll.u32 %s4, 4
          %s398 = int_to_ptr.hbm [resolvable:$true] %s397
          %s399 = sshll.u32 [#allocation13], 4
          %s400 = int_to_ptr.vmem [resolvable:$true] %s399
          %402 = dma.hbm_to_vmem [thread:$0]  %s398, 16, %s400, [#allocation12]
        $region28: #{tpu_custom_call.1} parent=11 // pred_fallthru
          _
        // Predicated region
        $region29: #{tpu_custom_call.1} parent=11 // pred_check
          %p403 = pneg %p170
        $region30: #{tpu_custom_call.1} parent=11 // pred_check_branch
          %405 = sbr.rel (%p403) target = $region32
        $region31: #{tpu_custom_call.1} parent=11 // pred_region
          _
        $region32: #{tpu_custom_call.1} parent=11 // pred_fallthru
          _
        // Predicated region
        $region33: #{tpu_custom_call.1} parent=11 // pred_check
          %p406 = pneg %p191
        $region34: #{tpu_custom_call.1} parent=11 // pred_check_branch
          %408 = sbr.rel (%p406) target = $region36
        $region35: #{tpu_custom_call.1} parent=11 // pred_region
          %410 = vsyncadd [#allocation15], 0
          %s412 = sshll.u32 %s6, 4
          %s413 = int_to_ptr.hbm [resolvable:$true] %s412
          %s414 = sshll.u32 [#allocation14], 4
          %s415 = int_to_ptr.vmem [resolvable:$true] %s414
          %417 = dma.hbm_to_vmem [thread:$0]  %s413, 32, %s415, [#allocation15]
        $region36: #{tpu_custom_call.1} parent=11 // pred_fallthru
          _
        // Predicated region
        $region37: #{tpu_custom_call.1} parent=11 // pred_check
          %p418 = pneg %p212
        $region38: #{tpu_custom_call.1} parent=11 // pred_check_branch
          %420 = sbr.rel (%p418) target = $region40
        $region39: #{tpu_custom_call.1} parent=11 // pred_region
          _
        $region40: #{tpu_custom_call.1} parent=11 // pred_fallthru
          _
        // Predicated region
        $region41: #{tpu_custom_call.1} parent=11 // pred_check
          %p421 = pneg %p233
        $region42: #{tpu_custom_call.1} parent=11 // pred_check_branch
          %423 = sbr.rel (%p421) target = $region44
        $region43: #{tpu_custom_call.1} parent=11 // pred_region
          %425 = vsyncadd [#allocation15], 0
          %s426 = sshll.u32 %s8, 4
          %s427 = int_to_ptr.hbm [resolvable:$true] %s426
          %s428 = sshll.u32 [#allocation16], 4
          %s429 = int_to_ptr.vmem [resolvable:$true] %s428
          %434 = dma.hbm_to_vmem [thread:$0]  %s427, 256, %s429, [#allocation15], 128, 128, 8
        $region44: #{tpu_custom_call.1} parent=11 // pred_fallthru
          _
        // Predicated region
        $region45: #{tpu_custom_call.1} parent=11 // pred_check
          %p435 = pneg %p254
        $region46: #{tpu_custom_call.1} parent=11 // pred_check_branch
          %437 = sbr.rel (%p435) target = $region48
        $region47: #{tpu_custom_call.1} parent=11 // pred_region
          _
        $region48: #{tpu_custom_call.1} parent=11 // pred_fallthru
          _
        // Predicated region
        $region49: #{tpu_custom_call.1} parent=11 // pred_check
          %p438 = pneg %p275
        $region50: #{tpu_custom_call.1} parent=11 // pred_check_branch
          %440 = sbr.rel (%p438) target = $region52
        $region51: #{tpu_custom_call.1} parent=11 // pred_region
          _
        $region52: #{tpu_custom_call.1} parent=11 // pred_fallthru
          _
        // Predicated region
        $region53: #{tpu_custom_call.1} parent=11 // pred_check
          %p441 = pneg %p296
        $region54: #{tpu_custom_call.1} parent=11 // pred_check_branch
          %443 = sbr.rel (%p441) target = $region56
        $region55: #{tpu_custom_call.1} parent=11 // pred_region
          _
        $region56: #{tpu_custom_call.1} parent=11 // pred_fallthru
          _
        // Predicated region
        $region57: #{tpu_custom_call.1} parent=11 // pred_check
          %p444 = pneg %p317
        $region58: #{tpu_custom_call.1} parent=11 // pred_check_branch
          %446 = sbr.rel (%p444) target = $region60
        $region59: #{tpu_custom_call.1} parent=11 // pred_region
          _
        $region60: #{tpu_custom_call.1} parent=11 // pred_fallthru
          _
      $region12: #{tpu_custom_call.1} parent=5 // pred_fallthru
        _
      %p447 = scmp.lt.s32.totalorder %s25, 4
      // Predicated region
      $region61: #{tpu_custom_call.1} parent=5 // pred_check
        %p448 = pneg %p447
      $region62: #{tpu_custom_call.1} parent=5 // pred_check_branch
        %450 = sbr.rel (%p448) target = $region64
      $region63: #{tpu_custom_call.1} parent=5 // pred_region
        // Predicated region
        $region65: #{tpu_custom_call.1} parent=63 // pred_check
          %p451 = pneg %p59
        $region66: #{tpu_custom_call.1} parent=63 // pred_check_branch
          %453 = sbr.rel (%p451) target = $region68
        $region67: #{tpu_custom_call.1} parent=63 // pred_region
          %p454 = scmp.lt.s32.totalorder %s32, 1
          %s455 = scalar_select %p454, %s32, 1
          %p456 = scmp.lt.s32.totalorder %s33, 1
          %s457 = scalar_select %p456, %s33, 1
          %s458 = smul.addr %s455, 2
          %s459 = sadd.s32 %s457, %s458
          %s460 = smul.addr %s459, 8
          %s461 = scalar_lea.vmem %s0, %s460
        $region68: #{tpu_custom_call.1} parent=63 // pred_fallthru
          _
      $region64: #{tpu_custom_call.1} parent=5 // pred_fallthru
        _
      %p462 = scmp.le.s32.totalorder 1, %s25
      %p463 = scmp.lt.s32.totalorder %s25, 5
      %p464 = pnand %p462, %p463
      %p465 = pneg %p464
      // Predicated region
      $region69: #{tpu_custom_call.1} parent=5 // pred_check
        _
      $region70: #{tpu_custom_call.1} parent=5 // pred_check_branch
        %467 = sbr.rel (%p464) target = $region72
      $region71: #{tpu_custom_call.1} parent=5 // pred_region
        %s468 = ssub.s32 %s25, 1
        // Predicated region
        $region73: #{tpu_custom_call.1} parent=71 // pred_check
          %p469 = pneg %p86
        $region74: #{tpu_custom_call.1} parent=71 // pred_check_branch
          %471 = sbr.rel (%p469) target = $region76
        $region75: #{tpu_custom_call.1} parent=71 // pred_region
          %473 = dma.done [#allocation9], 512
        $region76: #{tpu_custom_call.1} parent=71 // pred_fallthru
          _
        // Predicated region
        $region77: #{tpu_custom_call.1} parent=71 // pred_check
          %p474 = pneg %p107
        $region78: #{tpu_custom_call.1} parent=71 // pred_check_branch
          %476 = sbr.rel (%p474) target = $region80
        $region79: #{tpu_custom_call.1} parent=71 // pred_region
          %478 = dma.done [#allocation12], 512
        $region80: #{tpu_custom_call.1} parent=71 // pred_fallthru
          _
        // Predicated region
        $region81: #{tpu_custom_call.1} parent=71 // pred_check
          %p479 = pneg %p149
        $region82: #{tpu_custom_call.1} parent=71 // pred_check_branch
          %481 = sbr.rel (%p479) target = $region84
        $region83: #{tpu_custom_call.1} parent=71 // pred_region
          %483 = dma.done [#allocation12], 16
        $region84: #{tpu_custom_call.1} parent=71 // pred_fallthru
          _
        // Predicated region
        $region85: #{tpu_custom_call.1} parent=71 // pred_check
          %p484 = pneg %p191
        $region86: #{tpu_custom_call.1} parent=71 // pred_check_branch
          %486 = sbr.rel (%p484) target = $region88
        $region87: #{tpu_custom_call.1} parent=71 // pred_region
          %488 = dma.done [#allocation15], 32
        $region88: #{tpu_custom_call.1} parent=71 // pred_fallthru
          _
        // Predicated region
        $region89: #{tpu_custom_call.1} parent=71 // pred_check
          %p489 = pneg %p233
        $region90: #{tpu_custom_call.1} parent=71 // pred_check_branch
          %491 = sbr.rel (%p489) target = $region92
        $region91: #{tpu_custom_call.1} parent=71 // pred_region
          %493 = dma.done [#allocation15], 256
        $region92: #{tpu_custom_call.1} parent=71 // pred_fallthru
          _
        %p494 = scmp.lt.s32.totalorder %s34, 1
        %s495 = scalar_select %p494, %s34, 1
        %p496 = scmp.lt.s32.totalorder %s35, 1
        %s497 = scalar_select %p496, %s35, 1
        %s498 = smul.addr %s495, 2
        %s499 = sadd.s32 %s497, %s498
        %s500 = smul.addr %s499, 8
        %s501 = scalar_lea.vmem %s0, %s500
        %p502 = pneg %p65
        %p503 = pneg %p62
        %p504 = pneg %p86
        %p505 = pneg %p83
        %p506 = pneg %p107
        %p507 = pneg %p104
        %p508 = pneg %p128
        %p509 = pneg %p125
        %p510 = pneg %p149
        %p511 = pneg %p146
        %p512 = pneg %p170
        %p513 = pneg %p167
        %p514 = pneg %p191
        %p515 = pneg %p188
        %p516 = pneg %p212
        %p517 = pneg %p209
        %p518 = pneg %p233
        %p519 = pneg %p230
        %p520 = pneg %p254
        %p521 = pneg %p251
        %p522 = pneg %p275
        %p523 = pneg %p272
        %p524 = pneg %p296
        %p525 = pneg %p293
        %p526 = pneg %p317
        %p527 = pneg %p314
        %p528 = pneg %p345
        %p529 = pneg %p342
        %s530 = sand.u32 %s332, 1
        %s531 = scalar_lea.sflag [#allocation10], %s530
        %s532 = sand.u32 %s332, 1
        %s533 = smul.addr %s532, 8
        %s534 = scalar_lea.vmem [#allocation17], %s533
        %p535 = scmp.lt.s32.totalorder %s34, 1
        %s536 = scalar_select %p535, %s34, 1
        %p537 = scmp.lt.s32.totalorder %s35, 1
        %s538 = scalar_select %p537, %s35, 1
        %s539 = smul.addr %s536, 2
        %s540 = sadd.s32 %s538, %s539
        %s541 = smul.addr %s540, 8
        %s542 = scalar_lea.vmem %s0, %s541
        %p543 = scmp.eq.s32.totalorder %s35, 0
        // Predicated region
        $region93: #{tpu_custom_call.1} parent=71 // pred_check
          %p544 = pneg %p543
        $region94: #{tpu_custom_call.1} parent=71 // pred_check_branch
          %546 = sbr.rel (%p544) target = $region96
        $region95: #{tpu_custom_call.1} parent=71 // pred_region
          %vm547 = vcmask 523264
          %548 = vst.msk [vmem:[#allocation2] sm:$0xff] %vm547, 0.0
          %549 = vst.msk [vmem:[#allocation2 + $0x8] sm:$0xff] %vm547, 0.0
          %550 = vst.msk [vmem:[#allocation3] sm:$0xff] %vm547, 0.0
        $region96: #{tpu_custom_call.1} parent=71 // pred_fallthru
          _
        %v551 = vld [vmem:[%s542] sm:$0xff]
        %v552 = vld [vmem:[#allocation8] sm:$0xff]
        %v553 = vld [vmem:[#allocation8 + $0x8] sm:$0xff]
        %v554 = vld [vmem:[#allocation8 + $0x10] sm:$0xff]
        %v555 = vld [vmem:[#allocation8 + $0x18] sm:$0xff]
        %vm556 = vcmask 261120
        %v558 = vsel %vm556, %v551, 0
        %560 = vmatpush.msra.mxu0 0.0
        %561 = vmatpush.msra.mxu0 0.0
        %562 = vmatpush.msra.mxu0 0.0
        %563 = vmatpush.msra.mxu0 0.0
        %564 = vmatpush.msra.mxu0 0.0
        %565 = vmatpush.msra.mxu0 0.0
        %566 = vmatpush.msra.mxu0 0.0
        %567 = vmatpush.msra.mxu0 0.0
        %568 = vmatpush.msra.mxu0 0.0
        %569 = vmatpush.msra.mxu0 0.0
        %570 = vmatpush.msra.mxu0 0.0
        %571 = vmatpush.msra.mxu0 0.0
        %572 = vmatpush.msra.mxu0 %v555
        %573 = vmatpush.msra.mxu0 %v554
        %574 = vmatpush.msra.mxu0 %v553
        %575 = vmatpush.msra.mxu0 %v552
        %576 = vmatmul.f32.gmra.mxu0 %v558
        %v577 = vpop.f32.mrf.mxu0
        %v578 = vadd.f32 0.0, %v577
        %579 = vdwg.mxu0
        %v580 = vld [vmem:[#allocation11] sm:$0xff]
        %v581 = vld [vmem:[#allocation11 + $0x8] sm:$0xff]
        %v582 = vld [vmem:[#allocation11 + $0x10] sm:$0xff]
        %v583 = vld [vmem:[#allocation11 + $0x18] sm:$0xff]
        %584 = vmatpush.msra.mxu0 0.0
        %585 = vmatpush.msra.mxu0 0.0
        %586 = vmatpush.msra.mxu0 0.0
        %587 = vmatpush.msra.mxu0 0.0
        %588 = vmatpush.msra.mxu0 0.0
        %589 = vmatpush.msra.mxu0 0.0
        %590 = vmatpush.msra.mxu0 0.0
        %591 = vmatpush.msra.mxu0 0.0
        %592 = vmatpush.msra.mxu0 0.0
        %593 = vmatpush.msra.mxu0 0.0
        %594 = vmatpush.msra.mxu0 0.0
        %595 = vmatpush.msra.mxu0 0.0
        %596 = vmatpush.msra.mxu0 %v583
        %597 = vmatpush.msra.mxu0 %v582
        %598 = vmatpush.msra.mxu0 %v581
        %599 = vmatpush.msra.mxu0 %v580
        %600 = vmatmul.f32.gmra.mxu0 %v558
        %v601 = vpop.f32.mrf.mxu0
        %v602 = vadd.f32 0.0, %v601
        %603 = vdwg.mxu0
        %vm604 = vcmask 523264
        %605 = vst.msk [vmem:[#allocation3 + $0x8] sm:$0xff] %vm604, %v578
        %v606 = vld [vmem:[%s3] sm:$0xf]
        %v607 = vperm.slane %v606, 3
        %v608 = vmul.f32 %v578, %v607
        %v609 = vld [vmem:[#allocation3 + $0x5] sm:$0xff]
        %v610 = vperm.slane %v606, 0
        %v611 = vmul.f32 %v609, %v610
        %v612 = vadd.f32 %v608, %v611
        %v613 = vld [vmem:[#allocation3 + $0x6] sm:$0xff]
        %v614 = vperm.slane %v606, 1
        %v615 = vmul.f32 %v613, %v614
        %v616 = vadd.f32 %v612, %v615
        %v617 = vld [vmem:[#allocation3 + $0x7] sm:$0xff]
        %v618 = vperm.slane %v606, 2
        %v619 = vmul.f32 %v617, %v618
        %v620 = vadd.f32 %v616, %v619
        %vm621 = vcmask 523269
        %622 = vst.msk [vmem:[#allocation3] sm:$0xe0] %vm621, %v578
        %v623 = vld [vmem:[#allocation13] sm:$0x1]
        %v625 = vperm.slane %v623, 0
        %v627 = vadd.f32 %v620, %v625
        %v628 = vxor.u32 %v627, 2147483648
        %v629 = vmul.f32 %v628, 1.442695
        %v630 = vpow.pop %v629
        %v631 = vadd.f32 %v630, 1.0
        %v632 = vrcp.pop %v631
        %v633 = vmul.f32 %v631, %v632
        %v634 = vsub.f32 1.0, %v633
        %v635 = vmul.f32 %v632, %v634
        %v636 = vadd.f32 %v632, %v635
        %vm637 = vweird.f32 %v631
        %vm638 = vweird.f32 %v632
        %vm639 = vmor %vm637, %vm638
        %v640 = vsel %vm639, %v632, %v636
        %v641 = vand.u32 2147483647, %v631
        %vm642 = vcmp.eq.f32.partialorder %v641, 8.507059e+37
        %v643 = vand.u32 %v631, 2147483648
        %v644 = vor.u32 1.1754944e-38, %v643
        %v645 = vsel %vm642, %v644, %v640
        %v646 = vmul.f32 1.0, %v645
        %v647 = vmul.f32 %v627, %v646
        %v648 = vld [vmem:[%s5] sm:$0xff]
        %v649 = vld [vmem:[%s5 + $0x8] sm:$0xff]
        %v650 = vld [vmem:[%s5 + $0x10] sm:$0xff]
        %v651 = vld [vmem:[%s5 + $0x18] sm:$0xff]
        %v652 = vld [vmem:[%s5 + $0x20] sm:$0xff]
        %v653 = vld [vmem:[%s5 + $0x28] sm:$0xff]
        %v654 = vld [vmem:[%s5 + $0x30] sm:$0xff]
        %v655 = vld [vmem:[%s5 + $0x38] sm:$0xff]
        %v657 = vsel %vm604, %v647, 0
        %659 = vmatpush.msra.mxu0 0.0
        %660 = vmatpush.msra.mxu0 0.0
        %661 = vmatpush.msra.mxu0 0.0
        %662 = vmatpush.msra.mxu0 0.0
        %663 = vmatpush.msra.mxu0 0.0
        %664 = vmatpush.msra.mxu0 0.0
        %665 = vmatpush.msra.mxu0 0.0
        %666 = vmatpush.msra.mxu0 0.0
        %667 = vmatpush.msra.mxu0 %v655
        %668 = vmatpush.msra.mxu0 %v654
        %669 = vmatpush.msra.mxu0 %v653
        %670 = vmatpush.msra.mxu0 %v652
        %671 = vmatpush.msra.mxu0 %v651
        %672 = vmatpush.msra.mxu0 %v650
        %673 = vmatpush.msra.mxu0 %v649
        %674 = vmatpush.msra.mxu0 %v648
        %675 = vmatmul.f32.gmra.mxu0 %v657
        %v676 = vpop.f32.mrf.mxu0
        %v677 = vadd.f32 0.0, %v676
        %678 = vdwg.mxu0
        %v679 = vld [vmem:[#allocation14] sm:$0x3]
        %681 = vset.pattern.permute.xlu0 0
        %682 = vperm.xlu0 %681, %v677
        %v683 = vpop.permute.xlu0 %682
        %v685 = vperm.slane %v679, 0
        %v686 = vmul.f32 %v683, %v685
        %v687 = vadd.f32 %v686, 0.0
        %688 = vset.pattern.permute.xlu0 1
        %689 = vperm.xlu0 %688, %v677
        %v690 = vpop.permute.xlu0 %689
        %v692 = vperm.slane %v679, 1
        %v693 = vmul.f32 %v690, %v692
        %v694 = vadd.f32 %v687, %v693
        %v695 = vld [vmem:[%s7] sm:$0x1]
        %v697 = vperm.slane %v695, 0
        %v699 = vadd.f32 %v694, %v697
        %vm700 = vcmp.gt.f32.partialorder %v699, 20.0
        %v701 = vmin.f32 %v699, 20.0
        %v702 = vmul.f32 %v701, 1.442695
        %v703 = vpow.pop %v702
        %v704 = vadd.f32 %v703, 1.0
        %v705 = vlog2.pop %v704
        %v706 = vmul.f32 %v705, 0.6931472
        %v707 = vmul.f32 -0.5, %v703
        %v708 = vadd.f32 %v707, 1.0
        %v709 = vmul.f32 %v708, %v703
        %v710 = vand.u32 2147483647, %v703
        %vm711 = vcmp.lt.f32.partialorder %v710, 0.0004427343
        %v712 = vsel %vm711, %v709, %v706
        %v713 = vsel %vm700, %v699, %v712
        %v714 = vld [vmem:[#allocation16] sm:$0xff]
        %v715 = vld [vmem:[#allocation16 + $0x8] sm:$0xff]
        %v717 = vrot.slane %v713, 1
        %v718 = vrot.slane %v713, 2
        %v719 = vrot.slane %v713, 3
        %v720 = vrot.slane %v713, 4
        %v721 = vrot.slane %v713, 5
        %v722 = vrot.slane %v713, 6
        %v723 = vrot.slane %v713, 7
        %v724 = vperm.slane %v713, 0
        %v725 = vperm.slane %v717, 0
        %v726 = vperm.slane %v718, 0
        %v727 = vperm.slane %v719, 0
        %v728 = vperm.slane %v720, 0
        %v729 = vperm.slane %v721, 0
        %v730 = vperm.slane %v722, 0
        %v731 = vperm.slane %v723, 0
        %v740 = vmul.f32 %v724, %v714
        %v741 = vmul.f32 %v724, %v715
        %v742 = vmul.f32 %v725, %v714
        %v743 = vmul.f32 %v725, %v715
        %v744 = vmul.f32 %v726, %v714
        %v745 = vmul.f32 %v726, %v715
        %v746 = vmul.f32 %v727, %v714
        %v747 = vmul.f32 %v727, %v715
        %v748 = vmul.f32 %v728, %v714
        %v749 = vmul.f32 %v728, %v715
        %v750 = vmul.f32 %v729, %v714
        %v751 = vmul.f32 %v729, %v715
        %v752 = vmul.f32 %v730, %v714
        %v753 = vmul.f32 %v730, %v715
        %v754 = vmul.f32 %v731, %v714
        %v755 = vmul.f32 %v731, %v715
        %v756 = vmul.f32 %v740, 1.442695
        %v757 = vpow.pop %v756
        %v758 = vmul.f32 %v741, 1.442695
        %v759 = vpow.pop %v758
        %v760 = vmul.f32 %v742, 1.442695
        %v761 = vpow.pop %v760
        %v762 = vmul.f32 %v743, 1.442695
        %v763 = vpow.pop %v762
        %v764 = vmul.f32 %v744, 1.442695
        %v765 = vpow.pop %v764
        %v766 = vmul.f32 %v745, 1.442695
        %v767 = vpow.pop %v766
        %v768 = vmul.f32 %v746, 1.442695
        %v769 = vpow.pop %v768
        %v770 = vmul.f32 %v747, 1.442695
        %v771 = vpow.pop %v770
        %v772 = vmul.f32 %v748, 1.442695
        %v773 = vpow.pop %v772
        %v774 = vmul.f32 %v749, 1.442695
        %v775 = vpow.pop %v774
        %v776 = vmul.f32 %v750, 1.442695
        %v777 = vpow.pop %v776
        %v778 = vmul.f32 %v751, 1.442695
        %v779 = vpow.pop %v778
        %v780 = vmul.f32 %v752, 1.442695
        %v781 = vpow.pop %v780
        %v782 = vmul.f32 %v753, 1.442695
        %v783 = vpow.pop %v782
        %v784 = vmul.f32 %v754, 1.442695
        %v785 = vpow.pop %v784
        %v786 = vmul.f32 %v755, 1.442695
        %v787 = vpow.pop %v786
        %788 = vst.msk [vmem:[#allocation4] sm:$0xff] %vm604, %v757
        %789 = vst.msk [vmem:[#allocation4 + $0x8] sm:$0xff] %vm604, %v759
        %790 = vst.msk [vmem:[#allocation4 + $0x10] sm:$0xff] %vm604, %v761
        %791 = vst.msk [vmem:[#allocation4 + $0x18] sm:$0xff] %vm604, %v763
        %792 = vst.msk [vmem:[#allocation4 + $0x20] sm:$0xff] %vm604, %v765
        %793 = vst.msk [vmem:[#allocation4 + $0x28] sm:$0xff] %vm604, %v767
        %794 = vst.msk [vmem:[#allocation4 + $0x30] sm:$0xff] %vm604, %v769
        %795 = vst.msk [vmem:[#allocation4 + $0x38] sm:$0xff] %vm604, %v771
        %796 = vst.msk [vmem:[#allocation4 + $0x40] sm:$0xff] %vm604, %v773
        %797 = vst.msk [vmem:[#allocation4 + $0x48] sm:$0xff] %vm604, %v775
        %798 = vst.msk [vmem:[#allocation4 + $0x50] sm:$0xff] %vm604, %v777
        %799 = vst.msk [vmem:[#allocation4 + $0x58] sm:$0xff] %vm604, %v779
        %800 = vst.msk [vmem:[#allocation4 + $0x60] sm:$0xff] %vm604, %v781
        %801 = vst.msk [vmem:[#allocation4 + $0x68] sm:$0xff] %vm604, %v783
        %802 = vst.msk [vmem:[#allocation4 + $0x70] sm:$0xff] %vm604, %v785
        %803 = vst.msk [vmem:[#allocation4 + $0x78] sm:$0xff] %vm604, %v787
        %v804 = vmul.f32 %v713, %v647
        %v806 = vrot.slane %v804, 1
        %v807 = vrot.slane %v804, 2
        %v808 = vrot.slane %v804, 3
        %v809 = vrot.slane %v804, 4
        %v810 = vrot.slane %v804, 5
        %v811 = vrot.slane %v804, 6
        %v812 = vrot.slane %v804, 7
        %v813 = vperm.slane %v677, 0
        %v814 = vlaneseq
        %v815 = vshrl.u32 %v814, 7
        %v816 = vadd.s32 %v815, 2
        %817 = vset.pattern.permute.xlu0 %v816
        %818 = vperm.xlu0 %817, %v813
        %v819 = vpop.permute.xlu0 %818
        %v820 = vlaneseq
        %v821 = vshrl.u32 %v820, 7
        %v822 = vadd.s32 %v821, 10
        %823 = vset.pattern.permute.xlu0 %v822
        %824 = vperm.xlu0 %823, %v813
        %v825 = vpop.permute.xlu0 %824
        %v826 = vperm.slane %v677, 1
        %v827 = vlaneseq
        %v828 = vshrl.u32 %v827, 7
        %v829 = vadd.s32 %v828, 2
        %830 = vset.pattern.permute.xlu0 %v829
        %831 = vperm.xlu0 %830, %v826
        %v832 = vpop.permute.xlu0 %831
        %v833 = vlaneseq
        %v834 = vshrl.u32 %v833, 7
        %v835 = vadd.s32 %v834, 10
        %836 = vset.pattern.permute.xlu0 %v835
        %837 = vperm.xlu0 %836, %v826
        %v838 = vpop.permute.xlu0 %837
        %v839 = vperm.slane %v677, 2
        %v840 = vlaneseq
        %v841 = vshrl.u32 %v840, 7
        %v842 = vadd.s32 %v841, 2
        %843 = vset.pattern.permute.xlu0 %v842
        %844 = vperm.xlu0 %843, %v839
        %v845 = vpop.permute.xlu0 %844
        %v846 = vlaneseq
        %v847 = vshrl.u32 %v846, 7
        %v848 = vadd.s32 %v847, 10
        %849 = vset.pattern.permute.xlu0 %v848
        %850 = vperm.xlu0 %849, %v839
        %v851 = vpop.permute.xlu0 %850
        %v852 = vperm.slane %v677, 3
        %v853 = vlaneseq
        %v854 = vshrl.u32 %v853, 7
        %v855 = vadd.s32 %v854, 2
        %856 = vset.pattern.permute.xlu0 %v855
        %857 = vperm.xlu0 %856, %v852
        %v858 = vpop.permute.xlu0 %857
        %v859 = vlaneseq
        %v860 = vshrl.u32 %v859, 7
        %v861 = vadd.s32 %v860, 10
        %862 = vset.pattern.permute.xlu0 %v861
        %863 = vperm.xlu0 %862, %v852
        %v864 = vpop.permute.xlu0 %863
        %v865 = vperm.slane %v677, 4
        %v866 = vlaneseq
        %v867 = vshrl.u32 %v866, 7
        %v868 = vadd.s32 %v867, 2
        %869 = vset.pattern.permute.xlu0 %v868
        %870 = vperm.xlu0 %869, %v865
        %v871 = vpop.permute.xlu0 %870
        %v872 = vlaneseq
        %v873 = vshrl.u32 %v872, 7
        %v874 = vadd.s32 %v873, 10
        %875 = vset.pattern.permute.xlu0 %v874
        %876 = vperm.xlu0 %875, %v865
        %v877 = vpop.permute.xlu0 %876
        %v878 = vperm.slane %v677, 5
        %v879 = vlaneseq
        %v880 = vshrl.u32 %v879, 7
        %v881 = vadd.s32 %v880, 2
        %882 = vset.pattern.permute.xlu0 %v881
        %883 = vperm.xlu0 %882, %v878
        %v884 = vpop.permute.xlu0 %883
        %v885 = vlaneseq
        %v886 = vshrl.u32 %v885, 7
        %v887 = vadd.s32 %v886, 10
        %888 = vset.pattern.permute.xlu0 %v887
        %889 = vperm.xlu0 %888, %v878
        %v890 = vpop.permute.xlu0 %889
        %v891 = vperm.slane %v677, 6
        %v892 = vlaneseq
        %v893 = vshrl.u32 %v892, 7
        %v894 = vadd.s32 %v893, 2
        %895 = vset.pattern.permute.xlu0 %v894
        %896 = vperm.xlu0 %895, %v891
        %v897 = vpop.permute.xlu0 %896
        %v898 = vlaneseq
        %v899 = vshrl.u32 %v898, 7
        %v900 = vadd.s32 %v899, 10
        %901 = vset.pattern.permute.xlu0 %v900
        %902 = vperm.xlu0 %901, %v891
        %v903 = vpop.permute.xlu0 %902
        %v904 = vperm.slane %v677, 7
        %v905 = vlaneseq
        %v906 = vshrl.u32 %v905, 7
        %v907 = vadd.s32 %v906, 2
        %908 = vset.pattern.permute.xlu0 %v907
        %909 = vperm.xlu0 %908, %v904
        %v910 = vpop.permute.xlu0 %909
        %v911 = vlaneseq
        %v912 = vshrl.u32 %v911, 7
        %v913 = vadd.s32 %v912, 10
        %914 = vset.pattern.permute.xlu0 %v913
        %915 = vperm.xlu0 %914, %v904
        %v916 = vpop.permute.xlu0 %915
        %v917 = vperm.slane %v804, 0
        %v918 = vperm.slane %v806, 0
        %v919 = vperm.slane %v807, 0
        %v920 = vperm.slane %v808, 0
        %v921 = vperm.slane %v809, 0
        %v922 = vperm.slane %v810, 0
        %v923 = vperm.slane %v811, 0
        %v924 = vperm.slane %v812, 0
        %v933 = vmul.f32 %v917, %v819
        %v934 = vmul.f32 %v917, %v825
        %v935 = vmul.f32 %v918, %v832
        %v936 = vmul.f32 %v918, %v838
        %v937 = vmul.f32 %v919, %v845
        %v938 = vmul.f32 %v919, %v851
        %v939 = vmul.f32 %v920, %v858
        %v940 = vmul.f32 %v920, %v864
        %v941 = vmul.f32 %v921, %v871
        %v942 = vmul.f32 %v921, %v877
        %v943 = vmul.f32 %v922, %v884
        %v944 = vmul.f32 %v922, %v890
        %v945 = vmul.f32 %v923, %v897
        %v946 = vmul.f32 %v923, %v903
        %v947 = vmul.f32 %v924, %v910
        %v948 = vmul.f32 %v924, %v916
        %949 = vst.msk [vmem:[#allocation5] sm:$0xff] %vm604, %v933
        %950 = vst.msk [vmem:[#allocation5 + $0x8] sm:$0xff] %vm604, %v934
        %951 = vst.msk [vmem:[#allocation5 + $0x10] sm:$0xff] %vm604, %v935
        %952 = vst.msk [vmem:[#allocation5 + $0x18] sm:$0xff] %vm604, %v936
        %953 = vst.msk [vmem:[#allocation5 + $0x20] sm:$0xff] %vm604, %v937
        %954 = vst.msk [vmem:[#allocation5 + $0x28] sm:$0xff] %vm604, %v938
        %955 = vst.msk [vmem:[#allocation5 + $0x30] sm:$0xff] %vm604, %v939
        %956 = vst.msk [vmem:[#allocation5 + $0x38] sm:$0xff] %vm604, %v940
        %957 = vst.msk [vmem:[#allocation5 + $0x40] sm:$0xff] %vm604, %v941
        %958 = vst.msk [vmem:[#allocation5 + $0x48] sm:$0xff] %vm604, %v942
        %959 = vst.msk [vmem:[#allocation5 + $0x50] sm:$0xff] %vm604, %v943
        %960 = vst.msk [vmem:[#allocation5 + $0x58] sm:$0xff] %vm604, %v944
        %961 = vst.msk [vmem:[#allocation5 + $0x60] sm:$0xff] %vm604, %v945
        %962 = vst.msk [vmem:[#allocation5 + $0x68] sm:$0xff] %vm604, %v946
        %963 = vst.msk [vmem:[#allocation5 + $0x70] sm:$0xff] %vm604, %v947
        %964 = vst.msk [vmem:[#allocation5 + $0x78] sm:$0xff] %vm604, %v948
        %v965 = vlaneseq
        %v966 = vshrl.u32 %v965, 7
        %v967 = vadd.s32 %v966, 18
        %968 = vset.pattern.permute.xlu0 %v967
        %969 = vperm.xlu0 %968, %v813
        %v970 = vpop.permute.xlu0 %969
        %v971 = vlaneseq
        %v972 = vshrl.u32 %v971, 7
        %v973 = vadd.s32 %v972, 26
        %974 = vset.pattern.permute.xlu0 %v973
        %975 = vperm.xlu0 %974, %v813
        %v976 = vpop.permute.xlu0 %975
        %v977 = vlaneseq
        %v978 = vshrl.u32 %v977, 7
        %v979 = vadd.s32 %v978, 18
        %980 = vset.pattern.permute.xlu0 %v979
        %981 = vperm.xlu0 %980, %v826
        %v982 = vpop.permute.xlu0 %981
        %v983 = vlaneseq
        %v984 = vshrl.u32 %v983, 7
        %v985 = vadd.s32 %v984, 26
        %986 = vset.pattern.permute.xlu0 %v985
        %987 = vperm.xlu0 %986, %v826
        %v988 = vpop.permute.xlu0 %987
        %v989 = vlaneseq
        %v990 = vshrl.u32 %v989, 7
        %v991 = vadd.s32 %v990, 18
        %992 = vset.pattern.permute.xlu0 %v991
        %993 = vperm.xlu0 %992, %v839
        %v994 = vpop.permute.xlu0 %993
        %v995 = vlaneseq
        %v996 = vshrl.u32 %v995, 7
        %v997 = vadd.s32 %v996, 26
        %998 = vset.pattern.permute.xlu0 %v997
        %999 = vperm.xlu0 %998, %v839
        %v1000 = vpop.permute.xlu0 %999
        %v1001 = vlaneseq
        %v1002 = vshrl.u32 %v1001, 7
        %v1003 = vadd.s32 %v1002, 18
        %1004 = vset.pattern.permute.xlu0 %v1003
        %1005 = vperm.xlu0 %1004, %v852
        %v1006 = vpop.permute.xlu0 %1005
        %v1007 = vlaneseq
        %v1008 = vshrl.u32 %v1007, 7
        %v1009 = vadd.s32 %v1008, 26
        %1010 = vset.pattern.permute.xlu0 %v1009
        %1011 = vperm.xlu0 %1010, %v852
        %v1012 = vpop.permute.xlu0 %1011
        %v1013 = vlaneseq
        %v1014 = vshrl.u32 %v1013, 7
        %v1015 = vadd.s32 %v1014, 18
        %1016 = vset.pattern.permute.xlu0 %v1015
        %1017 = vperm.xlu0 %1016, %v865
        %v1018 = vpop.permute.xlu0 %1017
        %v1019 = vlaneseq
        %v1020 = vshrl.u32 %v1019, 7
        %v1021 = vadd.s32 %v1020, 26
        %1022 = vset.pattern.permute.xlu0 %v1021
        %1023 = vperm.xlu0 %1022, %v865
        %v1024 = vpop.permute.xlu0 %1023
        %v1025 = vlaneseq
        %v1026 = vshrl.u32 %v1025, 7
        %v1027 = vadd.s32 %v1026, 18
        %1028 = vset.pattern.permute.xlu0 %v1027
        %1029 = vperm.xlu0 %1028, %v878
        %v1030 = vpop.permute.xlu0 %1029
        %v1031 = vlaneseq
        %v1032 = vshrl.u32 %v1031, 7
        %v1033 = vadd.s32 %v1032, 26
        %1034 = vset.pattern.permute.xlu0 %v1033
        %1035 = vperm.xlu0 %1034, %v878
        %v1036 = vpop.permute.xlu0 %1035
        %v1037 = vlaneseq
        %v1038 = vshrl.u32 %v1037, 7
        %v1039 = vadd.s32 %v1038, 18
        %1040 = vset.pattern.permute.xlu0 %v1039
        %1041 = vperm.xlu0 %1040, %v891
        %v1042 = vpop.permute.xlu0 %1041
        %v1043 = vlaneseq
        %v1044 = vshrl.u32 %v1043, 7
        %v1045 = vadd.s32 %v1044, 26
        %1046 = vset.pattern.permute.xlu0 %v1045
        %1047 = vperm.xlu0 %1046, %v891
        %v1048 = vpop.permute.xlu0 %1047
        %v1049 = vlaneseq
        %v1050 = vshrl.u32 %v1049, 7
        %v1051 = vadd.s32 %v1050, 18
        %1052 = vset.pattern.permute.xlu0 %v1051
        %1053 = vperm.xlu0 %1052, %v904
        %v1054 = vpop.permute.xlu0 %1053
        %v1055 = vlaneseq
        %v1056 = vshrl.u32 %v1055, 7
        %v1057 = vadd.s32 %v1056, 26
        %1058 = vset.pattern.permute.xlu0 %v1057
        %1059 = vperm.xlu0 %1058, %v904
        %v1060 = vpop.permute.xlu0 %1059
        %vm1061 = vcmask 7168
        %1062 = vst.msk [vmem:[#allocation6] sm:$0xff] %vm1061, %v970
        %1063 = vst.msk [vmem:[#allocation6 + $0x8] sm:$0xff] %vm1061, %v976
        %1064 = vst.msk [vmem:[#allocation6 + $0x10] sm:$0xff] %vm1061, %v982
        %1065 = vst.msk [vmem:[#allocation6 + $0x18] sm:$0xff] %vm1061, %v988
        %1066 = vst.msk [vmem:[#allocation6 + $0x20] sm:$0xff] %vm1061, %v994
        %1067 = vst.msk [vmem:[#allocation6 + $0x28] sm:$0xff] %vm1061, %v1000
        %1068 = vst.msk [vmem:[#allocation6 + $0x30] sm:$0xff] %vm1061, %v1006
        %1069 = vst.msk [vmem:[#allocation6 + $0x38] sm:$0xff] %vm1061, %v1012
        %1070 = vst.msk [vmem:[#allocation6 + $0x40] sm:$0xff] %vm1061, %v1018
        %1071 = vst.msk [vmem:[#allocation6 + $0x48] sm:$0xff] %vm1061, %v1024
        %1072 = vst.msk [vmem:[#allocation6 + $0x50] sm:$0xff] %vm1061, %v1030
        %1073 = vst.msk [vmem:[#allocation6 + $0x58] sm:$0xff] %vm1061, %v1036
        %1074 = vst.msk [vmem:[#allocation6 + $0x60] sm:$0xff] %vm1061, %v1042
        %1075 = vst.msk [vmem:[#allocation6 + $0x68] sm:$0xff] %vm1061, %v1048
        %1076 = vst.msk [vmem:[#allocation6 + $0x70] sm:$0xff] %vm1061, %v1054
        %1077 = vst.msk [vmem:[#allocation6 + $0x78] sm:$0xff] %vm1061, %v1060
        %v1078 = vld [vmem:[#allocation2] sm:$0xff]
        %v1079 = vld [vmem:[#allocation2 + $0x8] sm:$0xff]
        %v1080 = vld [vmem:[#allocation4] sm:$0xff]
        %v1081 = vld [vmem:[#allocation4 + $0x8] sm:$0xff]
        %v1082 = vmul.f32 %v1080, %v1078
        %v1083 = vmul.f32 %v1081, %v1079
        %v1084 = vld [vmem:[#allocation5] sm:$0xff]
        %v1085 = vld [vmem:[#allocation5 + $0x8] sm:$0xff]
        %v1086 = vadd.f32 %v1082, %v1084
        %v1087 = vadd.f32 %v1083, %v1085
        %v1088 = vld [vmem:[#allocation6] sm:$0xff]
        %v1089 = vld [vmem:[#allocation6 + $0x8] sm:$0xff]
        %1091 = vset.pattern.permute.xlu0 0
        %1092 = vperm.xlu0 %1091, %v1088
        %v1093 = vpop.permute.xlu0 %1092
        %1096 = vset.pattern.permute.xlu0 0
        %1097 = vperm.xlu0 %1096, %v1089
        %v1098 = vpop.permute.xlu0 %1097
        %v1100 = vmul.f32 %v1086, %v1093
        %v1101 = vmul.f32 %v1087, %v1098
        %v1102 = vsel %vm604, %v1100, 0.0
        %v1103 = vsel %vm604, %v1101, 0.0
        %v1104 = vadd.f32 %v1102, %v1103
        %v1105 = vrot.slane %v1104, 4
        %v1106 = vadd.f32 %v1104, %v1105
        %v1107 = vrot.slane %v1106, 2
        %v1108 = vadd.f32 %v1106, %v1107
        %v1109 = vrot.slane %v1108, 1
        %v1110 = vadd.f32 %v1108, %v1109
        %vm1111 = vcmask 516096
        %1112 = vst.msk [vmem:[#allocation7] sm:$0x1] %vm1111, %v1110
        %s1113 = scalar_lea.vmem [#allocation4], 16
        %v1114 = vld [vmem:[%s1113] sm:$0xff]
        %v1115 = vld [vmem:[%s1113 + $0x8] sm:$0xff]
        %v1116 = vmul.f32 %v1114, %v1086
        %v1117 = vmul.f32 %v1115, %v1087
        %s1118 = scalar_lea.vmem [#allocation5], 16
        %v1119 = vld [vmem:[%s1118] sm:$0xff]
        %v1120 = vld [vmem:[%s1118 + $0x8] sm:$0xff]
        %v1121 = vadd.f32 %v1116, %v1119
        %v1122 = vadd.f32 %v1117, %v1120
        %s1123 = scalar_lea.vmem [#allocation6], 16
        %v1124 = vld [vmem:[%s1123] sm:$0xff]
        %v1125 = vld [vmem:[%s1123 + $0x8] sm:$0xff]
        %1127 = vset.pattern.permute.xlu0 0
        %1128 = vperm.xlu0 %1127, %v1124
        %v1129 = vpop.permute.xlu0 %1128
        %1132 = vset.pattern.permute.xlu0 0
        %1133 = vperm.xlu0 %1132, %v1125
        %v1134 = vpop.permute.xlu0 %1133
        %v1136 = vmul.f32 %v1121, %v1129
        %v1137 = vmul.f32 %v1122, %v1134
        %v1138 = vsel %vm604, %v1136, 0.0
        %v1139 = vsel %vm604, %v1137, 0.0
        %v1140 = vadd.f32 %v1138, %v1139
        %v1141 = vrot.slane %v1140, 4
        %v1142 = vadd.f32 %v1140, %v1141
        %v1143 = vrot.slane %v1142, 2
        %v1144 = vadd.f32 %v1142, %v1143
        %v1145 = vrot.slane %v1144, 1
        %v1146 = vadd.f32 %v1144, %v1145
        %1147 = vst.msk [vmem:[#allocation7 + $0x1] sm:$0x1] %vm1111, %v1146
        %s1148 = scalar_lea.vmem [#allocation4], 32
        %v1149 = vld [vmem:[%s1148] sm:$0xff]
        %v1150 = vld [vmem:[%s1148 + $0x8] sm:$0xff]
        %v1151 = vmul.f32 %v1149, %v1121
        %v1152 = vmul.f32 %v1150, %v1122
        %s1153 = scalar_lea.vmem [#allocation5], 32
        %v1154 = vld [vmem:[%s1153] sm:$0xff]
        %v1155 = vld [vmem:[%s1153 + $0x8] sm:$0xff]
        %v1156 = vadd.f32 %v1151, %v1154
        %v1157 = vadd.f32 %v1152, %v1155
        %s1158 = scalar_lea.vmem [#allocation6], 32
        %v1159 = vld [vmem:[%s1158] sm:$0xff]
        %v1160 = vld [vmem:[%s1158 + $0x8] sm:$0xff]
        %1162 = vset.pattern.permute.xlu0 0
        %1163 = vperm.xlu0 %1162, %v1159
        %v1164 = vpop.permute.xlu0 %1163
        %1167 = vset.pattern.permute.xlu0 0
        %1168 = vperm.xlu0 %1167, %v1160
        %v1169 = vpop.permute.xlu0 %1168
        %v1171 = vmul.f32 %v1156, %v1164
        %v1172 = vmul.f32 %v1157, %v1169
        %v1173 = vsel %vm604, %v1171, 0.0
        %v1174 = vsel %vm604, %v1172, 0.0
        %v1175 = vadd.f32 %v1173, %v1174
        %v1176 = vrot.slane %v1175, 4
        %v1177 = vadd.f32 %v1175, %v1176
        %v1178 = vrot.slane %v1177, 2
        %v1179 = vadd.f32 %v1177, %v1178
        %v1180 = vrot.slane %v1179, 1
        %v1181 = vadd.f32 %v1179, %v1180
        %1182 = vst.msk [vmem:[#allocation7 + $0x2] sm:$0x1] %vm1111, %v1181
        %s1183 = scalar_lea.vmem [#allocation4], 48
        %v1184 = vld [vmem:[%s1183] sm:$0xff]
        %v1185 = vld [vmem:[%s1183 + $0x8] sm:$0xff]
        %v1186 = vmul.f32 %v1184, %v1156
        %v1187 = vmul.f32 %v1185, %v1157
        %s1188 = scalar_lea.vmem [#allocation5], 48
        %v1189 = vld [vmem:[%s1188] sm:$0xff]
        %v1190 = vld [vmem:[%s1188 + $0x8] sm:$0xff]
        %v1191 = vadd.f32 %v1186, %v1189
        %v1192 = vadd.f32 %v1187, %v1190
        %s1193 = scalar_lea.vmem [#allocation6], 48
        %v1194 = vld [vmem:[%s1193] sm:$0xff]
        %v1195 = vld [vmem:[%s1193 + $0x8] sm:$0xff]
        %1197 = vset.pattern.permute.xlu0 0
        %1198 = vperm.xlu0 %1197, %v1194
        %v1199 = vpop.permute.xlu0 %1198
        %1202 = vset.pattern.permute.xlu0 0
        %1203 = vperm.xlu0 %1202, %v1195
        %v1204 = vpop.permute.xlu0 %1203
        %v1206 = vmul.f32 %v1191, %v1199
        %v1207 = vmul.f32 %v1192, %v1204
        %v1208 = vsel %vm604, %v1206, 0.0
        %v1209 = vsel %vm604, %v1207, 0.0
        %v1210 = vadd.f32 %v1208, %v1209
        %v1211 = vrot.slane %v1210, 4
        %v1212 = vadd.f32 %v1210, %v1211
        %v1213 = vrot.slane %v1212, 2
        %v1214 = vadd.f32 %v1212, %v1213
        %v1215 = vrot.slane %v1214, 1
        %v1216 = vadd.f32 %v1214, %v1215
        %1217 = vst.msk [vmem:[#allocation7 + $0x3] sm:$0x1] %vm1111, %v1216
        %s1218 = scalar_lea.vmem [#allocation4], 64
        %v1219 = vld [vmem:[%s1218] sm:$0xff]
        %v1220 = vld [vmem:[%s1218 + $0x8] sm:$0xff]
        %v1221 = vmul.f32 %v1219, %v1191
        %v1222 = vmul.f32 %v1220, %v1192
        %s1223 = scalar_lea.vmem [#allocation5], 64
        %v1224 = vld [vmem:[%s1223] sm:$0xff]
        %v1225 = vld [vmem:[%s1223 + $0x8] sm:$0xff]
        %v1226 = vadd.f32 %v1221, %v1224
        %v1227 = vadd.f32 %v1222, %v1225
        %s1228 = scalar_lea.vmem [#allocation6], 64
        %v1229 = vld [vmem:[%s1228] sm:$0xff]
        %v1230 = vld [vmem:[%s1228 + $0x8] sm:$0xff]
        %1232 = vset.pattern.permute.xlu0 0
        %1233 = vperm.xlu0 %1232, %v1229
        %v1234 = vpop.permute.xlu0 %1233
        %1237 = vset.pattern.permute.xlu0 0
        %1238 = vperm.xlu0 %1237, %v1230
        %v1239 = vpop.permute.xlu0 %1238
        %v1241 = vmul.f32 %v1226, %v1234
        %v1242 = vmul.f32 %v1227, %v1239
        %v1243 = vsel %vm604, %v1241, 0.0
        %v1244 = vsel %vm604, %v1242, 0.0
        %v1245 = vadd.f32 %v1243, %v1244
        %v1246 = vrot.slane %v1245, 4
        %v1247 = vadd.f32 %v1245, %v1246
        %v1248 = vrot.slane %v1247, 2
        %v1249 = vadd.f32 %v1247, %v1248
        %v1250 = vrot.slane %v1249, 1
        %v1251 = vadd.f32 %v1249, %v1250
        %1252 = vst.msk [vmem:[#allocation7 + $0x4] sm:$0x1] %vm1111, %v1251
        %s1253 = scalar_lea.vmem [#allocation4], 80
        %v1254 = vld [vmem:[%s1253] sm:$0xff]
        %v1255 = vld [vmem:[%s1253 + $0x8] sm:$0xff]
        %v1256 = vmul.f32 %v1254, %v1226
        %v1257 = vmul.f32 %v1255, %v1227
        %s1258 = scalar_lea.vmem [#allocation5], 80
        %v1259 = vld [vmem:[%s1258] sm:$0xff]
        %v1260 = vld [vmem:[%s1258 + $0x8] sm:$0xff]
        %v1261 = vadd.f32 %v1256, %v1259
        %v1262 = vadd.f32 %v1257, %v1260
        %s1263 = scalar_lea.vmem [#allocation6], 80
        %v1264 = vld [vmem:[%s1263] sm:$0xff]
        %v1265 = vld [vmem:[%s1263 + $0x8] sm:$0xff]
        %1267 = vset.pattern.permute.xlu0 0
        %1268 = vperm.xlu0 %1267, %v1264
        %v1269 = vpop.permute.xlu0 %1268
        %1272 = vset.pattern.permute.xlu0 0
        %1273 = vperm.xlu0 %1272, %v1265
        %v1274 = vpop.permute.xlu0 %1273
        %v1276 = vmul.f32 %v1261, %v1269
        %v1277 = vmul.f32 %v1262, %v1274
        %v1278 = vsel %vm604, %v1276, 0.0
        %v1279 = vsel %vm604, %v1277, 0.0
        %v1280 = vadd.f32 %v1278, %v1279
        %v1281 = vrot.slane %v1280, 4
        %v1282 = vadd.f32 %v1280, %v1281
        %v1283 = vrot.slane %v1282, 2
        %v1284 = vadd.f32 %v1282, %v1283
        %v1285 = vrot.slane %v1284, 1
        %v1286 = vadd.f32 %v1284, %v1285
        %1287 = vst.msk [vmem:[#allocation7 + $0x5] sm:$0x1] %vm1111, %v1286
        %s1288 = scalar_lea.vmem [#allocation4], 96
        %v1289 = vld [vmem:[%s1288] sm:$0xff]
        %v1290 = vld [vmem:[%s1288 + $0x8] sm:$0xff]
        %v1291 = vmul.f32 %v1289, %v1261
        %v1292 = vmul.f32 %v1290, %v1262
        %s1293 = scalar_lea.vmem [#allocation5], 96
        %v1294 = vld [vmem:[%s1293] sm:$0xff]
        %v1295 = vld [vmem:[%s1293 + $0x8] sm:$0xff]
        %v1296 = vadd.f32 %v1291, %v1294
        %v1297 = vadd.f32 %v1292, %v1295
        %s1298 = scalar_lea.vmem [#allocation6], 96
        %v1299 = vld [vmem:[%s1298] sm:$0xff]
        %v1300 = vld [vmem:[%s1298 + $0x8] sm:$0xff]
        %1302 = vset.pattern.permute.xlu0 0
        %1303 = vperm.xlu0 %1302, %v1299
        %v1304 = vpop.permute.xlu0 %1303
        %1307 = vset.pattern.permute.xlu0 0
        %1308 = vperm.xlu0 %1307, %v1300
        %v1309 = vpop.permute.xlu0 %1308
        %v1311 = vmul.f32 %v1296, %v1304
        %v1312 = vmul.f32 %v1297, %v1309
        %v1313 = vsel %vm604, %v1311, 0.0
        %v1314 = vsel %vm604, %v1312, 0.0
        %v1315 = vadd.f32 %v1313, %v1314
        %v1316 = vrot.slane %v1315, 4
        %v1317 = vadd.f32 %v1315, %v1316
        %v1318 = vrot.slane %v1317, 2
        %v1319 = vadd.f32 %v1317, %v1318
        %v1320 = vrot.slane %v1319, 1
        %v1321 = vadd.f32 %v1319, %v1320
        %1322 = vst.msk [vmem:[#allocation7 + $0x6] sm:$0x1] %vm1111, %v1321
        %s1323 = scalar_lea.vmem [#allocation4], 112
        %v1324 = vld [vmem:[%s1323] sm:$0xff]
        %v1325 = vld [vmem:[%s1323 + $0x8] sm:$0xff]
        %v1326 = vmul.f32 %v1324, %v1296
        %v1327 = vmul.f32 %v1325, %v1297
        %s1328 = scalar_lea.vmem [#allocation5], 112
        %v1329 = vld [vmem:[%s1328] sm:$0xff]
        %v1330 = vld [vmem:[%s1328 + $0x8] sm:$0xff]
        %v1331 = vadd.f32 %v1326, %v1329
        %v1332 = vadd.f32 %v1327, %v1330
        %s1333 = scalar_lea.vmem [#allocation6], 112
        %v1334 = vld [vmem:[%s1333] sm:$0xff]
        %v1335 = vld [vmem:[%s1333 + $0x8] sm:$0xff]
        %1337 = vset.pattern.permute.xlu0 0
        %1338 = vperm.xlu0 %1337, %v1334
        %v1339 = vpop.permute.xlu0 %1338
        %1342 = vset.pattern.permute.xlu0 0
        %1343 = vperm.xlu0 %1342, %v1335
        %v1344 = vpop.permute.xlu0 %1343
        %v1346 = vmul.f32 %v1331, %v1339
        %v1347 = vmul.f32 %v1332, %v1344
        %v1348 = vsel %vm604, %v1346, 0.0
        %v1349 = vsel %vm604, %v1347, 0.0
        %v1350 = vadd.f32 %v1348, %v1349
        %v1351 = vrot.slane %v1350, 4
        %v1352 = vadd.f32 %v1350, %v1351
        %v1353 = vrot.slane %v1352, 2
        %v1354 = vadd.f32 %v1352, %v1353
        %v1355 = vrot.slane %v1354, 1
        %v1356 = vadd.f32 %v1354, %v1355
        %1357 = vst.msk [vmem:[#allocation7 + $0x7] sm:$0x1] %vm1111, %v1356
        %1358 = vst.msk [vmem:[#allocation2] sm:$0xff] %vm604, %v1331
        %1359 = vst.msk [vmem:[#allocation2 + $0x8] sm:$0xff] %vm604, %v1332
        %v1360 = vld [vmem:[#allocation7] sm:$0xff]
        %v1361 = vld [vmem:[%s9] sm:$0x1]
        %v1363 = vperm.slane %v1361, 0
        %v1365 = vmul.f32 %v647, %v1363
        %v1366 = vadd.f32 %v1360, %v1365
        %v1367 = vxor.u32 %v602, 2147483648
        %v1368 = vmul.f32 %v1367, 1.442695
        %v1369 = vpow.pop %v1368
        %v1370 = vadd.f32 %v1369, 1.0
        %v1371 = vrcp.pop %v1370
        %v1372 = vmul.f32 %v1370, %v1371
        %v1373 = vsub.f32 1.0, %v1372
        %v1374 = vmul.f32 %v1371, %v1373
        %v1375 = vadd.f32 %v1371, %v1374
        %vm1376 = vweird.f32 %v1370
        %vm1377 = vweird.f32 %v1371
        %vm1378 = vmor %vm1376, %vm1377
        %v1379 = vsel %vm1378, %v1371, %v1375
        %v1380 = vand.u32 2147483647, %v1370
        %vm1381 = vcmp.eq.f32.partialorder %v1380, 8.507059e+37
        %v1382 = vand.u32 %v1370, 2147483648
        %v1383 = vor.u32 1.1754944e-38, %v1382
        %v1384 = vsel %vm1381, %v1383, %v1379
        %v1385 = vmul.f32 1.0, %v1384
        %v1386 = vmul.f32 %v602, %v1385
        %v1387 = vmul.f32 %v1366, %v1386
        %v1388 = vld [vmem:[%s10] sm:$0xff]
        %v1389 = vld [vmem:[%s10 + $0x8] sm:$0xff]
        %v1390 = vld [vmem:[%s10 + $0x10] sm:$0xff]
        %v1391 = vld [vmem:[%s10 + $0x18] sm:$0xff]
        %v1392 = vld [vmem:[%s10 + $0x20] sm:$0xff]
        %v1393 = vld [vmem:[%s10 + $0x28] sm:$0xff]
        %v1394 = vld [vmem:[%s10 + $0x30] sm:$0xff]
        %v1395 = vld [vmem:[%s10 + $0x38] sm:$0xff]
        %v1397 = vsel %vm604, %v1387, 0
        %1399 = vmatpush.msra.mxu0 0.0
        %1400 = vmatpush.msra.mxu0 0.0
        %1401 = vmatpush.msra.mxu0 0.0
        %1402 = vmatpush.msra.mxu0 0.0
        %1403 = vmatpush.msra.mxu0 0.0
        %1404 = vmatpush.msra.mxu0 0.0
        %1405 = vmatpush.msra.mxu0 0.0
        %1406 = vmatpush.msra.mxu0 0.0
        %1407 = vmatpush.msra.mxu0 %v1395
        %1408 = vmatpush.msra.mxu0 %v1394
        %1409 = vmatpush.msra.mxu0 %v1393
        %1410 = vmatpush.msra.mxu0 %v1392
        %1411 = vmatpush.msra.mxu0 %v1391
        %1412 = vmatpush.msra.mxu0 %v1390
        %1413 = vmatpush.msra.mxu0 %v1389
        %1414 = vmatpush.msra.mxu0 %v1388
        %1415 = vmatmul.f32.gmra.mxu0 %v1397
        %v1416 = vpop.f32.mrf.mxu0
        %v1417 = vadd.f32 0.0, %v1416
        %1418 = vdwg.mxu0
        %v1419 = vsel %vm556, %v1417, 0.0
        %1420 = vadd.xlane.f32.xlu0 %v1419
        %v1421 = vpop.xlane.xlu0 %1420
        %v1422 = vrcp.pop 32.0
        %v1423 = vmul.f32 32.0, %v1422
        %v1424 = vsub.f32 1.0, %v1423
        %v1425 = vmul.f32 %v1422, %v1424
        %v1426 = vadd.f32 %v1422, %v1425
        %vm1427 = vweird.f32 %v1422
        %v1428 = vsel %vm1427, %v1422, %v1426
        %v1429 = vmul.f32 %v1421, %v1428
        %v1430 = vsub.f32 %v1417, %v1429
        %v1431 = vmul.f32 %v1430, %v1430
        %v1432 = vsel %vm556, %v1431, 0.0
        %1433 = vadd.xlane.f32.xlu0 %v1432
        %v1434 = vpop.xlane.xlu0 %1433
        %v1435 = vmul.f32 %v1434, %v1428
        %v1436 = vadd.f32 %v1435, 1e-06
        %v1437 = vrsqrt.pop %v1436
        %v1438 = vmul.f32 %v1437, %v1436
        %v1439 = vmul.f32 %v1438, %v1437
        %v1440 = vmul.f32 0.5, %v1439
        %v1441 = vsub.f32 1.5, %v1440
        %v1442 = vmul.f32 %v1437, %v1441
        %vm1443 = vweird.f32 %v1436
        %vm1444 = vweird.f32 %v1437
        %vm1445 = vmor %vm1443, %vm1444
        %v1446 = vsel %vm1445, %v1437, %v1442
        %v1447 = vmul.f32 %v1430, %v1446
        %v1448 = vld [vmem:[%s11] sm:$0x1]
        %v1450 = vperm.slane %v1448, 0
        %v1452 = vmul.f32 %v1447, %v1450
        %v1453 = vld [vmem:[%s12] sm:$0x1]
        %v1455 = vperm.slane %v1453, 0
        %v1457 = vadd.f32 %v1452, %v1455
        %v1458 = vadd.f32 %v551, %v1457
        %1459 = vst.msk [vmem:[%s534] sm:$0xff] %vm556, %v1458
        %s1460 = sand.u32 %s332, 1
        %s1461 = scalar_lea.sflag [#allocation10], %s1460
        %s1462 = sand.u32 %s332, 1
        %s1463 = smul.addr %s1462, 8
        %s1464 = scalar_lea.vmem [#allocation17], %s1463
        // Predicated region
        $region97: #{tpu_custom_call.1} parent=71 // pred_check
          %p1465 = pneg %p342
        $region98: #{tpu_custom_call.1} parent=71 // pred_check_branch
          %1467 = sbr.rel (%p1465) target = $region100
        $region99: #{tpu_custom_call.1} parent=71 // pred_region
          %1469 = vsyncadd %s1461, 0
          %s1470 = smul.addr %s34, 2
          %s1471 = sadd.s32 %s35, %s1470
          %s1472 = smul.addr %s1471, 8
          %s1473 = scalar_lea.hbm %s13, %s1472
          %s1475 = sshll.u32 %s1464, 4
          %s1476 = int_to_ptr.vmem [resolvable:$true] %s1475
          %s1477 = sshll.u32 %s1473, 4
          %s1478 = int_to_ptr.hbm [resolvable:$true] %s1477
          %1480 = dma.vmem_to_hbm [thread:$0]  %s1476, 128, %s1478, %s1461
        $region100: #{tpu_custom_call.1} parent=71 // pred_fallthru
          _
      $region72: #{tpu_custom_call.1} parent=5 // pred_fallthru
        _
      %p1481 = scmp.le.s32.totalorder 2, %s25
      // Predicated region
      $region101: #{tpu_custom_call.1} parent=5 // pred_check
        %p1482 = pneg %p1481
      $region102: #{tpu_custom_call.1} parent=5 // pred_check_branch
        %1484 = sbr.rel (%p1482) target = $region104
      $region103: #{tpu_custom_call.1} parent=5 // pred_region
        %s1485 = ssub.s32 %s25, 2
        // Predicated region
        $region105: #{tpu_custom_call.1} parent=103 // pred_check
          %p1486 = pneg %p348
        $region106: #{tpu_custom_call.1} parent=103 // pred_check_branch
          %1488 = sbr.rel (%p1486) target = $region108
        $region107: #{tpu_custom_call.1} parent=103 // pred_region
          %s1489 = sand.u32 %s333, 1
          %s1490 = scalar_lea.sflag [#allocation10], %s1489
          %s1491 = sand.u32 %s333, 1
          %s1492 = smul.addr %s1491, 8
          %s1493 = scalar_lea.vmem [#allocation17], %s1492
          %1495 = dma.done %s1490, 128
        $region108: #{tpu_custom_call.1} parent=103 // pred_fallthru
          _
      $region104: #{tpu_custom_call.1} parent=5 // pred_fallthru
        _
    $region6: #{tpu_custom_call.1} parent=1 // loop_footer
      %s29 = sadd.s32 1, %s25
    $region7: #{tpu_custom_call.1} parent=1 // loop_footer_branch
      %24 = sbr.rel target = $region3
    $region8: #{tpu_custom_call.1} parent=1 // loop_exit
      _
    %1496 = vsyncpa [#allocation9], 1
    %s1497 = scalar_lea.sflag [#allocation9], 1
    %1498 = vsyncpa %s1497, 1
    %1499 = vsyncpa [#allocation12], 1
    %1500 = vsyncpa [#allocation15], 1
    %1501 = vsyncpa [#allocation10], 1
    %s1502 = scalar_lea.sflag [#allocation10], 1
    %1503 = vsyncpa %s1502, 1

// kernel: tpu_custom_call.1
$region0: #{tpu_custom_call.1}
  #allocation0 [shape = 'u32[]', space=smem, size = 0x4, offset = 0x4, fixed_abs, tag = 'smem constant byte address 0x4 - core index']
  #allocation1 [shape = 'u32[72,128]{1,0:T(1,128)}', space=vmem, size = 0x9000, scoped, tag = 'internal scratch']
  #allocation2 [shape = 'f32[16,64]{1,0:T(8,128)}', space=vmem, size = 0x2000, scoped, tag = 'scratch operand']
  #allocation3 [shape = 'f32[16,64]{1,0:T(8,128)}', space=vmem, size = 0x2000, scoped, tag = 'scratch operand']
  #allocation4 [shape = 'f32[8,16,64]{2,1,0:T(8,128)}', space=vmem, size = 0x10000, scoped, tag = 'scratch operand']
  #allocation5 [shape = 'f32[8,16,64]{2,1,0:T(8,128)}', space=vmem, size = 0x10000, scoped, tag = 'scratch operand']
  #allocation6 [shape = 'f32[8,16,1]{2,1,0:T(8,128)}', space=vmem, size = 0x10000, scoped, tag = 'scratch operand']
  #allocation7 [shape = 'f32[8,64]{1,0:T(8,128)}', space=vmem, size = 0x1000, scoped, tag = 'scratch operand']
  %s0 = inlined_call_operand.vmem [shape: f32[2,16,32], index: 0, kind: input, shape index: {}]
  %s1 = inlined_call_operand.hbm [shape: f32[32,64], index: 1, kind: input, shape index: {}]
  %s2 = inlined_call_operand.hbm [shape: f32[32,64], index: 2, kind: input, shape index: {}]
  %s3 = inlined_call_operand.vmem [shape: f32[4,64], index: 3, kind: input, shape index: {}]
  %s4 = inlined_call_operand.hbm [shape: f32[1,64], index: 4, kind: input, shape index: {}]
  %s5 = inlined_call_operand.vmem [shape: f32[64,128], index: 5, kind: input, shape index: {}]
  %s6 = inlined_call_operand.hbm [shape: f32[2,64], index: 6, kind: input, shape index: {}]
  %s7 = inlined_call_operand.vmem [shape: f32[1,64], index: 7, kind: input, shape index: {}]
  %s8 = inlined_call_operand.hbm [shape: f32[16,64], index: 8, kind: input, shape index: {}]
  %s9 = inlined_call_operand.vmem [shape: f32[1,64], index: 9, kind: input, shape index: {}]
  %s10 = inlined_call_operand.vmem [shape: f32[64,32], index: 10, kind: input, shape index: {}]
  %s11 = inlined_call_operand.vmem [shape: f32[1,32], index: 11, kind: input, shape index: {}]
  %s12 = inlined_call_operand.vmem [shape: f32[1,32], index: 12, kind: input, shape index: {}]
  %s13 = inlined_call_operand.hbm [shape: f32[2,16,32], index: 13, kind: output, shape index: {}]
  %s14 = sld [smem:[#allocation0]]
  $region109: #{tpu_custom_call.1} parent=0
    _
  %s16 = ssub.s32 1, %s14
  %s17 = scalar_select 0, %s16, %s14
  $region1: #{tpu_custom_call.1} parent=0
    #allocation8 [shape = 'u8[16384]{0}', space=vmem, size = 0x4000, scoped, tag = 'input window, operand 1, single buffered']
    #allocation9 [shape = 's32[2]{0}', space=sflag, size = 0x8, scoped, tag = 'scoped memory for tpu_custom_call.1']
    #allocation10 [shape = 's32[2]{0}', space=sflag, size = 0x8, scoped, tag = 'scoped memory for tpu_custom_call.1']
    #allocation11 [shape = 'u8[16384]{0}', space=vmem, size = 0x4000, scoped, tag = 'input window, operand 2, single buffered']
    #allocation12 [shape = 's32[1]{0}', space=sflag, size = 0x4, scoped, tag = 'scoped memory for tpu_custom_call.1']
    #allocation13 [shape = 'u8[512]{0}', space=vmem, size = 0x400, scoped, tag = 'input window, operand 4, single buffered']
    #allocation14 [shape = 'u8[1024]{0}', space=vmem, size = 0x400, scoped, tag = 'input window, operand 6, single buffered']
    #allocation15 [shape = 's32[1]{0}', space=sflag, size = 0x4, scoped, tag = 'scoped memory for tpu_custom_call.1']
    #allocation16 [shape = 'u8[8192]{0}', space=vmem, size = 0x2000, scoped, tag = 'input window, operand 8, single buffered']
    #allocation17 [shape = 'u8[8192]{0}', space=vmem, size = 0x2000, scoped, tag = 'output window, operand 0']
    %18 = vsyncpa [#allocation9], 0
    %19 = vsyncpa [#allocation12], 0
    %20 = vsyncpa [#allocation15], 0
    %21 = vsyncpa [#allocation10], 0
    %s22 = scalar_lea.sflag [#allocation10], 1
    %23 = vsyncpa %s22, 0
    loop: start=0, step=1, limit=6
    $region2: #{tpu_custom_call.1} parent=1 // loop_pre_header
      _
    $region3: #{tpu_custom_call.1} parent=1 // loop_header
      %s25 = sphi 0, %s29
      %p26 = scmp.ge.s32.totalorder %s25, 6
      %s32 = sphi 0, %s44
      %s33 = sphi 0, %s40
      %s34 = sphi 0, %s32
      %s35 = sphi 0, %s33
      %s36 = sphi 0, %s34
      %s37 = sphi 0, %s35
      %s49 = sphi 0, %s51
      %s52 = sphi 0, %s49
      %s53 = sphi 0, %s52
      %s69 = sphi 0, %s53
      %s73 = sphi 0, %s73
      %s75 = sphi 0, %s73
      %s76 = sphi 0, %s75
      %s90 = sphi 0, %s76
      %s94 = sphi 0, %s94
      %s96 = sphi 0, %s94
      %s97 = sphi 0, %s96
      %s111 = sphi 0, %s97
      %s115 = sphi 0, %s115
      %s117 = sphi 0, %s115
      %s118 = sphi 0, %s117
      %s132 = sphi 0, %s118
      %s136 = sphi 0, %s136
      %s138 = sphi 0, %s136
      %s139 = sphi 0, %s138
      %s153 = sphi 0, %s139
      %s157 = sphi 0, %s157
      %s159 = sphi 0, %s157
      %s160 = sphi 0, %s159
      %s174 = sphi 0, %s160
      %s178 = sphi 0, %s178
      %s180 = sphi 0, %s178
      %s181 = sphi 0, %s180
      %s195 = sphi 0, %s181
      %s199 = sphi 0, %s199
      %s201 = sphi 0, %s199
      %s202 = sphi 0, %s201
      %s216 = sphi 0, %s202
      %s220 = sphi 0, %s220
      %s222 = sphi 0, %s220
      %s223 = sphi 0, %s222
      %s237 = sphi 0, %s223
      %s241 = sphi 0, %s241
      %s243 = sphi 0, %s241
      %s244 = sphi 0, %s243
      %s258 = sphi 0, %s244
      %s262 = sphi 0, %s262
      %s264 = sphi 0, %s262
      %s265 = sphi 0, %s264
      %s279 = sphi 0, %s265
      %s283 = sphi 0, %s283
      %s285 = sphi 0, %s283
      %s286 = sphi 0, %s285
      %s300 = sphi 0, %s286
      %s304 = sphi 0, %s304
      %s306 = sphi 0, %s304
      %s307 = sphi 0, %s306
      %s321 = sphi 0, %s307
      %s329 = sphi 0, %s331
      %s332 = sphi 0, %s329
      %s333 = sphi 0, %s332
      %s349 = sphi 0, %s333
    $region4: #{tpu_custom_call.1} parent=1 // loop_header_branch
      %28 = sbr.rel (%p26) target = $region8
    $region5: #{tpu_custom_call.1} parent=1 // loop_body
      %s30 = ssub.s32 %s25, 1
      %s31 = ssub.s32 %s25, 2
      %s38 = sadd.s32 1, %s33
      %p39 = scmp.ge.s32.totalorder %s38, 2
      %s40 = scalar_select %p39, 0, %s38
      %s41 = sadd.s32 1, %s32
      %s42 = scalar_select %p39, %s41, %s32
      %p43 = scmp.ge.s32.totalorder %s42, 2
      %s44 = scalar_select %p43, 0, %s42
      %s45 = ssub.s32 %s32, %s44
      %s46 = ssub.s32 %s33, %s40
      %s47 = sor.u32 %s45, %s46
      %p48 = scmp.eq.s32.totalorder %s47, 0
      %s50 = sadd.s32 %s49, 1
      %s51 = scalar_select %p48, %s49, %s50
      %p54 = pneg %p48
      %p55 = scmp.eq.s32.totalorder %s25, 3
      %p56 = por %p54, %p55
      %p57 = scmp.ne.s32.totalorder %s49, %s52
      %p58 = scmp.eq.s32.totalorder %s25, 0
      %p59 = por %p57, %p58
      %p60 = scmp.ne.s32.totalorder %s49, %s52
      %p61 = scmp.eq.s32.totalorder %s30, 3
      %p62 = por %p60, %p61
      %p63 = scmp.ne.s32.totalorder %s52, %s53
      %p64 = scmp.eq.s32.totalorder %s30, 0
      %p65 = por %p63, %p64
      %p66 = scmp.ne.s32.totalorder %s52, %s53
      %p67 = scmp.eq.s32.totalorder %s31, 3
      %p68 = por %p66, %p67
      %p70 = scmp.ne.s32.totalorder %s53, %s69
      %p71 = scmp.eq.s32.totalorder %s31, 0
      %p72 = por %p70, %p71
      %s74 = sadd.s32 %s73, 1
      %p77 = scmp.eq.s32.totalorder %s25, 3
      %p78 = scmp.ne.s32.totalorder %s73, %s75
      %p79 = scmp.eq.s32.totalorder %s25, 0
      %p80 = por %p78, %p79
      %p81 = scmp.ne.s32.totalorder %s73, %s75
      %p82 = scmp.eq.s32.totalorder %s30, 3
      %p83 = por %p81, %p82
      %p84 = scmp.ne.s32.totalorder %s75, %s76
      %p85 = scmp.eq.s32.totalorder %s30, 0
      %p86 = por %p84, %p85
      %p87 = scmp.ne.s32.totalorder %s75, %s76
      %p88 = scmp.eq.s32.totalorder %s31, 3
      %p89 = por %p87, %p88
      %p91 = scmp.ne.s32.totalorder %s76, %s90
      %p92 = scmp.eq.s32.totalorder %s31, 0
      %p93 = por %p91, %p92
      %s95 = sadd.s32 %s94, 1
      %p98 = scmp.eq.s32.totalorder %s25, 3
      %p99 = scmp.ne.s32.totalorder %s94, %s96
      %p100 = scmp.eq.s32.totalorder %s25, 0
      %p101 = por %p99, %p100
      %p102 = scmp.ne.s32.totalorder %s94, %s96
      %p103 = scmp.eq.s32.totalorder %s30, 3
      %p104 = por %p102, %p103
      %p105 = scmp.ne.s32.totalorder %s96, %s97
      %p106 = scmp.eq.s32.totalorder %s30, 0
      %p107 = por %p105, %p106
      %p108 = scmp.ne.s32.totalorder %s96, %s97
      %p109 = scmp.eq.s32.totalorder %s31, 3
      %p110 = por %p108, %p109
      %p112 = scmp.ne.s32.totalorder %s97, %s111
      %p113 = scmp.eq.s32.totalorder %s31, 0
      %p114 = por %p112, %p113
      %s116 = sadd.s32 %s115, 1
      %p119 = scmp.eq.s32.totalorder %s25, 3
      %p120 = scmp.ne.s32.totalorder %s115, %s117
      %p121 = scmp.eq.s32.totalorder %s25, 0
      %p122 = por %p120, %p121
      %p123 = scmp.ne.s32.totalorder %s115, %s117
      %p124 = scmp.eq.s32.totalorder %s30, 3
      %p125 = por %p123, %p124
      %p126 = scmp.ne.s32.totalorder %s117, %s118
      %p127 = scmp.eq.s32.totalorder %s30, 0
      %p128 = por %p126, %p127
      %p129 = scmp.ne.s32.totalorder %s117, %s118
      %p130 = scmp.eq.s32.totalorder %s31, 3
      %p131 = por %p129, %p130
      %p133 = scmp.ne.s32.totalorder %s118, %s132
      %p134 = scmp.eq.s32.totalorder %s31, 0
      %p135 = por %p133, %p134
      %s137 = sadd.s32 %s136, 1
      %p140 = scmp.eq.s32.totalorder %s25, 3
      %p141 = scmp.ne.s32.totalorder %s136, %s138
      %p142 = scmp.eq.s32.totalorder %s25, 0
      %p143 = por %p141, %p142
      %p144 = scmp.ne.s32.totalorder %s136, %s138
      %p145 = scmp.eq.s32.totalorder %s30, 3
      %p146 = por %p144, %p145
      %p147 = scmp.ne.s32.totalorder %s138, %s139
      %p148 = scmp.eq.s32.totalorder %s30, 0
      %p149 = por %p147, %p148
      %p150 = scmp.ne.s32.totalorder %s138, %s139
      %p151 = scmp.eq.s32.totalorder %s31, 3
      %p152 = por %p150, %p151
      %p154 = scmp.ne.s32.totalorder %s139, %s153
      %p155 = scmp.eq.s32.totalorder %s31, 0
      %p156 = por %p154, %p155
      %s158 = sadd.s32 %s157, 1
      %p161 = scmp.eq.s32.totalorder %s25, 3
      %p162 = scmp.ne.s32.totalorder %s157, %s159
      %p163 = scmp.eq.s32.totalorder %s25, 0
      %p164 = por %p162, %p163
      %p165 = scmp.ne.s32.totalorder %s157, %s159
      %p166 = scmp.eq.s32.totalorder %s30, 3
      %p167 = por %p165, %p166
      %p168 = scmp.ne.s32.totalorder %s159, %s160
      %p169 = scmp.eq.s32.totalorder %s30, 0
      %p170 = por %p168, %p169
      %p171 = scmp.ne.s32.totalorder %s159, %s160
      %p172 = scmp.eq.s32.totalorder %s31, 3
      %p173 = por %p171, %p172
      %p175 = scmp.ne.s32.totalorder %s160, %s174
      %p176 = scmp.eq.s32.totalorder %s31, 0
      %p177 = por %p175, %p176
      %s179 = sadd.s32 %s178, 1
      %p182 = scmp.eq.s32.totalorder %s25, 3
      %p183 = scmp.ne.s32.totalorder %s178, %s180
      %p184 = scmp.eq.s32.totalorder %s25, 0
      %p185 = por %p183, %p184
      %p186 = scmp.ne.s32.totalorder %s178, %s180
      %p187 = scmp.eq.s32.totalorder %s30, 3
      %p188 = por %p186, %p187
      %p189 = scmp.ne.s32.totalorder %s180, %s181
      %p190 = scmp.eq.s32.totalorder %s30, 0
      %p191 = por %p189, %p190
      %p192 = scmp.ne.s32.totalorder %s180, %s181
      %p193 = scmp.eq.s32.totalorder %s31, 3
      %p194 = por %p192, %p193
      %p196 = scmp.ne.s32.totalorder %s181, %s195
      %p197 = scmp.eq.s32.totalorder %s31, 0
      %p198 = por %p196, %p197
      %s200 = sadd.s32 %s199, 1
      %p203 = scmp.eq.s32.totalorder %s25, 3
      %p204 = scmp.ne.s32.totalorder %s199, %s201
      %p205 = scmp.eq.s32.totalorder %s25, 0
      %p206 = por %p204, %p205
      %p207 = scmp.ne.s32.totalorder %s199, %s201
      %p208 = scmp.eq.s32.totalorder %s30, 3
      %p209 = por %p207, %p208
      %p210 = scmp.ne.s32.totalorder %s201, %s202
      %p211 = scmp.eq.s32.totalorder %s30, 0
      %p212 = por %p210, %p211
      %p213 = scmp.ne.s32.totalorder %s201, %s202
      %p214 = scmp.eq.s32.totalorder %s31, 3
      %p215 = por %p213, %p214
      %p217 = scmp.ne.s32.totalorder %s202, %s216
      %p218 = scmp.eq.s32.totalorder %s31, 0
      %p219 = por %p217, %p218
      %s221 = sadd.s32 %s220, 1
      %p224 = scmp.eq.s32.totalorder %s25, 3
      %p225 = scmp.ne.s32.totalorder %s220, %s222
      %p226 = scmp.eq.s32.totalorder %s25, 0
      %p227 = por %p225, %p226
      %p228 = scmp.ne.s32.totalorder %s220, %s222
      %p229 = scmp.eq.s32.totalorder %s30, 3
      %p230 = por %p228, %p229
      %p231 = scmp.ne.s32.totalorder %s222, %s223
      %p232 = scmp.eq.s32.totalorder %s30, 0
      %p233 = por %p231, %p232
      %p234 = scmp.ne.s32.totalorder %s222, %s223
      %p235 = scmp.eq.s32.totalorder %s31, 3
      %p236 = por %p234, %p235
      %p238 = scmp.ne.s32.totalorder %s223, %s237
      %p239 = scmp.eq.s32.totalorder %s31, 0
      %p240 = por %p238, %p239
      %s242 = sadd.s32 %s241, 1
      %p245 = scmp.eq.s32.totalorder %s25, 3
      %p246 = scmp.ne.s32.totalorder %s241, %s243
      %p247 = scmp.eq.s32.totalorder %s25, 0
      %p248 = por %p246, %p247
      %p249 = scmp.ne.s32.totalorder %s241, %s243
      %p250 = scmp.eq.s32.totalorder %s30, 3
      %p251 = por %p249, %p250
      %p252 = scmp.ne.s32.totalorder %s243, %s244
      %p253 = scmp.eq.s32.totalorder %s30, 0
      %p254 = por %p252, %p253
      %p255 = scmp.ne.s32.totalorder %s243, %s244
      %p256 = scmp.eq.s32.totalorder %s31, 3
      %p257 = por %p255, %p256
      %p259 = scmp.ne.s32.totalorder %s244, %s258
      %p260 = scmp.eq.s32.totalorder %s31, 0
      %p261 = por %p259, %p260
      %s263 = sadd.s32 %s262, 1
      %p266 = scmp.eq.s32.totalorder %s25, 3
      %p267 = scmp.ne.s32.totalorder %s262, %s264
      %p268 = scmp.eq.s32.totalorder %s25, 0
      %p269 = por %p267, %p268
      %p270 = scmp.ne.s32.totalorder %s262, %s264
      %p271 = scmp.eq.s32.totalorder %s30, 3
      %p272 = por %p270, %p271
      %p273 = scmp.ne.s32.totalorder %s264, %s265
      %p274 = scmp.eq.s32.totalorder %s30, 0
      %p275 = por %p273, %p274
      %p276 = scmp.ne.s32.totalorder %s264, %s265
      %p277 = scmp.eq.s32.totalorder %s31, 3
      %p278 = por %p276, %p277
      %p280 = scmp.ne.s32.totalorder %s265, %s279
      %p281 = scmp.eq.s32.totalorder %s31, 0
      %p282 = por %p280, %p281
      %s284 = sadd.s32 %s283, 1
      %p287 = scmp.eq.s32.totalorder %s25, 3
      %p288 = scmp.ne.s32.totalorder %s283, %s285
      %p289 = scmp.eq.s32.totalorder %s25, 0
      %p290 = por %p288, %p289
      %p291 = scmp.ne.s32.totalorder %s283, %s285
      %p292 = scmp.eq.s32.totalorder %s30, 3
      %p293 = por %p291, %p292
      %p294 = scmp.ne.s32.totalorder %s285, %s286
      %p295 = scmp.eq.s32.totalorder %s30, 0
      %p296 = por %p294, %p295
      %p297 = scmp.ne.s32.totalorder %s285, %s286
      %p298 = scmp.eq.s32.totalorder %s31, 3
      %p299 = por %p297, %p298
      %p301 = scmp.ne.s32.totalorder %s286, %s300
      %p302 = scmp.eq.s32.totalorder %s31, 0
      %p303 = por %p301, %p302
      %s305 = sadd.s32 %s304, 1
      %p308 = scmp.eq.s32.totalorder %s25, 3
      %p309 = scmp.ne.s32.totalorder %s304, %s306
      %p310 = scmp.eq.s32.totalorder %s25, 0
      %p311 = por %p309, %p310
      %p312 = scmp.ne.s32.totalorder %s304, %s306
      %p313 = scmp.eq.s32.totalorder %s30, 3
      %p314 = por %p312, %p313
      %p315 = scmp.ne.s32.totalorder %s306, %s307
      %p316 = scmp.eq.s32.totalorder %s30, 0
      %p317 = por %p315, %p316
      %p318 = scmp.ne.s32.totalorder %s306, %s307
      %p319 = scmp.eq.s32.totalorder %s31, 3
      %p320 = por %p318, %p319
      %p322 = scmp.ne.s32.totalorder %s307, %s321
      %p323 = scmp.eq.s32.totalorder %s31, 0
      %p324 = por %p322, %p323
      %s325 = ssub.s32 %s32, %s44
      %s326 = ssub.s32 %s33, %s40
      %s327 = sor.u32 %s325, %s326
      %p328 = scmp.eq.s32.totalorder %s327, 0
      %s330 = sadd.s32 %s329, 1
      %s331 = scalar_select %p328, %s329, %s330
      %p334 = pneg %p328
      %p335 = scmp.eq.s32.totalorder %s25, 3
      %p336 = por %p334, %p335
      %p337 = scmp.ne.s32.totalorder %s329, %s332
      %p338 = scmp.eq.s32.totalorder %s25, 0
      %p339 = por %p337, %p338
      %p340 = scmp.ne.s32.totalorder %s329, %s332
      %p341 = scmp.eq.s32.totalorder %s30, 3
      %p342 = por %p340, %p341
      %p343 = scmp.ne.s32.totalorder %s332, %s333
      %p344 = scmp.eq.s32.totalorder %s30, 0
      %p345 = por %p343, %p344
      %p346 = scmp.ne.s32.totalorder %s332, %s333
      %p347 = scmp.eq.s32.totalorder %s31, 3
      %p348 = por %p346, %p347
      %p350 = scmp.ne.s32.totalorder %s333, %s349
      %p351 = scmp.eq.s32.totalorder %s31, 0
      %p352 = por %p350, %p351
      %p353 = scmp.le.s32.totalorder 1, %s25
      %p354 = scmp.lt.s32.totalorder %s25, 5
      %p355 = pnand %p353, %p354
      %p356 = pneg %p355
      // Predicated region
      $region9: #{tpu_custom_call.1} parent=5 // pred_check
        _
      $region10: #{tpu_custom_call.1} parent=5 // pred_check_branch
        %358 = sbr.rel (%p355) target = $region12
      $region11: #{tpu_custom_call.1} parent=5 // pred_region
        %s359 = ssub.s32 %s25, 1
        // Predicated region
        $region13: #{tpu_custom_call.1} parent=11 // pred_check
          %p360 = pneg %p86
        $region14: #{tpu_custom_call.1} parent=11 // pred_check_branch
          %362 = sbr.rel (%p360) target = $region16
        $region15: #{tpu_custom_call.1} parent=11 // pred_region
          %364 = vsyncadd [#allocation9], 0
          %s365 = sshll.u32 %s1, 4
          %s366 = int_to_ptr.hbm [resolvable:$true] %s365
          %s367 = sshll.u32 [#allocation8], 4
          %s368 = int_to_ptr.vmem [resolvable:$true] %s367
          %373 = dma.hbm_to_vmem [thread:$0]  %s366, 512, %s368, [#allocation9], 128, 128, 8
        $region16: #{tpu_custom_call.1} parent=11 // pred_fallthru
          _
        // Predicated region
        $region17: #{tpu_custom_call.1} parent=11 // pred_check
          %p374 = pneg %p107
        $region18: #{tpu_custom_call.1} parent=11 // pred_check_branch
          %376 = sbr.rel (%p374) target = $region20
        $region19: #{tpu_custom_call.1} parent=11 // pred_region
          %378 = vsyncadd [#allocation12], 0
          %s379 = sshll.u32 %s2, 4
          %s380 = int_to_ptr.hbm [resolvable:$true] %s379
          %s381 = sshll.u32 [#allocation11], 4
          %s382 = int_to_ptr.vmem [resolvable:$true] %s381
          %387 = dma.hbm_to_vmem [thread:$0]  %s380, 512, %s382, [#allocation12], 128, 128, 8
        $region20: #{tpu_custom_call.1} parent=11 // pred_fallthru
          _
        // Predicated region
        $region21: #{tpu_custom_call.1} parent=11 // pred_check
          %p388 = pneg %p128
        $region22: #{tpu_custom_call.1} parent=11 // pred_check_branch
          %390 = sbr.rel (%p388) target = $region24
        $region23: #{tpu_custom_call.1} parent=11 // pred_region
          _
        $region24: #{tpu_custom_call.1} parent=11 // pred_fallthru
          _
        // Predicated region
        $region25: #{tpu_custom_call.1} parent=11 // pred_check
          %p391 = pneg %p149
        $region26: #{tpu_custom_call.1} parent=11 // pred_check_branch
          %393 = sbr.rel (%p391) target = $region28
        $region27: #{tpu_custom_call.1} parent=11 // pred_region
          %395 = vsyncadd [#allocation12], 0
          %s397 = sshll.u32 %s4, 4
          %s398 = int_to_ptr.hbm [resolvable:$true] %s397
          %s399 = sshll.u32 [#allocation13], 4
          %s400 = int_to_ptr.vmem [resolvable:$true] %s399
          %402 = dma.hbm_to_vmem [thread:$0]  %s398, 16, %s400, [#allocation12]
        $region28: #{tpu_custom_call.1} parent=11 // pred_fallthru
          _
        // Predicated region
        $region29: #{tpu_custom_call.1} parent=11 // pred_check
          %p403 = pneg %p170
        $region30: #{tpu_custom_call.1} parent=11 // pred_check_branch
          %405 = sbr.rel (%p403) target = $region32
        $region31: #{tpu_custom_call.1} parent=11 // pred_region
          _
        $region32: #{tpu_custom_call.1} parent=11 // pred_fallthru
          _
        // Predicated region
        $region33: #{tpu_custom_call.1} parent=11 // pred_check
          %p406 = pneg %p191
        $region34: #{tpu_custom_call.1} parent=11 // pred_check_branch
          %408 = sbr.rel (%p406) target = $region36
        $region35: #{tpu_custom_call.1} parent=11 // pred_region
          %410 = vsyncadd [#allocation15], 0
          %s412 = sshll.u32 %s6, 4
          %s413 = int_to_ptr.hbm [resolvable:$true] %s412
          %s414 = sshll.u32 [#allocation14], 4
          %s415 = int_to_ptr.vmem [resolvable:$true] %s414
          %417 = dma.hbm_to_vmem [thread:$0]  %s413, 32, %s415, [#allocation15]
        $region36: #{tpu_custom_call.1} parent=11 // pred_fallthru
          _
        // Predicated region
        $region37: #{tpu_custom_call.1} parent=11 // pred_check
          %p418 = pneg %p212
        $region38: #{tpu_custom_call.1} parent=11 // pred_check_branch
          %420 = sbr.rel (%p418) target = $region40
        $region39: #{tpu_custom_call.1} parent=11 // pred_region
          _
        $region40: #{tpu_custom_call.1} parent=11 // pred_fallthru
          _
        // Predicated region
        $region41: #{tpu_custom_call.1} parent=11 // pred_check
          %p421 = pneg %p233
        $region42: #{tpu_custom_call.1} parent=11 // pred_check_branch
          %423 = sbr.rel (%p421) target = $region44
        $region43: #{tpu_custom_call.1} parent=11 // pred_region
          %425 = vsyncadd [#allocation15], 0
          %s426 = sshll.u32 %s8, 4
          %s427 = int_to_ptr.hbm [resolvable:$true] %s426
          %s428 = sshll.u32 [#allocation16], 4
          %s429 = int_to_ptr.vmem [resolvable:$true] %s428
          %434 = dma.hbm_to_vmem [thread:$0]  %s427, 256, %s429, [#allocation15], 128, 128, 8
        $region44: #{tpu_custom_call.1} parent=11 // pred_fallthru
          _
        // Predicated region
        $region45: #{tpu_custom_call.1} parent=11 // pred_check
          %p435 = pneg %p254
        $region46: #{tpu_custom_call.1} parent=11 // pred_check_branch
          %437 = sbr.rel (%p435) target = $region48
        $region47: #{tpu_custom_call.1} parent=11 // pred_region
          _
        $region48: #{tpu_custom_call.1} parent=11 // pred_fallthru
          _
        // Predicated region
        $region49: #{tpu_custom_call.1} parent=11 // pred_check
          %p438 = pneg %p275
        $region50: #{tpu_custom_call.1} parent=11 // pred_check_branch
          %440 = sbr.rel (%p438) target = $region52
        $region51: #{tpu_custom_call.1} parent=11 // pred_region
          _
        $region52: #{tpu_custom_call.1} parent=11 // pred_fallthru
          _
        // Predicated region
        $region53: #{tpu_custom_call.1} parent=11 // pred_check
          %p441 = pneg %p296
        $region54: #{tpu_custom_call.1} parent=11 // pred_check_branch
          %443 = sbr.rel (%p441) target = $region56
        $region55: #{tpu_custom_call.1} parent=11 // pred_region
          _
        $region56: #{tpu_custom_call.1} parent=11 // pred_fallthru
          _
        // Predicated region
        $region57: #{tpu_custom_call.1} parent=11 // pred_check
          %p444 = pneg %p317
        $region58: #{tpu_custom_call.1} parent=11 // pred_check_branch
          %446 = sbr.rel (%p444) target = $region60
        $region59: #{tpu_custom_call.1} parent=11 // pred_region
          _
        $region60: #{tpu_custom_call.1} parent=11 // pred_fallthru
          _
      $region12: #{tpu_custom_call.1} parent=5 // pred_fallthru
        _
      %p447 = scmp.lt.s32.totalorder %s25, 4
      // Predicated region
      $region61: #{tpu_custom_call.1} parent=5 // pred_check
        %p448 = pneg %p447
      $region62: #{tpu_custom_call.1} parent=5 // pred_check_branch
        %450 = sbr.rel (%p448) target = $region64
      $region63: #{tpu_custom_call.1} parent=5 // pred_region
        // Predicated region
        $region65: #{tpu_custom_call.1} parent=63 // pred_check
          %p451 = pneg %p59
        $region66: #{tpu_custom_call.1} parent=63 // pred_check_branch
          %453 = sbr.rel (%p451) target = $region68
        $region67: #{tpu_custom_call.1} parent=63 // pred_region
          %p454 = scmp.lt.s32.totalorder %s32, 1
          %s455 = scalar_select %p454, %s32, 1
          %p456 = scmp.lt.s32.totalorder %s33, 1
          %s457 = scalar_select %p456, %s33, 1
          %s458 = smul.addr %s455, 2
          %s459 = sadd.s32 %s457, %s458
          %s460 = smul.addr %s459, 8
          %s461 = scalar_lea.vmem %s0, %s460
        $region68: #{tpu_custom_call.1} parent=63 // pred_fallthru
          _
      $region64: #{tpu_custom_call.1} parent=5 // pred_fallthru
        _
      %p462 = scmp.le.s32.totalorder 1, %s25
      %p463 = scmp.lt.s32.totalorder %s25, 5
      %p464 = pnand %p462, %p463
      %p465 = pneg %p464
      // Predicated region
      $region69: #{tpu_custom_call.1} parent=5 // pred_check
        _
      $region70: #{tpu_custom_call.1} parent=5 // pred_check_branch
        %467 = sbr.rel (%p464) target = $region72
      $region71: #{tpu_custom_call.1} parent=5 // pred_region
        %s468 = ssub.s32 %s25, 1
        // Predicated region
        $region73: #{tpu_custom_call.1} parent=71 // pred_check
          %p469 = pneg %p86
        $region74: #{tpu_custom_call.1} parent=71 // pred_check_branch
          %471 = sbr.rel (%p469) target = $region76
        $region75: #{tpu_custom_call.1} parent=71 // pred_region
          %473 = dma.done [#allocation9], 512
        $region76: #{tpu_custom_call.1} parent=71 // pred_fallthru
          _
        // Predicated region
        $region77: #{tpu_custom_call.1} parent=71 // pred_check
          %p474 = pneg %p107
        $region78: #{tpu_custom_call.1} parent=71 // pred_check_branch
          %476 = sbr.rel (%p474) target = $region80
        $region79: #{tpu_custom_call.1} parent=71 // pred_region
          %478 = dma.done [#allocation12], 512
        $region80: #{tpu_custom_call.1} parent=71 // pred_fallthru
          _
        // Predicated region
        $region81: #{tpu_custom_call.1} parent=71 // pred_check
          %p479 = pneg %p149
        $region82: #{tpu_custom_call.1} parent=71 // pred_check_branch
          %481 = sbr.rel (%p479) target = $region84
        $region83: #{tpu_custom_call.1} parent=71 // pred_region
          %483 = dma.done [#allocation12], 16
        $region84: #{tpu_custom_call.1} parent=71 // pred_fallthru
          _
        // Predicated region
        $region85: #{tpu_custom_call.1} parent=71 // pred_check
          %p484 = pneg %p191
        $region86: #{tpu_custom_call.1} parent=71 // pred_check_branch
          %486 = sbr.rel (%p484) target = $region88
        $region87: #{tpu_custom_call.1} parent=71 // pred_region
          %488 = dma.done [#allocation15], 32
        $region88: #{tpu_custom_call.1} parent=71 // pred_fallthru
          _
        // Predicated region
        $region89: #{tpu_custom_call.1} parent=71 // pred_check
          %p489 = pneg %p233
        $region90: #{tpu_custom_call.1} parent=71 // pred_check_branch
          %491 = sbr.rel (%p489) target = $region92
        $region91: #{tpu_custom_call.1} parent=71 // pred_region
          %493 = dma.done [#allocation15], 256
        $region92: #{tpu_custom_call.1} parent=71 // pred_fallthru
          _
        %p494 = scmp.lt.s32.totalorder %s34, 1
        %s495 = scalar_select %p494, %s34, 1
        %p496 = scmp.lt.s32.totalorder %s35, 1
        %s497 = scalar_select %p496, %s35, 1
        %s498 = smul.addr %s495, 2
        %s499 = sadd.s32 %s497, %s498
        %s500 = smul.addr %s499, 8
        %s501 = scalar_lea.vmem %s0, %s500
        %p502 = pneg %p65
        %p503 = pneg %p62
        %p504 = pneg %p86
        %p505 = pneg %p83
        %p506 = pneg %p107
        %p507 = pneg %p104
        %p508 = pneg %p128
        %p509 = pneg %p125
        %p510 = pneg %p149
        %p511 = pneg %p146
        %p512 = pneg %p170
        %p513 = pneg %p167
        %p514 = pneg %p191
        %p515 = pneg %p188
        %p516 = pneg %p212
        %p517 = pneg %p209
        %p518 = pneg %p233
        %p519 = pneg %p230
        %p520 = pneg %p254
        %p521 = pneg %p251
        %p522 = pneg %p275
        %p523 = pneg %p272
        %p524 = pneg %p296
        %p525 = pneg %p293
        %p526 = pneg %p317
        %p527 = pneg %p314
        %p528 = pneg %p345
        %p529 = pneg %p342
        %s530 = sand.u32 %s332, 1
        %s531 = scalar_lea.sflag [#allocation10], %s530
        %s532 = sand.u32 %s332, 1
        %s533 = smul.addr %s532, 8
        %s534 = scalar_lea.vmem [#allocation17], %s533
        %p535 = scmp.lt.s32.totalorder %s34, 1
        %s536 = scalar_select %p535, %s34, 1
        %p537 = scmp.lt.s32.totalorder %s35, 1
        %s538 = scalar_select %p537, %s35, 1
        %s539 = smul.addr %s536, 2
        %s540 = sadd.s32 %s538, %s539
        %s541 = smul.addr %s540, 8
        %s542 = scalar_lea.vmem %s0, %s541
        %p543 = scmp.eq.s32.totalorder %s35, 0
        // Predicated region
        $region93: #{tpu_custom_call.1} parent=71 // pred_check
          %p544 = pneg %p543
        $region94: #{tpu_custom_call.1} parent=71 // pred_check_branch
          %546 = sbr.rel (%p544) target = $region96
        $region95: #{tpu_custom_call.1} parent=71 // pred_region
          %vm547 = vcmask 523264
          %548 = vst.msk [vmem:[#allocation2] sm:$0xff] %vm547, 0.0
          %549 = vst.msk [vmem:[#allocation2 + $0x8] sm:$0xff] %vm547, 0.0
          %550 = vst.msk [vmem:[#allocation3] sm:$0xff] %vm547, 0.0
        $region96: #{tpu_custom_call.1} parent=71 // pred_fallthru
          _
        %v551 = vld [vmem:[%s542] sm:$0xff]
        %v552 = vld [vmem:[#allocation8] sm:$0xff]
        %v553 = vld [vmem:[#allocation8 + $0x8] sm:$0xff]
        %v554 = vld [vmem:[#allocation8 + $0x10] sm:$0xff]
        %v555 = vld [vmem:[#allocation8 + $0x18] sm:$0xff]
        %vm556 = vcmask 261120
        %v558 = vsel %vm556, %v551, 0
        %560 = vmatpush.msra.mxu0 0.0
        %561 = vmatpush.msra.mxu0 0.0
        %562 = vmatpush.msra.mxu0 0.0
        %563 = vmatpush.msra.mxu0 0.0
        %564 = vmatpush.msra.mxu0 0.0
        %565 = vmatpush.msra.mxu0 0.0
        %566 = vmatpush.msra.mxu0 0.0
        %567 = vmatpush.msra.mxu0 0.0
        %568 = vmatpush.msra.mxu0 0.0
        %569 = vmatpush.msra.mxu0 0.0
        %570 = vmatpush.msra.mxu0 0.0
        %571 = vmatpush.msra.mxu0 0.0
        %572 = vmatpush.msra.mxu0 %v555
        %573 = vmatpush.msra.mxu0 %v554
        %574 = vmatpush.msra.mxu0 %v553
        %575 = vmatpush.msra.mxu0 %v552
        %576 = vmatmul.f32.gmra.mxu0 %v558
        %v577 = vpop.f32.mrf.mxu0
        %v578 = vadd.f32 0.0, %v577
        %579 = vdwg.mxu0
        %v580 = vld [vmem:[#allocation11] sm:$0xff]
        %v581 = vld [vmem:[#allocation11 + $0x8] sm:$0xff]
        %v582 = vld [vmem:[#allocation11 + $0x10] sm:$0xff]
        %v583 = vld [vmem:[#allocation11 + $0x18] sm:$0xff]
        %584 = vmatpush.msra.mxu0 0.0
        %585 = vmatpush.msra.mxu0 0.0
        %586 = vmatpush.msra.mxu0 0.0
        %587 = vmatpush.msra.mxu0 0.0
        %588 = vmatpush.msra.mxu0 0.0
        %589 = vmatpush.msra.mxu0 0.0
        %590 = vmatpush.msra.mxu0 0.0
        %591 = vmatpush.msra.mxu0 0.0
        %592 = vmatpush.msra.mxu0 0.0
        %593 = vmatpush.msra.mxu0 0.0
        %594 = vmatpush.msra.mxu0 0.0
        %595 = vmatpush.msra.mxu0 0.0
        %596 = vmatpush.msra.mxu0 %v583
        %597 = vmatpush.msra.mxu0 %v582
        %598 = vmatpush.msra.mxu0 %v581
        %599 = vmatpush.msra.mxu0 %v580
        %600 = vmatmul.f32.gmra.mxu0 %v558
        %v601 = vpop.f32.mrf.mxu0
        %v602 = vadd.f32 0.0, %v601
        %603 = vdwg.mxu0
        %vm604 = vcmask 523264
        %605 = vst.msk [vmem:[#allocation3 + $0x8] sm:$0xff] %vm604, %v578
        %v606 = vld [vmem:[%s3] sm:$0xf]
        %v607 = vperm.slane %v606, 3
        %v608 = vmul.f32 %v578, %v607
        %v609 = vld [vmem:[#allocation3 + $0x5] sm:$0xff]
        %v610 = vperm.slane %v606, 0
        %v611 = vmul.f32 %v609, %v610
        %v612 = vadd.f32 %v608, %v611
        %v613 = vld [vmem:[#allocation3 + $0x6] sm:$0xff]
        %v614 = vperm.slane %v606, 1
        %v615 = vmul.f32 %v613, %v614
        %v616 = vadd.f32 %v612, %v615
        %v617 = vld [vmem:[#allocation3 + $0x7] sm:$0xff]
        %v618 = vperm.slane %v606, 2
        %v619 = vmul.f32 %v617, %v618
        %v620 = vadd.f32 %v616, %v619
        %vm621 = vcmask 523269
        %622 = vst.msk [vmem:[#allocation3] sm:$0xe0] %vm621, %v578
        %v623 = vld [vmem:[#allocation13] sm:$0x1]
        %v625 = vperm.slane %v623, 0
        %v627 = vadd.f32 %v620, %v625
        %v628 = vxor.u32 %v627, 2147483648
        %v629 = vmul.f32 %v628, 1.442695
        %v630 = vpow.pop %v629
        %v631 = vadd.f32 %v630, 1.0
        %v632 = vrcp.pop %v631
        %v633 = vmul.f32 %v631, %v632
        %v634 = vsub.f32 1.0, %v633
        %v635 = vmul.f32 %v632, %v634
        %v636 = vadd.f32 %v632, %v635
        %vm637 = vweird.f32 %v631
        %vm638 = vweird.f32 %v632
        %vm639 = vmor %vm637, %vm638
        %v640 = vsel %vm639, %v632, %v636
        %v641 = vand.u32 2147483647, %v631
        %vm642 = vcmp.eq.f32.partialorder %v641, 8.507059e+37
        %v643 = vand.u32 %v631, 2147483648
        %v644 = vor.u32 1.1754944e-38, %v643
        %v645 = vsel %vm642, %v644, %v640
        %v646 = vmul.f32 1.0, %v645
        %v647 = vmul.f32 %v627, %v646
        %v648 = vld [vmem:[%s5] sm:$0xff]
        %v649 = vld [vmem:[%s5 + $0x8] sm:$0xff]
        %v650 = vld [vmem:[%s5 + $0x10] sm:$0xff]
        %v651 = vld [vmem:[%s5 + $0x18] sm:$0xff]
        %v652 = vld [vmem:[%s5 + $0x20] sm:$0xff]
        %v653 = vld [vmem:[%s5 + $0x28] sm:$0xff]
        %v654 = vld [vmem:[%s5 + $0x30] sm:$0xff]
        %v655 = vld [vmem:[%s5 + $0x38] sm:$0xff]
        %v657 = vsel %vm604, %v647, 0
        %659 = vmatpush.msra.mxu0 0.0
        %660 = vmatpush.msra.mxu0 0.0
        %661 = vmatpush.msra.mxu0 0.0
        %662 = vmatpush.msra.mxu0 0.0
        %663 = vmatpush.msra.mxu0 0.0
        %664 = vmatpush.msra.mxu0 0.0
        %665 = vmatpush.msra.mxu0 0.0
        %666 = vmatpush.msra.mxu0 0.0
        %667 = vmatpush.msra.mxu0 %v655
        %668 = vmatpush.msra.mxu0 %v654
        %669 = vmatpush.msra.mxu0 %v653
        %670 = vmatpush.msra.mxu0 %v652
        %671 = vmatpush.msra.mxu0 %v651
        %672 = vmatpush.msra.mxu0 %v650
        %673 = vmatpush.msra.mxu0 %v649
        %674 = vmatpush.msra.mxu0 %v648
        %675 = vmatmul.f32.gmra.mxu0 %v657
        %v676 = vpop.f32.mrf.mxu0
        %v677 = vadd.f32 0.0, %v676
        %678 = vdwg.mxu0
        %v679 = vld [vmem:[#allocation14] sm:$0x3]
        %681 = vset.pattern.permute.xlu0 0
        %682 = vperm.xlu0 %681, %v677
        %v683 = vpop.permute.xlu0 %682
        %v685 = vperm.slane %v679, 0
        %v686 = vmul.f32 %v683, %v685
        %v687 = vadd.f32 %v686, 0.0
        %688 = vset.pattern.permute.xlu0 1
        %689 = vperm.xlu0 %688, %v677
        %v690 = vpop.permute.xlu0 %689
        %v692 = vperm.slane %v679, 1
        %v693 = vmul.f32 %v690, %v692
        %v694 = vadd.f32 %v687, %v693
        %v695 = vld [vmem:[%s7] sm:$0x1]
        %v697 = vperm.slane %v695, 0
        %v699 = vadd.f32 %v694, %v697
        %vm700 = vcmp.gt.f32.partialorder %v699, 20.0
        %v701 = vmin.f32 %v699, 20.0
        %v702 = vmul.f32 %v701, 1.442695
        %v703 = vpow.pop %v702
        %v704 = vadd.f32 %v703, 1.0
        %v705 = vlog2.pop %v704
        %v706 = vmul.f32 %v705, 0.6931472
        %v707 = vmul.f32 -0.5, %v703
        %v708 = vadd.f32 %v707, 1.0
        %v709 = vmul.f32 %v708, %v703
        %v710 = vand.u32 2147483647, %v703
        %vm711 = vcmp.lt.f32.partialorder %v710, 0.0004427343
        %v712 = vsel %vm711, %v709, %v706
        %v713 = vsel %vm700, %v699, %v712
        %v714 = vld [vmem:[#allocation16] sm:$0xff]
        %v715 = vld [vmem:[#allocation16 + $0x8] sm:$0xff]
        %v717 = vrot.slane %v713, 1
        %v718 = vrot.slane %v713, 2
        %v719 = vrot.slane %v713, 3
        %v720 = vrot.slane %v713, 4
        %v721 = vrot.slane %v713, 5
        %v722 = vrot.slane %v713, 6
        %v723 = vrot.slane %v713, 7
        %v724 = vperm.slane %v713, 0
        %v725 = vperm.slane %v717, 0
        %v726 = vperm.slane %v718, 0
        %v727 = vperm.slane %v719, 0
        %v728 = vperm.slane %v720, 0
        %v729 = vperm.slane %v721, 0
        %v730 = vperm.slane %v722, 0
        %v731 = vperm.slane %v723, 0
        %v740 = vmul.f32 %v724, %v714
        %v741 = vmul.f32 %v724, %v715
        %v742 = vmul.f32 %v725, %v714
        %v743 = vmul.f32 %v725, %v715
        %v744 = vmul.f32 %v726, %v714
        %v745 = vmul.f32 %v726, %v715
        %v746 = vmul.f32 %v727, %v714
        %v747 = vmul.f32 %v727, %v715
        %v748 = vmul.f32 %v728, %v714
        %v749 = vmul.f32 %v728, %v715
        %v750 = vmul.f32 %v729, %v714
        %v751 = vmul.f32 %v729, %v715
        %v752 = vmul.f32 %v730, %v714
        %v753 = vmul.f32 %v730, %v715
        %v754 = vmul.f32 %v731, %v714
        %v755 = vmul.f32 %v731, %v715
        %v756 = vmul.f32 %v740, 1.442695
        %v757 = vpow.pop %v756
        %v758 = vmul.f32 %v741, 1.442695
        %v759 = vpow.pop %v758
        %v760 = vmul.f32 %v742, 1.442695
        %v761 = vpow.pop %v760
        %v762 = vmul.f32 %v743, 1.442695
        %v763 = vpow.pop %v762
        %v764 = vmul.f32 %v744, 1.442695
        %v765 = vpow.pop %v764
        %v766 = vmul.f32 %v745, 1.442695
        %v767 = vpow.pop %v766
        %v768 = vmul.f32 %v746, 1.442695
        %v769 = vpow.pop %v768
        %v770 = vmul.f32 %v747, 1.442695
        %v771 = vpow.pop %v770
        %v772 = vmul.f32 %v748, 1.442695
        %v773 = vpow.pop %v772
        %v774 = vmul.f32 %v749, 1.442695
        %v775 = vpow.pop %v774
        %v776 = vmul.f32 %v750, 1.442695
        %v777 = vpow.pop %v776
        %v778 = vmul.f32 %v751, 1.442695
        %v779 = vpow.pop %v778
        %v780 = vmul.f32 %v752, 1.442695
        %v781 = vpow.pop %v780
        %v782 = vmul.f32 %v753, 1.442695
        %v783 = vpow.pop %v782
        %v784 = vmul.f32 %v754, 1.442695
        %v785 = vpow.pop %v784
        %v786 = vmul.f32 %v755, 1.442695
        %v787 = vpow.pop %v786
        %788 = vst.msk [vmem:[#allocation4] sm:$0xff] %vm604, %v757
        %789 = vst.msk [vmem:[#allocation4 + $0x8] sm:$0xff] %vm604, %v759
        %790 = vst.msk [vmem:[#allocation4 + $0x10] sm:$0xff] %vm604, %v761
        %791 = vst.msk [vmem:[#allocation4 + $0x18] sm:$0xff] %vm604, %v763
        %792 = vst.msk [vmem:[#allocation4 + $0x20] sm:$0xff] %vm604, %v765
        %793 = vst.msk [vmem:[#allocation4 + $0x28] sm:$0xff] %vm604, %v767
        %794 = vst.msk [vmem:[#allocation4 + $0x30] sm:$0xff] %vm604, %v769
        %795 = vst.msk [vmem:[#allocation4 + $0x38] sm:$0xff] %vm604, %v771
        %796 = vst.msk [vmem:[#allocation4 + $0x40] sm:$0xff] %vm604, %v773
        %797 = vst.msk [vmem:[#allocation4 + $0x48] sm:$0xff] %vm604, %v775
        %798 = vst.msk [vmem:[#allocation4 + $0x50] sm:$0xff] %vm604, %v777
        %799 = vst.msk [vmem:[#allocation4 + $0x58] sm:$0xff] %vm604, %v779
        %800 = vst.msk [vmem:[#allocation4 + $0x60] sm:$0xff] %vm604, %v781
        %801 = vst.msk [vmem:[#allocation4 + $0x68] sm:$0xff] %vm604, %v783
        %802 = vst.msk [vmem:[#allocation4 + $0x70] sm:$0xff] %vm604, %v785
        %803 = vst.msk [vmem:[#allocation4 + $0x78] sm:$0xff] %vm604, %v787
        %v804 = vmul.f32 %v713, %v647
        %v806 = vrot.slane %v804, 1
        %v807 = vrot.slane %v804, 2
        %v808 = vrot.slane %v804, 3
        %v809 = vrot.slane %v804, 4
        %v810 = vrot.slane %v804, 5
        %v811 = vrot.slane %v804, 6
        %v812 = vrot.slane %v804, 7
        %v813 = vperm.slane %v677, 0
        %v814 = vlaneseq
        %v815 = vshrl.u32 %v814, 7
        %v816 = vadd.s32 %v815, 2
        %817 = vset.pattern.permute.xlu0 %v816
        %818 = vperm.xlu0 %817, %v813
        %v819 = vpop.permute.xlu0 %818
        %v820 = vlaneseq
        %v821 = vshrl.u32 %v820, 7
        %v822 = vadd.s32 %v821, 10
        %823 = vset.pattern.permute.xlu0 %v822
        %824 = vperm.xlu0 %823, %v813
        %v825 = vpop.permute.xlu0 %824
        %v826 = vperm.slane %v677, 1
        %v827 = vlaneseq
        %v828 = vshrl.u32 %v827, 7
        %v829 = vadd.s32 %v828, 2
        %830 = vset.pattern.permute.xlu0 %v829
        %831 = vperm.xlu0 %830, %v826
        %v832 = vpop.permute.xlu0 %831
        %v833 = vlaneseq
        %v834 = vshrl.u32 %v833, 7
        %v835 = vadd.s32 %v834, 10
        %836 = vset.pattern.permute.xlu0 %v835
        %837 = vperm.xlu0 %836, %v826
        %v838 = vpop.permute.xlu0 %837
        %v839 = vperm.slane %v677, 2
        %v840 = vlaneseq
        %v841 = vshrl.u32 %v840, 7
        %v842 = vadd.s32 %v841, 2
        %843 = vset.pattern.permute.xlu0 %v842
        %844 = vperm.xlu0 %843, %v839
        %v845 = vpop.permute.xlu0 %844
        %v846 = vlaneseq
        %v847 = vshrl.u32 %v846, 7
        %v848 = vadd.s32 %v847, 10
        %849 = vset.pattern.permute.xlu0 %v848
        %850 = vperm.xlu0 %849, %v839
        %v851 = vpop.permute.xlu0 %850
        %v852 = vperm.slane %v677, 3
        %v853 = vlaneseq
        %v854 = vshrl.u32 %v853, 7
        %v855 = vadd.s32 %v854, 2
        %856 = vset.pattern.permute.xlu0 %v855
        %857 = vperm.xlu0 %856, %v852
        %v858 = vpop.permute.xlu0 %857
        %v859 = vlaneseq
        %v860 = vshrl.u32 %v859, 7
        %v861 = vadd.s32 %v860, 10
        %862 = vset.pattern.permute.xlu0 %v861
        %863 = vperm.xlu0 %862, %v852
        %v864 = vpop.permute.xlu0 %863
        %v865 = vperm.slane %v677, 4
        %v866 = vlaneseq
        %v867 = vshrl.u32 %v866, 7
        %v868 = vadd.s32 %v867, 2
        %869 = vset.pattern.permute.xlu0 %v868
        %870 = vperm.xlu0 %869, %v865
        %v871 = vpop.permute.xlu0 %870
        %v872 = vlaneseq
        %v873 = vshrl.u32 %v872, 7
        %v874 = vadd.s32 %v873, 10
        %875 = vset.pattern.permute.xlu0 %v874
        %876 = vperm.xlu0 %875, %v865
        %v877 = vpop.permute.xlu0 %876
        %v878 = vperm.slane %v677, 5
        %v879 = vlaneseq
        %v880 = vshrl.u32 %v879, 7
        %v881 = vadd.s32 %v880, 2
        %882 = vset.pattern.permute.xlu0 %v881
        %883 = vperm.xlu0 %882, %v878
        %v884 = vpop.permute.xlu0 %883
        %v885 = vlaneseq
        %v886 = vshrl.u32 %v885, 7
        %v887 = vadd.s32 %v886, 10
        %888 = vset.pattern.permute.xlu0 %v887
        %889 = vperm.xlu0 %888, %v878
        %v890 = vpop.permute.xlu0 %889
        %v891 = vperm.slane %v677, 6
        %v892 = vlaneseq
        %v893 = vshrl.u32 %v892, 7
        %v894 = vadd.s32 %v893, 2
        %895 = vset.pattern.permute.xlu0 %v894
        %896 = vperm.xlu0 %895, %v891
        %v897 = vpop.permute.xlu0 %896
        %v898 = vlaneseq
        %v899 = vshrl.u32 %v898, 7
        %v900 = vadd.s32 %v899, 10
        %901 = vset.pattern.permute.xlu0 %v900
        %902 = vperm.xlu0 %901, %v891
        %v903 = vpop.permute.xlu0 %902
        %v904 = vperm.slane %v677, 7
        %v905 = vlaneseq
        %v906 = vshrl.u32 %v905, 7
        %v907 = vadd.s32 %v906, 2
        %908 = vset.pattern.permute.xlu0 %v907
        %909 = vperm.xlu0 %908, %v904
        %v910 = vpop.permute.xlu0 %909
        %v911 = vlaneseq
        %v912 = vshrl.u32 %v911, 7
        %v913 = vadd.s32 %v912, 10
        %914 = vset.pattern.permute.xlu0 %v913
        %915 = vperm.xlu0 %914, %v904
        %v916 = vpop.permute.xlu0 %915
        %v917 = vperm.slane %v804, 0
        %v918 = vperm.slane %v806, 0
        %v919 = vperm.slane %v807, 0
        %v920 = vperm.slane %v808, 0
        %v921 = vperm.slane %v809, 0
        %v922 = vperm.slane %v810, 0
        %v923 = vperm.slane %v811, 0
        %v924 = vperm.slane %v812, 0
        %v933 = vmul.f32 %v917, %v819
        %v934 = vmul.f32 %v917, %v825
        %v935 = vmul.f32 %v918, %v832
        %v936 = vmul.f32 %v918, %v838
        %v937 = vmul.f32 %v919, %v845
        %v938 = vmul.f32 %v919, %v851
        %v939 = vmul.f32 %v920, %v858
        %v940 = vmul.f32 %v920, %v864
        %v941 = vmul.f32 %v921, %v871
        %v942 = vmul.f32 %v921, %v877
        %v943 = vmul.f32 %v922, %v884
        %v944 = vmul.f32 %v922, %v890
        %v945 = vmul.f32 %v923, %v897
        %v946 = vmul.f32 %v923, %v903
        %v947 = vmul.f32 %v924, %v910
        %v948 = vmul.f32 %v924, %v916
        %949 = vst.msk [vmem:[#allocation5] sm:$0xff] %vm604, %v933
        %950 = vst.msk [vmem:[#allocation5 + $0x8] sm:$0xff] %vm604, %v934
        %951 = vst.msk [vmem:[#allocation5 + $0x10] sm:$0xff] %vm604, %v935
        %952 = vst.msk [vmem:[#allocation5 + $0x18] sm:$0xff] %vm604, %v936
        %953 = vst.msk [vmem:[#allocation5 + $0x20] sm:$0xff] %vm604, %v937
        %954 = vst.msk [vmem:[#allocation5 + $0x28] sm:$0xff] %vm604, %v938
        %955 = vst.msk [vmem:[#allocation5 + $0x30] sm:$0xff] %vm604, %v939
        %956 = vst.msk [vmem:[#allocation5 + $0x38] sm:$0xff] %vm604, %v940
        %957 = vst.msk [vmem:[#allocation5 + $0x40] sm:$0xff] %vm604, %v941
        %958 = vst.msk [vmem:[#allocation5 + $0x48] sm:$0xff] %vm604, %v942
        %959 = vst.msk [vmem:[#allocation5 + $0x50] sm:$0xff] %vm604, %v943
        %960 = vst.msk [vmem:[#allocation5 + $0x58] sm:$0xff] %vm604, %v944
        %961 = vst.msk [vmem:[#allocation5 + $0x60] sm:$0xff] %vm604, %v945
        %962 = vst.msk [vmem:[#allocation5 + $0x68] sm:$0xff] %vm604, %v946
        %963 = vst.msk [vmem:[#allocation5 + $0x70] sm:$0xff] %vm604, %v947
        %964 = vst.msk [vmem:[#allocation5 + $0x78] sm:$0xff] %vm604, %v948
        %v965 = vlaneseq
        %v966 = vshrl.u32 %v965, 7
        %v967 = vadd.s32 %v966, 18
        %968 = vset.pattern.permute.xlu0 %v967
        %969 = vperm.xlu0 %968, %v813
        %v970 = vpop.permute.xlu0 %969
        %v971 = vlaneseq
        %v972 = vshrl.u32 %v971, 7
        %v973 = vadd.s32 %v972, 26
        %974 = vset.pattern.permute.xlu0 %v973
        %975 = vperm.xlu0 %974, %v813
        %v976 = vpop.permute.xlu0 %975
        %v977 = vlaneseq
        %v978 = vshrl.u32 %v977, 7
        %v979 = vadd.s32 %v978, 18
        %980 = vset.pattern.permute.xlu0 %v979
        %981 = vperm.xlu0 %980, %v826
        %v982 = vpop.permute.xlu0 %981
        %v983 = vlaneseq
        %v984 = vshrl.u32 %v983, 7
        %v985 = vadd.s32 %v984, 26
        %986 = vset.pattern.permute.xlu0 %v985
        %987 = vperm.xlu0 %986, %v826
        %v988 = vpop.permute.xlu0 %987
        %v989 = vlaneseq
        %v990 = vshrl.u32 %v989, 7
        %v991 = vadd.s32 %v990, 18
        %992 = vset.pattern.permute.xlu0 %v991
        %993 = vperm.xlu0 %992, %v839
        %v994 = vpop.permute.xlu0 %993
        %v995 = vlaneseq
        %v996 = vshrl.u32 %v995, 7
        %v997 = vadd.s32 %v996, 26
        %998 = vset.pattern.permute.xlu0 %v997
        %999 = vperm.xlu0 %998, %v839
        %v1000 = vpop.permute.xlu0 %999
        %v1001 = vlaneseq
        %v1002 = vshrl.u32 %v1001, 7
        %v1003 = vadd.s32 %v1002, 18
        %1004 = vset.pattern.permute.xlu0 %v1003
        %1005 = vperm.xlu0 %1004, %v852
        %v1006 = vpop.permute.xlu0 %1005
        %v1007 = vlaneseq
        %v1008 = vshrl.u32 %v1007, 7
        %v1009 = vadd.s32 %v1008, 26
        %1010 = vset.pattern.permute.xlu0 %v1009
        %1011 = vperm.xlu0 %1010, %v852
        %v1012 = vpop.permute.xlu0 %1011
        %v1013 = vlaneseq
        %v1014 = vshrl.u32 %v1013, 7
        %v1015 = vadd.s32 %v1014, 18
        %1016 = vset.pattern.permute.xlu0 %v1015
        %1017 = vperm.xlu0 %1016, %v865
        %v1018 = vpop.permute.xlu0 %1017
        %v1019 = vlaneseq
        %v1020 = vshrl.u32 %v1019, 7
        %v1021 = vadd.s32 %v1020, 26
        %1022 = vset.pattern.permute.xlu0 %v1021
        %1023 = vperm.xlu0 %1022, %v865
        %v1024 = vpop.permute.xlu0 %1023
        %v1025 = vlaneseq
        %v1026 = vshrl.u32 %v1025, 7
        %v1027 = vadd.s32 %v1026, 18
        %1028 = vset.pattern.permute.xlu0 %v1027
        %1029 = vperm.xlu0 %1028, %v878
        %v1030 = vpop.permute.xlu0 %1029
        %v1031 = vlaneseq
        %v1032 = vshrl.u32 %v1031, 7
        %v1033 = vadd.s32 %v1032, 26
        %1034 = vset.pattern.permute.xlu0 %v1033
        %1035 = vperm.xlu0 %1034, %v878
        %v1036 = vpop.permute.xlu0 %1035
        %v1037 = vlaneseq
        %v1038 = vshrl.u32 %v1037, 7
        %v1039 = vadd.s32 %v1038, 18
        %1040 = vset.pattern.permute.xlu0 %v1039
        %1041 = vperm.xlu0 %1040, %v891
        %v1042 = vpop.permute.xlu0 %1041
        %v1043 = vlaneseq
        %v1044 = vshrl.u32 %v1043, 7
        %v1045 = vadd.s32 %v1044, 26
        %1046 = vset.pattern.permute.xlu0 %v1045
        %1047 = vperm.xlu0 %1046, %v891
        %v1048 = vpop.permute.xlu0 %1047
        %v1049 = vlaneseq
        %v1050 = vshrl.u32 %v1049, 7
        %v1051 = vadd.s32 %v1050, 18
        %1052 = vset.pattern.permute.xlu0 %v1051
        %1053 = vperm.xlu0 %1052, %v904
        %v1054 = vpop.permute.xlu0 %1053
        %v1055 = vlaneseq
        %v1056 = vshrl.u32 %v1055, 7
        %v1057 = vadd.s32 %v1056, 26
        %1058 = vset.pattern.permute.xlu0 %v1057
        %1059 = vperm.xlu0 %1058, %v904
        %v1060 = vpop.permute.xlu0 %1059
        %vm1061 = vcmask 7168
        %1062 = vst.msk [vmem:[#allocation6] sm:$0xff] %vm1061, %v970
        %1063 = vst.msk [vmem:[#allocation6 + $0x8] sm:$0xff] %vm1061, %v976
        %1064 = vst.msk [vmem:[#allocation6 + $0x10] sm:$0xff] %vm1061, %v982
        %1065 = vst.msk [vmem:[#allocation6 + $0x18] sm:$0xff] %vm1061, %v988
        %1066 = vst.msk [vmem:[#allocation6 + $0x20] sm:$0xff] %vm1061, %v994
        %1067 = vst.msk [vmem:[#allocation6 + $0x28] sm:$0xff] %vm1061, %v1000
        %1068 = vst.msk [vmem:[#allocation6 + $0x30] sm:$0xff] %vm1061, %v1006
        %1069 = vst.msk [vmem:[#allocation6 + $0x38] sm:$0xff] %vm1061, %v1012
        %1070 = vst.msk [vmem:[#allocation6 + $0x40] sm:$0xff] %vm1061, %v1018
        %1071 = vst.msk [vmem:[#allocation6 + $0x48] sm:$0xff] %vm1061, %v1024
        %1072 = vst.msk [vmem:[#allocation6 + $0x50] sm:$0xff] %vm1061, %v1030
        %1073 = vst.msk [vmem:[#allocation6 + $0x58] sm:$0xff] %vm1061, %v1036
        %1074 = vst.msk [vmem:[#allocation6 + $0x60] sm:$0xff] %vm1061, %v1042
        %1075 = vst.msk [vmem:[#allocation6 + $0x68] sm:$0xff] %vm1061, %v1048
        %1076 = vst.msk [vmem:[#allocation6 + $0x70] sm:$0xff] %vm1061, %v1054
        %1077 = vst.msk [vmem:[#allocation6 + $0x78] sm:$0xff] %vm1061, %v1060
        %v1078 = vld [vmem:[#allocation2] sm:$0xff]
        %v1079 = vld [vmem:[#allocation2 + $0x8] sm:$0xff]
        %v1080 = vld [vmem:[#allocation4] sm:$0xff]
        %v1081 = vld [vmem:[#allocation4 + $0x8] sm:$0xff]
        %v1082 = vmul.f32 %v1080, %v1078
        %v1083 = vmul.f32 %v1081, %v1079
        %v1084 = vld [vmem:[#allocation5] sm:$0xff]
        %v1085 = vld [vmem:[#allocation5 + $0x8] sm:$0xff]
        %v1086 = vadd.f32 %v1082, %v1084
        %v1087 = vadd.f32 %v1083, %v1085
        %v1088 = vld [vmem:[#allocation6] sm:$0xff]
        %v1089 = vld [vmem:[#allocation6 + $0x8] sm:$0xff]
        %1091 = vset.pattern.permute.xlu0 0
        %1092 = vperm.xlu0 %1091, %v1088
        %v1093 = vpop.permute.xlu0 %1092
        %1096 = vset.pattern.permute.xlu0 0
        %1097 = vperm.xlu0 %1096, %v1089
        %v1098 = vpop.permute.xlu0 %1097
        %v1100 = vmul.f32 %v1086, %v1093
        %v1101 = vmul.f32 %v1087, %v1098
        %v1102 = vsel %vm604, %v1100, 0.0
        %v1103 = vsel %vm604, %v1101, 0.0
        %v1104 = vadd.f32 %v1102, %v1103
        %v1105 = vrot.slane %v1104, 4
        %v1106 = vadd.f32 %v1104, %v1105
        %v1107 = vrot.slane %v1106, 2
        %v1108 = vadd.f32 %v1106, %v1107
        %v1109 = vrot.slane %v1108, 1
        %v1110 = vadd.f32 %v1108, %v1109
        %vm1111 = vcmask 516096
        %1112 = vst.msk [vmem:[#allocation7] sm:$0x1] %vm1111, %v1110
        %s1113 = scalar_lea.vmem [#allocation4], 16
        %v1114 = vld [vmem:[%s1113] sm:$0xff]
        %v1115 = vld [vmem:[%s1113 + $0x8] sm:$0xff]
        %v1116 = vmul.f32 %v1114, %v1086
        %v1117 = vmul.f32 %v1115, %v1087
        %s1118 = scalar_lea.vmem [#allocation5], 16
        %v1119 = vld [vmem:[%s1118] sm:$0xff]
        %v1120 = vld [vmem:[%s1118 + $0x8] sm:$0xff]
        %v1121 = vadd.f32 %v1116, %v1119
        %v1122 = vadd.f32 %v1117, %v1120
        %s1123 = scalar_lea.vmem [#allocation6], 16
        %v1124 = vld [vmem:[%s1123] sm:$0xff]
        %v1125 = vld [vmem:[%s1123 + $0x8] sm:$0xff]
        %1127 = vset.pattern.permute.xlu0 0
        %1128 = vperm.xlu0 %1127, %v1124
        %v1129 = vpop.permute.xlu0 %1128
        %1132 = vset.pattern.permute.xlu0 0
        %1133 = vperm.xlu0 %1132, %v1125
        %v1134 = vpop.permute.xlu0 %1133
        %v1136 = vmul.f32 %v1121, %v1129
        %v1137 = vmul.f32 %v1122, %v1134
        %v1138 = vsel %vm604, %v1136, 0.0
        %v1139 = vsel %vm604, %v1137, 0.0
        %v1140 = vadd.f32 %v1138, %v1139
        %v1141 = vrot.slane %v1140, 4
        %v1142 = vadd.f32 %v1140, %v1141
        %v1143 = vrot.slane %v1142, 2
        %v1144 = vadd.f32 %v1142, %v1143
        %v1145 = vrot.slane %v1144, 1
        %v1146 = vadd.f32 %v1144, %v1145
        %1147 = vst.msk [vmem:[#allocation7 + $0x1] sm:$0x1] %vm1111, %v1146
        %s1148 = scalar_lea.vmem [#allocation4], 32
        %v1149 = vld [vmem:[%s1148] sm:$0xff]
        %v1150 = vld [vmem:[%s1148 + $0x8] sm:$0xff]
        %v1151 = vmul.f32 %v1149, %v1121
        %v1152 = vmul.f32 %v1150, %v1122
        %s1153 = scalar_lea.vmem [#allocation5], 32
        %v1154 = vld [vmem:[%s1153] sm:$0xff]
        %v1155 = vld [vmem:[%s1153 + $0x8] sm:$0xff]
        %v1156 = vadd.f32 %v1151, %v1154
        %v1157 = vadd.f32 %v1152, %v1155
        %s1158 = scalar_lea.vmem [#allocation6], 32
        %v1159 = vld [vmem:[%s1158] sm:$0xff]
        %v1160 = vld [vmem:[%s1158 + $0x8] sm:$0xff]
        %1162 = vset.pattern.permute.xlu0 0
        %1163 = vperm.xlu0 %1162, %v1159
        %v1164 = vpop.permute.xlu0 %1163
        %1167 = vset.pattern.permute.xlu0 0
        %1168 = vperm.xlu0 %1167, %v1160
        %v1169 = vpop.permute.xlu0 %1168
        %v1171 = vmul.f32 %v1156, %v1164
        %v1172 = vmul.f32 %v1157, %v1169
        %v1173 = vsel %vm604, %v1171, 0.0
        %v1174 = vsel %vm604, %v1172, 0.0
        %v1175 = vadd.f32 %v1173, %v1174
        %v1176 = vrot.slane %v1175, 4
        %v1177 = vadd.f32 %v1175, %v1176
        %v1178 = vrot.slane %v1177, 2
        %v1179 = vadd.f32 %v1177, %v1178
        %v1180 = vrot.slane %v1179, 1
        %v1181 = vadd.f32 %v1179, %v1180
        %1182 = vst.msk [vmem:[#allocation7 + $0x2] sm:$0x1] %vm1111, %v1181
        %s1183 = scalar_lea.vmem [#allocation4], 48
        %v1184 = vld [vmem:[%s1183] sm:$0xff]
        %v1185 = vld [vmem:[%s1183 + $0x8] sm:$0xff]
        %v1186 = vmul.f32 %v1184, %v1156
        %v1187 = vmul.f32 %v1185, %v1157
        %s1188 = scalar_lea.vmem [#allocation5], 48
        %v1189 = vld [vmem:[%s1188] sm:$0xff]
        %v1190 = vld [vmem:[%s1188 + $0x8] sm:$0xff]
        %v1191 = vadd.f32 %v1186, %v1189
        %v1192 = vadd.f32 %v1187, %v1190
        %s1193 = scalar_lea.vmem [#allocation6], 48
        %v1194 = vld [vmem:[%s1193] sm:$0xff]
        %v1195 = vld [vmem:[%s1193 + $0x8] sm:$0xff]
        %1197 = vset.pattern.permute.xlu0 0
        %1198 = vperm.xlu0 %1197, %v1194
        %v1199 = vpop.permute.xlu0 %1198
        %1202 = vset.pattern.permute.xlu0 0
        %1203 = vperm.xlu0 %1202, %v1195
        %v1204 = vpop.permute.xlu0 %1203
        %v1206 = vmul.f32 %v1191, %v1199
        %v1207 = vmul.f32 %v1192, %v1204
        %v1208 = vsel %vm604, %v1206, 0.0
        %v1209 = vsel %vm604, %v1207, 0.0
        %v1210 = vadd.f32 %v1208, %v1209
        %v1211 = vrot.slane %v1210, 4
        %v1212 = vadd.f32 %v1210, %v1211
        %v1213 = vrot.slane %v1212, 2
        %v1214 = vadd.f32 %v1212, %v1213
        %v1215 = vrot.slane %v1214, 1
        %v1216 = vadd.f32 %v1214, %v1215
        %1217 = vst.msk [vmem:[#allocation7 + $0x3] sm:$0x1] %vm1111, %v1216
        %s1218 = scalar_lea.vmem [#allocation4], 64
        %v1219 = vld [vmem:[%s1218] sm:$0xff]
        %v1220 = vld [vmem:[%s1218 + $0x8] sm:$0xff]
        %v1221 = vmul.f32 %v1219, %v1191
        %v1222 = vmul.f32 %v1220, %v1192
        %s1223 = scalar_lea.vmem [#allocation5], 64
        %v1224 = vld [vmem:[%s1223] sm:$0xff]
        %v1225 = vld [vmem:[%s1223 + $0x8] sm:$0xff]
        %v1226 = vadd.f32 %v1221, %v1224
        %v1227 = vadd.f32 %v1222, %v1225
        %s1228 = scalar_lea.vmem [#allocation6], 64
        %v1229 = vld [vmem:[%s1228] sm:$0xff]
        %v1230 = vld [vmem:[%s1228 + $0x8] sm:$0xff]
        %1232 = vset.pattern.permute.xlu0 0
        %1233 = vperm.xlu0 %1232, %v1229
        %v1234 = vpop.permute.xlu0 %1233
        %1237 = vset.pattern.permute.xlu0 0
        %1238 = vperm.xlu0 %1237, %v1230
        %v1239 = vpop.permute.xlu0 %1238
        %v1241 = vmul.f32 %v1226, %v1234
        %v1242 = vmul.f32 %v1227, %v1239
        %v1243 = vsel %vm604, %v1241, 0.0
        %v1244 = vsel %vm604, %v1242, 0.0
        %v1245 = vadd.f32 %v1243, %v1244
        %v1246 = vrot.slane %v1245, 4
        %v1247 = vadd.f32 %v1245, %v1246
        %v1248 = vrot.slane %v1247, 2
        %v1249 = vadd.f32 %v1247, %v1248
        %v1250 = vrot.slane %v1249, 1
        %v1251 = vadd.f32 %v1249, %v1250
        %1252 = vst.msk [vmem:[#allocation7 + $0x4] sm:$0x1] %vm1111, %v1251
        %s1253 = scalar_lea.vmem [#allocation4], 80
        %v1254 = vld [vmem:[%s1253] sm:$0xff]
        %v1255 = vld [vmem:[%s1253 + $0x8] sm:$0xff]
        %v1256 = vmul.f32 %v1254, %v1226
        %v1257 = vmul.f32 %v1255, %v1227
        %s1258 = scalar_lea.vmem [#allocation5], 80
        %v1259 = vld [vmem:[%s1258] sm:$0xff]
        %v1260 = vld [vmem:[%s1258 + $0x8] sm:$0xff]
        %v1261 = vadd.f32 %v1256, %v1259
        %v1262 = vadd.f32 %v1257, %v1260
        %s1263 = scalar_lea.vmem [#allocation6], 80
        %v1264 = vld [vmem:[%s1263] sm:$0xff]
        %v1265 = vld [vmem:[%s1263 + $0x8] sm:$0xff]
        %1267 = vset.pattern.permute.xlu0 0
        %1268 = vperm.xlu0 %1267, %v1264
        %v1269 = vpop.permute.xlu0 %1268
        %1272 = vset.pattern.permute.xlu0 0
        %1273 = vperm.xlu0 %1272, %v1265
        %v1274 = vpop.permute.xlu0 %1273
        %v1276 = vmul.f32 %v1261, %v1269
        %v1277 = vmul.f32 %v1262, %v1274
        %v1278 = vsel %vm604, %v1276, 0.0
        %v1279 = vsel %vm604, %v1277, 0.0
        %v1280 = vadd.f32 %v1278, %v1279
        %v1281 = vrot.slane %v1280, 4
        %v1282 = vadd.f32 %v1280, %v1281
        %v1283 = vrot.slane %v1282, 2
        %v1284 = vadd.f32 %v1282, %v1283
        %v1285 = vrot.slane %v1284, 1
        %v1286 = vadd.f32 %v1284, %v1285
        %1287 = vst.msk [vmem:[#allocation7 + $0x5] sm:$0x1] %vm1111, %v1286
        %s1288 = scalar_lea.vmem [#allocation4], 96
        %v1289 = vld [vmem:[%s1288] sm:$0xff]
        %v1290 = vld [vmem:[%s1288 + $0x8] sm:$0xff]
        %v1291 = vmul.f32 %v1289, %v1261
        %v1292 = vmul.f32 %v1290, %v1262
        %s1293 = scalar_lea.vmem [#allocation5], 96
        %v1294 = vld [vmem:[%s1293] sm:$0xff]
        %v1295 = vld [vmem:[%s1293 + $0x8] sm:$0xff]
        %v1296 = vadd.f32 %v1291, %v1294
        %v1297 = vadd.f32 %v1292, %v1295
        %s1298 = scalar_lea.vmem [#allocation6], 96
        %v1299 = vld [vmem:[%s1298] sm:$0xff]
        %v1300 = vld [vmem:[%s1298 + $0x8] sm:$0xff]
        %1302 = vset.pattern.permute.xlu0 0
        %1303 = vperm.xlu0 %1302, %v1299
        %v1304 = vpop.permute.xlu0 %1303
        %1307 = vset.pattern.permute.xlu0 0
        %1308 = vperm.xlu0 %1307, %v1300
        %v1309 = vpop.permute.xlu0 %1308
        %v1311 = vmul.f32 %v1296, %v1304
        %v1312 = vmul.f32 %v1297, %v1309
        %v1313 = vsel %vm604, %v1311, 0.0
        %v1314 = vsel %vm604, %v1312, 0.0
        %v1315 = vadd.f32 %v1313, %v1314
        %v1316 = vrot.slane %v1315, 4
        %v1317 = vadd.f32 %v1315, %v1316
        %v1318 = vrot.slane %v1317, 2
        %v1319 = vadd.f32 %v1317, %v1318
        %v1320 = vrot.slane %v1319, 1
        %v1321 = vadd.f32 %v1319, %v1320
        %1322 = vst.msk [vmem:[#allocation7 + $0x6] sm:$0x1] %vm1111, %v1321
        %s1323 = scalar_lea.vmem [#allocation4], 112
        %v1324 = vld [vmem:[%s1323] sm:$0xff]
        %v1325 = vld [vmem:[%s1323 + $0x8] sm:$0xff]
        %v1326 = vmul.f32 %v1324, %v1296
        %v1327 = vmul.f32 %v1325, %v1297
        %s1328 = scalar_lea.vmem [#allocation5], 112
        %v1329 = vld [vmem:[%s1328] sm:$0xff]
        %v1330 = vld [vmem:[%s1328 + $0x8] sm:$0xff]
        %v1331 = vadd.f32 %v1326, %v1329
        %v1332 = vadd.f32 %v1327, %v1330
        %s1333 = scalar_lea.vmem [#allocation6], 112
        %v1334 = vld [vmem:[%s1333] sm:$0xff]
        %v1335 = vld [vmem:[%s1333 + $0x8] sm:$0xff]
        %1337 = vset.pattern.permute.xlu0 0
        %1338 = vperm.xlu0 %1337, %v1334
        %v1339 = vpop.permute.xlu0 %1338
        %1342 = vset.pattern.permute.xlu0 0
        %1343 = vperm.xlu0 %1342, %v1335
        %v1344 = vpop.permute.xlu0 %1343
        %v1346 = vmul.f32 %v1331, %v1339
        %v1347 = vmul.f32 %v1332, %v1344
        %v1348 = vsel %vm604, %v1346, 0.0
        %v1349 = vsel %vm604, %v1347, 0.0
        %v1350 = vadd.f32 %v1348, %v1349
        %v1351 = vrot.slane %v1350, 4
        %v1352 = vadd.f32 %v1350, %v1351
        %v1353 = vrot.slane %v1352, 2
        %v1354 = vadd.f32 %v1352, %v1353
        %v1355 = vrot.slane %v1354, 1
        %v1356 = vadd.f32 %v1354, %v1355
        %1357 = vst.msk [vmem:[#allocation7 + $0x7] sm:$0x1] %vm1111, %v1356
        %1358 = vst.msk [vmem:[#allocation2] sm:$0xff] %vm604, %v1331
        %1359 = vst.msk [vmem:[#allocation2 + $0x8] sm:$0xff] %vm604, %v1332
        %v1360 = vld [vmem:[#allocation7] sm:$0xff]
        %v1361 = vld [vmem:[%s9] sm:$0x1]
        %v1363 = vperm.slane %v1361, 0
        %v1365 = vmul.f32 %v647, %v1363
        %v1366 = vadd.f32 %v1360, %v1365
        %v1367 = vxor.u32 %v602, 2147483648
        %v1368 = vmul.f32 %v1367, 1.442695
        %v1369 = vpow.pop %v1368
        %v1370 = vadd.f32 %v1369, 1.0
        %v1371 = vrcp.pop %v1370
        %v1372 = vmul.f32 %v1370, %v1371
        %v1373 = vsub.f32 1.0, %v1372
        %v1374 = vmul.f32 %v1371, %v1373
        %v1375 = vadd.f32 %v1371, %v1374
        %vm1376 = vweird.f32 %v1370
        %vm1377 = vweird.f32 %v1371
        %vm1378 = vmor %vm1376, %vm1377
        %v1379 = vsel %vm1378, %v1371, %v1375
        %v1380 = vand.u32 2147483647, %v1370
        %vm1381 = vcmp.eq.f32.partialorder %v1380, 8.507059e+37
        %v1382 = vand.u32 %v1370, 2147483648
        %v1383 = vor.u32 1.1754944e-38, %v1382
        %v1384 = vsel %vm1381, %v1383, %v1379
        %v1385 = vmul.f32 1.0, %v1384
        %v1386 = vmul.f32 %v602, %v1385
        %v1387 = vmul.f32 %v1366, %v1386
        %v1388 = vld [vmem:[%s10] sm:$0xff]
        %v1389 = vld [vmem:[%s10 + $0x8] sm:$0xff]
        %v1390 = vld [vmem:[%s10 + $0x10] sm:$0xff]
        %v1391 = vld [vmem:[%s10 + $0x18] sm:$0xff]
        %v1392 = vld [vmem:[%s10 + $0x20] sm:$0xff]
        %v1393 = vld [vmem:[%s10 + $0x28] sm:$0xff]
        %v1394 = vld [vmem:[%s10 + $0x30] sm:$0xff]
        %v1395 = vld [vmem:[%s10 + $0x38] sm:$0xff]
        %v1397 = vsel %vm604, %v1387, 0
        %1399 = vmatpush.msra.mxu0 0.0
        %1400 = vmatpush.msra.mxu0 0.0
        %1401 = vmatpush.msra.mxu0 0.0
        %1402 = vmatpush.msra.mxu0 0.0
        %1403 = vmatpush.msra.mxu0 0.0
        %1404 = vmatpush.msra.mxu0 0.0
        %1405 = vmatpush.msra.mxu0 0.0
        %1406 = vmatpush.msra.mxu0 0.0
        %1407 = vmatpush.msra.mxu0 %v1395
        %1408 = vmatpush.msra.mxu0 %v1394
        %1409 = vmatpush.msra.mxu0 %v1393
        %1410 = vmatpush.msra.mxu0 %v1392
        %1411 = vmatpush.msra.mxu0 %v1391
        %1412 = vmatpush.msra.mxu0 %v1390
        %1413 = vmatpush.msra.mxu0 %v1389
        %1414 = vmatpush.msra.mxu0 %v1388
        %1415 = vmatmul.f32.gmra.mxu0 %v1397
        %v1416 = vpop.f32.mrf.mxu0
        %v1417 = vadd.f32 0.0, %v1416
        %1418 = vdwg.mxu0
        %v1419 = vsel %vm556, %v1417, 0.0
        %1420 = vadd.xlane.f32.xlu0 %v1419
        %v1421 = vpop.xlane.xlu0 %1420
        %v1422 = vrcp.pop 32.0
        %v1423 = vmul.f32 32.0, %v1422
        %v1424 = vsub.f32 1.0, %v1423
        %v1425 = vmul.f32 %v1422, %v1424
        %v1426 = vadd.f32 %v1422, %v1425
        %vm1427 = vweird.f32 %v1422
        %v1428 = vsel %vm1427, %v1422, %v1426
        %v1429 = vmul.f32 %v1421, %v1428
        %v1430 = vsub.f32 %v1417, %v1429
        %v1431 = vmul.f32 %v1430, %v1430
        %v1432 = vsel %vm556, %v1431, 0.0
        %1433 = vadd.xlane.f32.xlu0 %v1432
        %v1434 = vpop.xlane.xlu0 %1433
        %v1435 = vmul.f32 %v1434, %v1428
        %v1436 = vadd.f32 %v1435, 1e-06
        %v1437 = vrsqrt.pop %v1436
        %v1438 = vmul.f32 %v1437, %v1436
        %v1439 = vmul.f32 %v1438, %v1437
        %v1440 = vmul.f32 0.5, %v1439
        %v1441 = vsub.f32 1.5, %v1440
        %v1442 = vmul.f32 %v1437, %v1441
        %vm1443 = vweird.f32 %v1436
        %vm1444 = vweird.f32 %v1437
        %vm1445 = vmor %vm1443, %vm1444
        %v1446 = vsel %vm1445, %v1437, %v1442
        %v1447 = vmul.f32 %v1430, %v1446
        %v1448 = vld [vmem:[%s11] sm:$0x1]
        %v1450 = vperm.slane %v1448, 0
        %v1452 = vmul.f32 %v1447, %v1450
        %v1453 = vld [vmem:[%s12] sm:$0x1]
        %v1455 = vperm.slane %v1453, 0
        %v1457 = vadd.f32 %v1452, %v1455
        %v1458 = vadd.f32 %v551, %v1457
        %1459 = vst.msk [vmem:[%s534] sm:$0xff] %vm556, %v1458
        %s1460 = sand.u32 %s332, 1
        %s1461 = scalar_lea.sflag [#allocation10], %s1460
        %s1462 = sand.u32 %s332, 1
        %s1463 = smul.addr %s1462, 8
        %s1464 = scalar_lea.vmem [#allocation17], %s1463
        // Predicated region
        $region97: #{tpu_custom_call.1} parent=71 // pred_check
          %p1465 = pneg %p342
        $region98: #{tpu_custom_call.1} parent=71 // pred_check_branch
          %1467 = sbr.rel (%p1465) target = $region100
        $region99: #{tpu_custom_call.1} parent=71 // pred_region
          %1469 = vsyncadd %s1461, 0
          %s1470 = smul.addr %s34, 2
          %s1471 = sadd.s32 %s35, %s1470
          %s1472 = smul.addr %s1471, 8
          %s1473 = scalar_lea.hbm %s13, %s1472
          %s1475 = sshll.u32 %s1464, 4
          %s1476 = int_to_ptr.vmem [resolvable:$true] %s1475
          %s1477 = sshll.u32 %s1473, 4
          %s1478 = int_to_ptr.hbm [resolvable:$true] %s1477
          %1480 = dma.vmem_to_hbm [thread:$0]  %s1476, 128, %s1478, %s1461
        $region100: #{tpu_custom_call.1} parent=71 // pred_fallthru
          _
      $region72: #{tpu_custom_call.1} parent=5 // pred_fallthru
        _
      %p1481 = scmp.le.s32.totalorder 2, %s25
      // Predicated region
      $region101: #{tpu_custom_call.1} parent=5 // pred_check
        %p1482 = pneg %p1481
      $region102: #{tpu_custom_call.1} parent=5 // pred_check_branch
        %1484 = sbr.rel (%p1482) target = $region104
      $region103: #{tpu_custom_call.1} parent=5 // pred_region
        %s1485 = ssub.s32 %s25, 2
        // Predicated region
        $region105: #{tpu_custom_call.1} parent=103 // pred_check
          %p1486 = pneg %p348
        $region106: #{tpu_custom_call.1} parent=103 // pred_check_branch
          %1488 = sbr.rel (%p1486) target = $region108
        $region107: #{tpu_custom_call.1} parent=103 // pred_region
          %s1489 = sand.u32 %s333, 1
          %s1490 = scalar_lea.sflag [#allocation10], %s1489
          %s1491 = sand.u32 %s333, 1
          %s1492 = smul.addr %s1491, 8
          %s1493 = scalar_lea.vmem [#allocation17], %s1492
          %1495 = dma.done %s1490, 128
        $region108: #{tpu_custom_call.1} parent=103 // pred_fallthru
          _
      $region104: #{tpu_custom_call.1} parent=5 // pred_fallthru
        _
    $region6: #{tpu_custom_call.1} parent=1 // loop_footer
      %s29 = sadd.s32 1, %s25
    $region7: #{tpu_custom_call.1} parent=1 // loop_footer_branch
      %24 = sbr.rel target = $region3
    $region8: #{tpu_custom_call.1} parent=1 // loop_exit
      _
    %1496 = vsyncpa [#allocation9], 1
    %s1497 = scalar_lea.sflag [#allocation9], 1
    %1498 = vsyncpa %s1497, 1
    %1499 = vsyncpa [#allocation12], 1
    %1500 = vsyncpa [#allocation15], 1
    %1501 = vsyncpa [#allocation10], 1
    %s1502 = scalar_lea.sflag [#allocation10], 1
    %1503 = vsyncpa %s1502, 1

</llo_original>
